<compile_context>
chip_gen: v5e
topology: v5e:2x2
jax: 0.10.0
libtpu: 0.0.40
codegen_flags: <defaults>
</compile_context>

<pallas_src>
import jax
import jax.numpy as jnp
from jax import lax
from jax.experimental import pallas as pl
from jax.experimental.pallas import tpu as pltpu

CIN = 3        # xyz channels
CIN_PAD = 8    # pad 3 -> 8 for a sublane-friendly first matmul


def featurenet_kernel(feat_ref, w1_ref, w_ref, out_ref):
    """One (batch, point-tile) step: conv1x1+ReLU stack, then max over k neighbors.

    feat_ref: (1, k, TN, CIN_PAD)       bf16  relative kNN coords, neighbor-major
    w1_ref:   (CIN_PAD, dim)            bf16  first 1x1 conv weight (in, out)
    w_ref:    (num_block-1, dim, dim)   bf16  remaining 1x1 conv weights (in, out)
    out_ref:  (1, TN, dim)              f32   per-point features (after neighbor max)
    """
    k, tn, cin = feat_ref.shape[1], feat_ref.shape[2], feat_ref.shape[3]
    dim = w1_ref.shape[1]

    # Fold neighbors into the matmul M dimension: (k*TN, CIN_PAD) bf16.
    f = feat_ref[0].reshape(k * tn, cin)

    # Layer 1: (k*TN, CIN_PAD) @ (CIN_PAD, dim) -> f32 accumulate, then ReLU.
    h = jnp.dot(f, w1_ref[...], preferred_element_type=jnp.float32)
    h = jnp.maximum(h, 0.0)

    # Remaining 1x1 conv layers: bf16 operands, f32 accumulation on the MXU.
    for i in range(w_ref.shape[0]):          # static unroll (num_block-1 layers)
        h = jnp.dot(h.astype(jnp.bfloat16), w_ref[i],
                    preferred_element_type=jnp.float32)
        h = jnp.maximum(h, 0.0)

    # Max over the k neighbors (leading-axis reduction -> plain VPU vmax,
    # no cross-lane shuffles since (tn, dim) tiles stay intact).
    out_ref[0] = jnp.max(h.reshape(k, tn, dim), axis=0)


def _group_relative(xyz, k):
    """kNN grouping with centered (relative) coordinates.

    xyz: (B, 3, N) -> (B, k, N, 3), neighbor-major. Plain JAX (wrapper glue).
    """
    p = jnp.transpose(xyz, (0, 2, 1))                                   # (B, N, 3)
    d2 = jnp.sum((p[:, :, None, :] - p[:, None, :, :]) ** 2, axis=-1)   # (B, N, N)
    _, idx = lax.top_k(-d2, k)                                          # (B, N, k), self first
    gathered = jax.vmap(lambda pts, ii: pts[ii])(p, idx)                # (B, N, k, 3)
    rel = gathered - p[:, :, None, :]                                   # centered coords
    return jnp.transpose(rel, (0, 2, 1, 3))                             # (B, k, N, 3)


def _pick_tile(n):
    """Largest point tile (multiple of 128, capped at 512) that divides N."""
    for t in (512, 384, 256, 128):
        if n % t == 0:
            return t
    return n  # small N: take the whole axis in one block


def featurenet(xyz, params, k=8):
    """xyz: (B, 3, N). Returns per-point features (B, dim, N), matching torch."""
    B, _, N = xyz.shape
    w1, w = params["w1"], params["w"]          # (3, dim), (num_block-1, dim, dim)
    dim = w1.shape[1]
    nb_rest = w.shape[0]
    assert nb_rest >= 1, "kernel expects num_block >= 2 (module default is 3)"

    tn = _pick_tile(N)
    grid = (B, N // tn)

    # Wrapper-side grouping + bf16 casts (shrinks DMA bytes; MXU is bf16-native).
    rel = _group_relative(xyz, k)                                        # (B, k, N, 3) f32
    feats = jnp.zeros((B, k, N, CIN_PAD), jnp.bfloat16)
    feats = feats.at[..., :CIN].set(rel.astype(jnp.bfloat16))
    w1_p = jnp.zeros((CIN_PAD, dim), jnp.bfloat16).at[:CIN, :].set(w1.astype(jnp.bfloat16))
    w_bf = w.astype(jnp.bfloat16)

    out = pl.pallas_call(
        featurenet_kernel,
        out_shape=jax.ShapeDtypeStruct((B, N, dim), jnp.float32),
        grid=grid,
        in_specs=[
            pl.BlockSpec((1, k, tn, CIN_PAD), lambda b, t: (b, 0, t, 0)),
            pl.BlockSpec((CIN_PAD, dim), lambda b, t: (0, 0)),           # grid-invariant
            pl.BlockSpec((nb_rest, dim, dim), lambda b, t: (0, 0, 0)),   # grid-invariant
        ],
        out_specs=pl.BlockSpec((1, tn, dim), lambda b, t: (b, t, 0)),    # lane-dense (dim=128)
        compiler_params=pltpu.CompilerParams(
            dimension_semantics=("parallel", "parallel")),
    )(feats, w1_p, w_bf)

    return jnp.transpose(out, (0, 2, 1))                                 # (B, dim, N)


def reference(xyz, params, k=8):
    """Plain-JAX f32 reference mirroring the torch forward pass."""
    rel = _group_relative(xyz, k)                                        # (B, k, N, 3)
    w1, w = params["w1"], params["w"]
    h = jnp.maximum(jnp.einsum("bknc,cd->bknd", rel, w1), 0.0)
    for i in range(w.shape[0]):
        h = jnp.maximum(jnp.einsum("bknd,de->bkne", h, w[i]), 0.0)
    out = jnp.max(h, axis=1)                                             # max over k neighbors
    return jnp.transpose(out, (0, 2, 1))                                 # (B, dim, N)


if __name__ == "__main__":
    B, N, K, DIM, NUM_BLOCK = 2, 256, 8, 128, 3  # module defaults: k=8, dim=128, num_block=3

    key = jax.random.PRNGKey(0)
    k1, k2, k3 = jax.random.split(key, 3)
    xyz = jax.random.normal(k1, (B, 3, N), jnp.float32)

    # deterministic synthetic weights (xavier-uniform-style scale), stored (in, out)
    s1 = (6.0 / (CIN + DIM)) ** 0.5
    s2 = (6.0 / (DIM + DIM)) ** 0.5
    params = dict(
        w1=jax.random.uniform(k2, (CIN, DIM), jnp.float32, -s1, s1),
        w=jax.random.uniform(k3, (NUM_BLOCK - 1, DIM, DIM), jnp.float32, -s2, s2),
    )

    out = featurenet(xyz, params, k=K)
    jax.block_until_ready(out)

    ref = reference(xyz, params, k=K)
    assert out.shape == (B, DIM, N)
    err = float(jnp.max(jnp.abs(out - ref)))
    assert bool(jnp.allclose(out, ref, rtol=5e-2, atol=5e-2)), err
    print("KERNEL_OK")
</pallas_src>

<mosaic_0001>
module attributes {stable_mosaic.version = 11 : i64} {
  func.func @featurenet_kernel(%arg0: i32, %arg1: i32, %arg2: memref<1x8x256x8xbf16, #tpu.memory_space<vmem>>, %arg3: memref<8x128xbf16, #tpu.memory_space<vmem>>, %arg4: memref<2x128x128xbf16, #tpu.memory_space<vmem>>, %arg5: memref<1x256x128xf32, #tpu.memory_space<vmem>>) attributes {dimension_semantics = [#tpu.dimension_semantics<parallel>, #tpu.dimension_semantics<parallel>], iteration_bounds = array<i64: 2, 1>, scalar_prefetch = 0 : i64, scratch_operands = 0 : i64, tpu.core_type = #tpu.core_type<tc>, window_params = [{transform_indices = @transform_0, window_bounds = array<i64: 1, 8, 256, 8>}, {pipeline_mode = #tpu.pipeline_mode<synchronous>, transform_indices = @transform_1, window_bounds = array<i64: 8, 128>}, {pipeline_mode = #tpu.pipeline_mode<synchronous>, transform_indices = @transform_2, window_bounds = array<i64: 2, 128, 128>}, {transform_indices = @transform_3, window_bounds = array<i64: 1, 256, 128>}]} {
    %c0 = arith.constant 0 : index
    %c0_0 = arith.constant 0 : index
    %c0_1 = arith.constant 0 : index
    %c0_2 = arith.constant 0 : index
    %0 = vector.load %arg2[%c0, %c0_0, %c0_1, %c0_2] : memref<1x8x256x8xbf16, #tpu.memory_space<vmem>>, vector<1x8x256x8xbf16>
    %1 = vector.shape_cast %0 : vector<1x8x256x8xbf16> to vector<8x256x8xbf16>
    %2 = vector.shape_cast %1 : vector<8x256x8xbf16> to vector<2048x8xbf16>
    %c0_3 = arith.constant 0 : index
    %c0_4 = arith.constant 0 : index
    %3 = vector.load %arg3[%c0_3, %c0_4] : memref<8x128xbf16, #tpu.memory_space<vmem>>, vector<8x128xbf16>
    %cst = arith.constant dense<0.000000e+00> : vector<2048x128xf32>
    %4 = tpu.matmul %2, %3, %cst {dimension_numbers = #tpu.dot_dimension_numbers<[1], [0], [0], [1], [0, 0, 1, 1], [], []>} : vector<2048x8xbf16>, vector<8x128xbf16>, vector<2048x128xf32> -> vector<2048x128xf32>
    %cst_5 = arith.constant 0.000000e+00 : f32
    %5 = vector.broadcast %cst_5 : f32 to vector<2048x128xf32>
    %6 = arith.maximumf %4, %5 : vector<2048x128xf32>
    %7 = arith.truncf %6 : vector<2048x128xf32> to vector<2048x128xbf16>
    %c0_6 = arith.constant 0 : index
    %c0_7 = arith.constant 0 : index
    %c0_8 = arith.constant 0 : index
    %8 = vector.load %arg4[%c0_6, %c0_7, %c0_8] : memref<2x128x128xbf16, #tpu.memory_space<vmem>>, vector<1x128x128xbf16>
    %9 = vector.shape_cast %8 : vector<1x128x128xbf16> to vector<128x128xbf16>
    %cst_9 = arith.constant dense<0.000000e+00> : vector<2048x128xf32>
    %10 = tpu.matmul %7, %9, %cst_9 {dimension_numbers = #tpu.dot_dimension_numbers<[1], [0], [0], [1], [0, 0, 1, 1], [], []>} : vector<2048x128xbf16>, vector<128x128xbf16>, vector<2048x128xf32> -> vector<2048x128xf32>
    %cst_10 = arith.constant 0.000000e+00 : f32
    %11 = vector.broadcast %cst_10 : f32 to vector<2048x128xf32>
    %12 = arith.maximumf %10, %11 : vector<2048x128xf32>
    %13 = arith.truncf %12 : vector<2048x128xf32> to vector<2048x128xbf16>
    %c1 = arith.constant 1 : index
    %c0_11 = arith.constant 0 : index
    %c0_12 = arith.constant 0 : index
    %14 = vector.load %arg4[%c1, %c0_11, %c0_12] : memref<2x128x128xbf16, #tpu.memory_space<vmem>>, vector<1x128x128xbf16>
    %15 = vector.shape_cast %14 : vector<1x128x128xbf16> to vector<128x128xbf16>
    %cst_13 = arith.constant dense<0.000000e+00> : vector<2048x128xf32>
    %16 = tpu.matmul %13, %15, %cst_13 {dimension_numbers = #tpu.dot_dimension_numbers<[1], [0], [0], [1], [0, 0, 1, 1], [], []>} : vector<2048x128xbf16>, vector<128x128xbf16>, vector<2048x128xf32> -> vector<2048x128xf32>
    %cst_14 = arith.constant 0.000000e+00 : f32
    %17 = vector.broadcast %cst_14 : f32 to vector<2048x128xf32>
    %18 = arith.maximumf %16, %17 : vector<2048x128xf32>
    %19 = vector.shape_cast %18 : vector<2048x128xf32> to vector<8x256x128xf32>
    %cst_15 = arith.constant dense<0xFF800000> : vector<256x128xf32>
    %20 = vector.multi_reduction <maximumf>, %19, %cst_15 [0] : vector<8x256x128xf32> to vector<256x128xf32>
    %c0_16 = arith.constant 0 : index
    %c0_17 = arith.constant 0 : index
    %c0_18 = arith.constant 0 : index
    %21 = vector.load %arg5[%c0_16, %c0_17, %c0_18] : memref<1x256x128xf32, #tpu.memory_space<vmem>>, vector<1x256x128xf32>
    %22 = vector.shape_cast %21 : vector<1x256x128xf32> to vector<256x128xf32>
    %23 = vector.shape_cast %20 : vector<256x128xf32> to vector<1x256x128xf32>
    tpu.vector_store %arg5[%c0_16, %c0_17, %c0_18], %23 {strides = array<i32>} : memref<1x256x128xf32, #tpu.memory_space<vmem>>, vector<1x256x128xf32>,
    return
  }
  func.func @transform_0(%arg0: i32, %arg1: i32) -> (i32, i32, i32, i32) {
    %c0_i32 = arith.constant 0 : i32
    %c0_i32_0 = arith.constant 0 : i32
    %c0_i32_1 = arith.constant 0 : i32
    return %arg0, %c0_i32, %arg1, %c0_i32_0 : i32, i32, i32, i32
  }
  func.func @transform_1(%arg0: i32, %arg1: i32) -> (i32, i32) {
    %c0_i32 = arith.constant 0 : i32
    %c0_i32_0 = arith.constant 0 : i32
    %c0_i32_1 = arith.constant 0 : i32
    return %c0_i32, %c0_i32_0 : i32, i32
  }
  func.func @transform_2(%arg0: i32, %arg1: i32) -> (i32, i32, i32) {
    %c0_i32 = arith.constant 0 : i32
    %c0_i32_0 = arith.constant 0 : i32
    %c0_i32_1 = arith.constant 0 : i32
    %c0_i32_2 = arith.constant 0 : i32
    return %c0_i32, %c0_i32_0, %c0_i32_1 : i32, i32, i32
  }
  func.func @transform_3(%arg0: i32, %arg1: i32) -> (i32, i32, i32) {
    %c0_i32 = arith.constant 0 : i32
    %c0_i32_0 = arith.constant 0 : i32
    return %arg0, %arg1, %c0_i32 : i32, i32, i32
  }
}

</mosaic_0001>

<llo_original>
// kernel: tpu_custom_call.1
$region0: #{tpu_custom_call.1}
  #allocation0 [shape = 'u32[]', space=smem, size = 0x4, offset = 0x4, fixed_abs, tag = 'smem constant byte address 0x4 - core index']
  #allocation1 [shape = 'u32[72,128]{1,0:T(1,128)}', space=vmem, size = 0x9000, scoped, tag = 'internal scratch']
  %s0 = inlined_call_operand.vmem [shape: bf16[2,8,256,8], index: 0, kind: input, shape index: {}]
  %s1 = inlined_call_operand.vmem [shape: bf16[8,128], index: 1, kind: input, shape index: {}]
  %s2 = inlined_call_operand.vmem [shape: bf16[2,128,128], index: 2, kind: input, shape index: {}]
  %s3 = inlined_call_operand.hbm [shape: f32[2,256,128], index: 3, kind: output, shape index: {}]
  %s4 = sld [smem:[#allocation0]]
  $region45: #{tpu_custom_call.1} parent=0
    _
  %s6 = ssub.s32 1, %s4
  %s7 = scalar_select 0, %s6, %s4
  $region1: #{tpu_custom_call.1} parent=0
    #allocation2 [shape = 'u8[262144]{0}', space=vmem, size = 0x40000, scoped, tag = 'output window, operand 0']
    #allocation3 [shape = 's32[2]{0}', space=sflag, size = 0x8, scoped, tag = 'scoped memory for tpu_custom_call.1']
    %8 = vsyncpa [#allocation3], 0
    %s9 = scalar_lea.sflag [#allocation3], 1
    %10 = vsyncpa %s9, 0
    loop: start=0, step=1, limit=4
    $region2: #{tpu_custom_call.1} parent=1 // loop_pre_header
      _
    $region3: #{tpu_custom_call.1} parent=1 // loop_header
      %s12 = sphi 0, %s16
      %p13 = scmp.ge.s32.totalorder %s12, 4
      %s19 = sphi 0, %s31
      %s20 = sphi 0, %s27
      %s21 = sphi 0, %s19
      %s22 = sphi 0, %s20
      %s23 = sphi 0, %s21
      %s24 = sphi 0, %s22
      %s36 = sphi 0, %s38
      %s39 = sphi 0, %s36
      %s40 = sphi 0, %s39
      %s56 = sphi 0, %s40
      %s60 = sphi 0, %s60
      %s62 = sphi 0, %s60
      %s63 = sphi 0, %s62
      %s77 = sphi 0, %s63
      %s81 = sphi 0, %s81
      %s83 = sphi 0, %s81
      %s84 = sphi 0, %s83
      %s98 = sphi 0, %s84
      %s106 = sphi 0, %s108
      %s109 = sphi 0, %s106
      %s110 = sphi 0, %s109
      %s126 = sphi 0, %s110
    $region4: #{tpu_custom_call.1} parent=1 // loop_header_branch
      %15 = sbr.rel (%p13) target = $region8
    $region5: #{tpu_custom_call.1} parent=1 // loop_body
      %s17 = ssub.s32 %s12, 1
      %s18 = ssub.s32 %s12, 2
      %s25 = sadd.s32 1, %s20
      %p26 = scmp.ge.s32.totalorder %s25, 1
      %s27 = scalar_select %p26, 0, %s25
      %s28 = sadd.s32 1, %s19
      %s29 = scalar_select %p26, %s28, %s19
      %p30 = scmp.ge.s32.totalorder %s29, 2
      %s31 = scalar_select %p30, 0, %s29
      %s32 = ssub.s32 %s19, %s31
      %s33 = ssub.s32 %s20, %s27
      %s34 = sor.u32 %s32, %s33
      %p35 = scmp.eq.s32.totalorder %s34, 0
      %s37 = sadd.s32 %s36, 1
      %s38 = scalar_select %p35, %s36, %s37
      %p41 = pneg %p35
      %p42 = scmp.eq.s32.totalorder %s12, 1
      %p43 = por %p41, %p42
      %p44 = scmp.ne.s32.totalorder %s36, %s39
      %p45 = scmp.eq.s32.totalorder %s12, 0
      %p46 = por %p44, %p45
      %p47 = scmp.ne.s32.totalorder %s36, %s39
      %p48 = scmp.eq.s32.totalorder %s17, 1
      %p49 = por %p47, %p48
      %p50 = scmp.ne.s32.totalorder %s39, %s40
      %p51 = scmp.eq.s32.totalorder %s17, 0
      %p52 = por %p50, %p51
      %p53 = scmp.ne.s32.totalorder %s39, %s40
      %p54 = scmp.eq.s32.totalorder %s18, 1
      %p55 = por %p53, %p54
      %p57 = scmp.ne.s32.totalorder %s40, %s56
      %p58 = scmp.eq.s32.totalorder %s18, 0
      %p59 = por %p57, %p58
      %s61 = sadd.s32 %s60, 1
      %p64 = scmp.eq.s32.totalorder %s12, 1
      %p65 = scmp.ne.s32.totalorder %s60, %s62
      %p66 = scmp.eq.s32.totalorder %s12, 0
      %p67 = por %p65, %p66
      %p68 = scmp.ne.s32.totalorder %s60, %s62
      %p69 = scmp.eq.s32.totalorder %s17, 1
      %p70 = por %p68, %p69
      %p71 = scmp.ne.s32.totalorder %s62, %s63
      %p72 = scmp.eq.s32.totalorder %s17, 0
      %p73 = por %p71, %p72
      %p74 = scmp.ne.s32.totalorder %s62, %s63
      %p75 = scmp.eq.s32.totalorder %s18, 1
      %p76 = por %p74, %p75
      %p78 = scmp.ne.s32.totalorder %s63, %s77
      %p79 = scmp.eq.s32.totalorder %s18, 0
      %p80 = por %p78, %p79
      %s82 = sadd.s32 %s81, 1
      %p85 = scmp.eq.s32.totalorder %s12, 1
      %p86 = scmp.ne.s32.totalorder %s81, %s83
      %p87 = scmp.eq.s32.totalorder %s12, 0
      %p88 = por %p86, %p87
      %p89 = scmp.ne.s32.totalorder %s81, %s83
      %p90 = scmp.eq.s32.totalorder %s17, 1
      %p91 = por %p89, %p90
      %p92 = scmp.ne.s32.totalorder %s83, %s84
      %p93 = scmp.eq.s32.totalorder %s17, 0
      %p94 = por %p92, %p93
      %p95 = scmp.ne.s32.totalorder %s83, %s84
      %p96 = scmp.eq.s32.totalorder %s18, 1
      %p97 = por %p95, %p96
      %p99 = scmp.ne.s32.totalorder %s84, %s98
      %p100 = scmp.eq.s32.totalorder %s18, 0
      %p101 = por %p99, %p100
      %s102 = ssub.s32 %s19, %s31
      %s103 = ssub.s32 %s20, %s27
      %s104 = sor.u32 %s102, %s103
      %p105 = scmp.eq.s32.totalorder %s104, 0
      %s107 = sadd.s32 %s106, 1
      %s108 = scalar_select %p105, %s106, %s107
      %p111 = pneg %p105
      %p112 = scmp.eq.s32.totalorder %s12, 1
      %p113 = por %p111, %p112
      %p114 = scmp.ne.s32.totalorder %s106, %s109
      %p115 = scmp.eq.s32.totalorder %s12, 0
      %p116 = por %p114, %p115
      %p117 = scmp.ne.s32.totalorder %s106, %s109
      %p118 = scmp.eq.s32.totalorder %s17, 1
      %p119 = por %p117, %p118
      %p120 = scmp.ne.s32.totalorder %s109, %s110
      %p121 = scmp.eq.s32.totalorder %s17, 0
      %p122 = por %p120, %p121
      %p123 = scmp.ne.s32.totalorder %s109, %s110
      %p124 = scmp.eq.s32.totalorder %s18, 1
      %p125 = por %p123, %p124
      %p127 = scmp.ne.s32.totalorder %s110, %s126
      %p128 = scmp.eq.s32.totalorder %s18, 0
      %p129 = por %p127, %p128
      %p130 = scmp.le.s32.totalorder 1, %s12
      %p131 = scmp.lt.s32.totalorder %s12, 3
      %p132 = pnand %p130, %p131
      %p133 = pneg %p132
      // Predicated region
      $region9: #{tpu_custom_call.1} parent=5 // pred_check
        _
      $region10: #{tpu_custom_call.1} parent=5 // pred_check_branch
        %135 = sbr.rel (%p132) target = $region12
      $region11: #{tpu_custom_call.1} parent=5 // pred_region
        %s136 = ssub.s32 %s12, 1
        // Predicated region
        $region13: #{tpu_custom_call.1} parent=11 // pred_check
          %p137 = pneg %p73
        $region14: #{tpu_custom_call.1} parent=11 // pred_check_branch
          %139 = sbr.rel (%p137) target = $region16
        $region15: #{tpu_custom_call.1} parent=11 // pred_region
          _
        $region16: #{tpu_custom_call.1} parent=11 // pred_fallthru
          _
        // Predicated region
        $region17: #{tpu_custom_call.1} parent=11 // pred_check
          %p140 = pneg %p94
        $region18: #{tpu_custom_call.1} parent=11 // pred_check_branch
          %142 = sbr.rel (%p140) target = $region20
        $region19: #{tpu_custom_call.1} parent=11 // pred_region
          _
        $region20: #{tpu_custom_call.1} parent=11 // pred_fallthru
          _
      $region12: #{tpu_custom_call.1} parent=5 // pred_fallthru
        _
      %p143 = scmp.lt.s32.totalorder %s12, 2
      // Predicated region
      $region21: #{tpu_custom_call.1} parent=5 // pred_check
        %p144 = pneg %p143
      $region22: #{tpu_custom_call.1} parent=5 // pred_check_branch
        %146 = sbr.rel (%p144) target = $region24
      $region23: #{tpu_custom_call.1} parent=5 // pred_region
        // Predicated region
        $region25: #{tpu_custom_call.1} parent=23 // pred_check
          %p147 = pneg %p46
        $region26: #{tpu_custom_call.1} parent=23 // pred_check_branch
          %149 = sbr.rel (%p147) target = $region28
        $region27: #{tpu_custom_call.1} parent=23 // pred_region
          %s150 = smul.u32 32, %s20
          %p151 = scmp.lt.s32.totalorder %s19, 1
          %s152 = scalar_select %p151, %s19, 1
          %p153 = scmp.lt.s32.totalorder %s150, 31
          %s154 = scalar_select %p153, %s150, 31
          %s155 = smul.addr %s152, 256
          %s156 = sadd.s32 %s154, %s155
          %s157 = smul.addr %s156, 4
          %s158 = scalar_lea.vmem %s0, %s157
          %s159 = smul.u32 32, %s20
        $region28: #{tpu_custom_call.1} parent=23 // pred_fallthru
          _
      $region24: #{tpu_custom_call.1} parent=5 // pred_fallthru
        _
      %p160 = scmp.le.s32.totalorder 1, %s12
      %p161 = scmp.lt.s32.totalorder %s12, 3
      %p162 = pnand %p160, %p161
      %p163 = pneg %p162
      // Predicated region
      $region29: #{tpu_custom_call.1} parent=5 // pred_check
        _
      $region30: #{tpu_custom_call.1} parent=5 // pred_check_branch
        %165 = sbr.rel (%p162) target = $region32
      $region31: #{tpu_custom_call.1} parent=5 // pred_region
        %s166 = ssub.s32 %s12, 1
        %s167 = smul.u32 32, %s22
        %p168 = scmp.lt.s32.totalorder %s21, 1
        %s169 = scalar_select %p168, %s21, 1
        %p170 = scmp.lt.s32.totalorder %s167, 31
        %s171 = scalar_select %p170, %s167, 31
        %s172 = smul.addr %s169, 256
        %s173 = sadd.s32 %s171, %s172
        %s174 = smul.addr %s173, 4
        %s175 = scalar_lea.vmem %s0, %s174
        %p176 = pneg %p52
        %p177 = pneg %p49
        %p178 = pneg %p73
        %p179 = pneg %p70
        %p180 = pneg %p94
        %p181 = pneg %p91
        %p182 = pneg %p122
        %p183 = pneg %p119
        %s184 = sand.u32 %s109, 1
        %s185 = scalar_lea.sflag [#allocation3], %s184
        %s186 = sand.u32 %s109, 1
        %s187 = smul.addr %s186, 256
        %s188 = scalar_lea.vmem [#allocation2], %s187
        %s189 = smul.u32 32, %s22
        %p190 = scmp.lt.s32.totalorder %s21, 1
        %s191 = scalar_select %p190, %s21, 1
        %p192 = scmp.lt.s32.totalorder %s189, 31
        %s193 = scalar_select %p192, %s189, 31
        %s194 = smul.addr %s191, 256
        %s195 = sadd.s32 %s193, %s194
        %s196 = smul.addr %s195, 4
        %s197 = scalar_lea.vmem %s0, %s196
        %s198 = smul.u32 32, %s22
        %s199 = smul.u32 32, %s22
        %v201 = vld [vmem:[%s197] sm:$0xf]
        %v202 = vld [vmem:[%s197 + $0x4] sm:$0xf]
        %v203 = vld [vmem:[%s197 + $0x8] sm:$0xf]
        %v204 = vld [vmem:[%s197 + $0xc] sm:$0xf]
        %v205 = vld [vmem:[%s197 + $0x10] sm:$0xf]
        %v206 = vld [vmem:[%s197 + $0x14] sm:$0xf]
        %v207 = vld [vmem:[%s197 + $0x18] sm:$0xf]
        %v208 = vld [vmem:[%s197 + $0x1c] sm:$0xf]
        %v209 = vld [vmem:[%s197 + $0x20] sm:$0xf]
        %v210 = vld [vmem:[%s197 + $0x24] sm:$0xf]
        %v211 = vld [vmem:[%s197 + $0x28] sm:$0xf]
        %v212 = vld [vmem:[%s197 + $0x2c] sm:$0xf]
        %v213 = vld [vmem:[%s197 + $0x30] sm:$0xf]
        %v214 = vld [vmem:[%s197 + $0x34] sm:$0xf]
        %v215 = vld [vmem:[%s197 + $0x38] sm:$0xf]
        %v216 = vld [vmem:[%s197 + $0x3c] sm:$0xf]
        %v217 = vld [vmem:[%s197 + $0x40] sm:$0xf]
        %v218 = vld [vmem:[%s197 + $0x44] sm:$0xf]
        %v219 = vld [vmem:[%s197 + $0x48] sm:$0xf]
        %v220 = vld [vmem:[%s197 + $0x4c] sm:$0xf]
        %v221 = vld [vmem:[%s197 + $0x50] sm:$0xf]
        %v222 = vld [vmem:[%s197 + $0x54] sm:$0xf]
        %v223 = vld [vmem:[%s197 + $0x58] sm:$0xf]
        %v224 = vld [vmem:[%s197 + $0x5c] sm:$0xf]
        %v225 = vld [vmem:[%s197 + $0x60] sm:$0xf]
        %v226 = vld [vmem:[%s197 + $0x64] sm:$0xf]
        %v227 = vld [vmem:[%s197 + $0x68] sm:$0xf]
        %v228 = vld [vmem:[%s197 + $0x6c] sm:$0xf]
        %v229 = vld [vmem:[%s197 + $0x70] sm:$0xf]
        %v230 = vld [vmem:[%s197 + $0x74] sm:$0xf]
        %v231 = vld [vmem:[%s197 + $0x78] sm:$0xf]
        %v232 = vld [vmem:[%s197 + $0x7c] sm:$0xf]
        %v233 = vld [vmem:[%s197 + $0x80] sm:$0xf]
        %v234 = vld [vmem:[%s197 + $0x84] sm:$0xf]
        %v235 = vld [vmem:[%s197 + $0x88] sm:$0xf]
        %v236 = vld [vmem:[%s197 + $0x8c] sm:$0xf]
        %v237 = vld [vmem:[%s197 + $0x90] sm:$0xf]
        %v238 = vld [vmem:[%s197 + $0x94] sm:$0xf]
        %v239 = vld [vmem:[%s197 + $0x98] sm:$0xf]
        %v240 = vld [vmem:[%s197 + $0x9c] sm:$0xf]
        %v241 = vld [vmem:[%s197 + $0xa0] sm:$0xf]
        %v242 = vld [vmem:[%s197 + $0xa4] sm:$0xf]
        %v243 = vld [vmem:[%s197 + $0xa8] sm:$0xf]
        %v244 = vld [vmem:[%s197 + $0xac] sm:$0xf]
        %v245 = vld [vmem:[%s197 + $0xb0] sm:$0xf]
        %v246 = vld [vmem:[%s197 + $0xb4] sm:$0xf]
        %v247 = vld [vmem:[%s197 + $0xb8] sm:$0xf]
        %v248 = vld [vmem:[%s197 + $0xbc] sm:$0xf]
        %v249 = vld [vmem:[%s197 + $0xc0] sm:$0xf]
        %v250 = vld [vmem:[%s197 + $0xc4] sm:$0xf]
        %v251 = vld [vmem:[%s197 + $0xc8] sm:$0xf]
        %v252 = vld [vmem:[%s197 + $0xcc] sm:$0xf]
        %v253 = vld [vmem:[%s197 + $0xd0] sm:$0xf]
        %v254 = vld [vmem:[%s197 + $0xd4] sm:$0xf]
        %v255 = vld [vmem:[%s197 + $0xd8] sm:$0xf]
        %v256 = vld [vmem:[%s197 + $0xdc] sm:$0xf]
        %v257 = vld [vmem:[%s197 + $0xe0] sm:$0xf]
        %v258 = vld [vmem:[%s197 + $0xe4] sm:$0xf]
        %v259 = vld [vmem:[%s197 + $0xe8] sm:$0xf]
        %v260 = vld [vmem:[%s197 + $0xec] sm:$0xf]
        %v261 = vld [vmem:[%s197 + $0xf0] sm:$0xf]
        %v262 = vld [vmem:[%s197 + $0xf4] sm:$0xf]
        %v263 = vld [vmem:[%s197 + $0xf8] sm:$0xf]
        %v264 = vld [vmem:[%s197 + $0xfc] sm:$0xf]
        %v265 = vld [vmem:[%s197 + $0x100] sm:$0xf]
        %v266 = vld [vmem:[%s197 + $0x104] sm:$0xf]
        %v267 = vld [vmem:[%s197 + $0x108] sm:$0xf]
        %v268 = vld [vmem:[%s197 + $0x10c] sm:$0xf]
        %v269 = vld [vmem:[%s197 + $0x110] sm:$0xf]
        %v270 = vld [vmem:[%s197 + $0x114] sm:$0xf]
        %v271 = vld [vmem:[%s197 + $0x118] sm:$0xf]
        %v272 = vld [vmem:[%s197 + $0x11c] sm:$0xf]
        %v273 = vld [vmem:[%s197 + $0x120] sm:$0xf]
        %v274 = vld [vmem:[%s197 + $0x124] sm:$0xf]
        %v275 = vld [vmem:[%s197 + $0x128] sm:$0xf]
        %v276 = vld [vmem:[%s197 + $0x12c] sm:$0xf]
        %v277 = vld [vmem:[%s197 + $0x130] sm:$0xf]
        %v278 = vld [vmem:[%s197 + $0x134] sm:$0xf]
        %v279 = vld [vmem:[%s197 + $0x138] sm:$0xf]
        %v280 = vld [vmem:[%s197 + $0x13c] sm:$0xf]
        %v281 = vld [vmem:[%s197 + $0x140] sm:$0xf]
        %v282 = vld [vmem:[%s197 + $0x144] sm:$0xf]
        %v283 = vld [vmem:[%s197 + $0x148] sm:$0xf]
        %v284 = vld [vmem:[%s197 + $0x14c] sm:$0xf]
        %v285 = vld [vmem:[%s197 + $0x150] sm:$0xf]
        %v286 = vld [vmem:[%s197 + $0x154] sm:$0xf]
        %v287 = vld [vmem:[%s197 + $0x158] sm:$0xf]
        %v288 = vld [vmem:[%s197 + $0x15c] sm:$0xf]
        %v289 = vld [vmem:[%s197 + $0x160] sm:$0xf]
        %v290 = vld [vmem:[%s197 + $0x164] sm:$0xf]
        %v291 = vld [vmem:[%s197 + $0x168] sm:$0xf]
        %v292 = vld [vmem:[%s197 + $0x16c] sm:$0xf]
        %v293 = vld [vmem:[%s197 + $0x170] sm:$0xf]
        %v294 = vld [vmem:[%s197 + $0x174] sm:$0xf]
        %v295 = vld [vmem:[%s197 + $0x178] sm:$0xf]
        %v296 = vld [vmem:[%s197 + $0x17c] sm:$0xf]
        %v297 = vld [vmem:[%s197 + $0x180] sm:$0xf]
        %v298 = vld [vmem:[%s197 + $0x184] sm:$0xf]
        %v299 = vld [vmem:[%s197 + $0x188] sm:$0xf]
        %v300 = vld [vmem:[%s197 + $0x18c] sm:$0xf]
        %v301 = vld [vmem:[%s197 + $0x190] sm:$0xf]
        %v302 = vld [vmem:[%s197 + $0x194] sm:$0xf]
        %v303 = vld [vmem:[%s197 + $0x198] sm:$0xf]
        %v304 = vld [vmem:[%s197 + $0x19c] sm:$0xf]
        %v305 = vld [vmem:[%s197 + $0x1a0] sm:$0xf]
        %v306 = vld [vmem:[%s197 + $0x1a4] sm:$0xf]
        %v307 = vld [vmem:[%s197 + $0x1a8] sm:$0xf]
        %v308 = vld [vmem:[%s197 + $0x1ac] sm:$0xf]
        %v309 = vld [vmem:[%s197 + $0x1b0] sm:$0xf]
        %v310 = vld [vmem:[%s197 + $0x1b4] sm:$0xf]
        %v311 = vld [vmem:[%s197 + $0x1b8] sm:$0xf]
        %v312 = vld [vmem:[%s197 + $0x1bc] sm:$0xf]
        %v313 = vld [vmem:[%s197 + $0x1c0] sm:$0xf]
        %v314 = vld [vmem:[%s197 + $0x1c4] sm:$0xf]
        %v315 = vld [vmem:[%s197 + $0x1c8] sm:$0xf]
        %v316 = vld [vmem:[%s197 + $0x1cc] sm:$0xf]
        %v317 = vld [vmem:[%s197 + $0x1d0] sm:$0xf]
        %v318 = vld [vmem:[%s197 + $0x1d4] sm:$0xf]
        %v319 = vld [vmem:[%s197 + $0x1d8] sm:$0xf]
        %v320 = vld [vmem:[%s197 + $0x1dc] sm:$0xf]
        %v321 = vld [vmem:[%s197 + $0x1e0] sm:$0xf]
        %v322 = vld [vmem:[%s197 + $0x1e4] sm:$0xf]
        %v323 = vld [vmem:[%s197 + $0x1e8] sm:$0xf]
        %v324 = vld [vmem:[%s197 + $0x1ec] sm:$0xf]
        %v325 = vld [vmem:[%s197 + $0x1f0] sm:$0xf]
        %v326 = vld [vmem:[%s197 + $0x1f4] sm:$0xf]
        %v327 = vld [vmem:[%s197 + $0x1f8] sm:$0xf]
        %v328 = vld [vmem:[%s197 + $0x1fc] sm:$0xf]
        %v329 = vld [vmem:[%s197 + $0x200] sm:$0xf]
        %v330 = vld [vmem:[%s197 + $0x204] sm:$0xf]
        %v331 = vld [vmem:[%s197 + $0x208] sm:$0xf]
        %v332 = vld [vmem:[%s197 + $0x20c] sm:$0xf]
        %v333 = vld [vmem:[%s197 + $0x210] sm:$0xf]
        %v334 = vld [vmem:[%s197 + $0x214] sm:$0xf]
        %v335 = vld [vmem:[%s197 + $0x218] sm:$0xf]
        %v336 = vld [vmem:[%s197 + $0x21c] sm:$0xf]
        %v337 = vld [vmem:[%s197 + $0x220] sm:$0xf]
        %v338 = vld [vmem:[%s197 + $0x224] sm:$0xf]
        %v339 = vld [vmem:[%s197 + $0x228] sm:$0xf]
        %v340 = vld [vmem:[%s197 + $0x22c] sm:$0xf]
        %v341 = vld [vmem:[%s197 + $0x230] sm:$0xf]
        %v342 = vld [vmem:[%s197 + $0x234] sm:$0xf]
        %v343 = vld [vmem:[%s197 + $0x238] sm:$0xf]
        %v344 = vld [vmem:[%s197 + $0x23c] sm:$0xf]
        %v345 = vld [vmem:[%s197 + $0x240] sm:$0xf]
        %v346 = vld [vmem:[%s197 + $0x244] sm:$0xf]
        %v347 = vld [vmem:[%s197 + $0x248] sm:$0xf]
        %v348 = vld [vmem:[%s197 + $0x24c] sm:$0xf]
        %v349 = vld [vmem:[%s197 + $0x250] sm:$0xf]
        %v350 = vld [vmem:[%s197 + $0x254] sm:$0xf]
        %v351 = vld [vmem:[%s197 + $0x258] sm:$0xf]
        %v352 = vld [vmem:[%s197 + $0x25c] sm:$0xf]
        %v353 = vld [vmem:[%s197 + $0x260] sm:$0xf]
        %v354 = vld [vmem:[%s197 + $0x264] sm:$0xf]
        %v355 = vld [vmem:[%s197 + $0x268] sm:$0xf]
        %v356 = vld [vmem:[%s197 + $0x26c] sm:$0xf]
        %v357 = vld [vmem:[%s197 + $0x270] sm:$0xf]
        %v358 = vld [vmem:[%s197 + $0x274] sm:$0xf]
        %v359 = vld [vmem:[%s197 + $0x278] sm:$0xf]
        %v360 = vld [vmem:[%s197 + $0x27c] sm:$0xf]
        %v361 = vld [vmem:[%s197 + $0x280] sm:$0xf]
        %v362 = vld [vmem:[%s197 + $0x284] sm:$0xf]
        %v363 = vld [vmem:[%s197 + $0x288] sm:$0xf]
        %v364 = vld [vmem:[%s197 + $0x28c] sm:$0xf]
        %v365 = vld [vmem:[%s197 + $0x290] sm:$0xf]
        %v366 = vld [vmem:[%s197 + $0x294] sm:$0xf]
        %v367 = vld [vmem:[%s197 + $0x298] sm:$0xf]
        %v368 = vld [vmem:[%s197 + $0x29c] sm:$0xf]
        %v369 = vld [vmem:[%s197 + $0x2a0] sm:$0xf]
        %v370 = vld [vmem:[%s197 + $0x2a4] sm:$0xf]
        %v371 = vld [vmem:[%s197 + $0x2a8] sm:$0xf]
        %v372 = vld [vmem:[%s197 + $0x2ac] sm:$0xf]
        %v373 = vld [vmem:[%s197 + $0x2b0] sm:$0xf]
        %v374 = vld [vmem:[%s197 + $0x2b4] sm:$0xf]
        %v375 = vld [vmem:[%s197 + $0x2b8] sm:$0xf]
        %v376 = vld [vmem:[%s197 + $0x2bc] sm:$0xf]
        %v377 = vld [vmem:[%s197 + $0x2c0] sm:$0xf]
        %v378 = vld [vmem:[%s197 + $0x2c4] sm:$0xf]
        %v379 = vld [vmem:[%s197 + $0x2c8] sm:$0xf]
        %v380 = vld [vmem:[%s197 + $0x2cc] sm:$0xf]
        %v381 = vld [vmem:[%s197 + $0x2d0] sm:$0xf]
        %v382 = vld [vmem:[%s197 + $0x2d4] sm:$0xf]
        %v383 = vld [vmem:[%s197 + $0x2d8] sm:$0xf]
        %v384 = vld [vmem:[%s197 + $0x2dc] sm:$0xf]
        %v385 = vld [vmem:[%s197 + $0x2e0] sm:$0xf]
        %v386 = vld [vmem:[%s197 + $0x2e4] sm:$0xf]
        %v387 = vld [vmem:[%s197 + $0x2e8] sm:$0xf]
        %v388 = vld [vmem:[%s197 + $0x2ec] sm:$0xf]
        %v389 = vld [vmem:[%s197 + $0x2f0] sm:$0xf]
        %v390 = vld [vmem:[%s197 + $0x2f4] sm:$0xf]
        %v391 = vld [vmem:[%s197 + $0x2f8] sm:$0xf]
        %v392 = vld [vmem:[%s197 + $0x2fc] sm:$0xf]
        %v393 = vld [vmem:[%s197 + $0x300] sm:$0xf]
        %v394 = vld [vmem:[%s197 + $0x304] sm:$0xf]
        %v395 = vld [vmem:[%s197 + $0x308] sm:$0xf]
        %v396 = vld [vmem:[%s197 + $0x30c] sm:$0xf]
        %v397 = vld [vmem:[%s197 + $0x310] sm:$0xf]
        %v398 = vld [vmem:[%s197 + $0x314] sm:$0xf]
        %v399 = vld [vmem:[%s197 + $0x318] sm:$0xf]
        %v400 = vld [vmem:[%s197 + $0x31c] sm:$0xf]
        %v401 = vld [vmem:[%s197 + $0x320] sm:$0xf]
        %v402 = vld [vmem:[%s197 + $0x324] sm:$0xf]
        %v403 = vld [vmem:[%s197 + $0x328] sm:$0xf]
        %v404 = vld [vmem:[%s197 + $0x32c] sm:$0xf]
        %v405 = vld [vmem:[%s197 + $0x330] sm:$0xf]
        %v406 = vld [vmem:[%s197 + $0x334] sm:$0xf]
        %v407 = vld [vmem:[%s197 + $0x338] sm:$0xf]
        %v408 = vld [vmem:[%s197 + $0x33c] sm:$0xf]
        %v409 = vld [vmem:[%s197 + $0x340] sm:$0xf]
        %v410 = vld [vmem:[%s197 + $0x344] sm:$0xf]
        %v411 = vld [vmem:[%s197 + $0x348] sm:$0xf]
        %v412 = vld [vmem:[%s197 + $0x34c] sm:$0xf]
        %v413 = vld [vmem:[%s197 + $0x350] sm:$0xf]
        %v414 = vld [vmem:[%s197 + $0x354] sm:$0xf]
        %v415 = vld [vmem:[%s197 + $0x358] sm:$0xf]
        %v416 = vld [vmem:[%s197 + $0x35c] sm:$0xf]
        %v417 = vld [vmem:[%s197 + $0x360] sm:$0xf]
        %v418 = vld [vmem:[%s197 + $0x364] sm:$0xf]
        %v419 = vld [vmem:[%s197 + $0x368] sm:$0xf]
        %v420 = vld [vmem:[%s197 + $0x36c] sm:$0xf]
        %v421 = vld [vmem:[%s197 + $0x370] sm:$0xf]
        %v422 = vld [vmem:[%s197 + $0x374] sm:$0xf]
        %v423 = vld [vmem:[%s197 + $0x378] sm:$0xf]
        %v424 = vld [vmem:[%s197 + $0x37c] sm:$0xf]
        %v425 = vld [vmem:[%s197 + $0x380] sm:$0xf]
        %v426 = vld [vmem:[%s197 + $0x384] sm:$0xf]
        %v427 = vld [vmem:[%s197 + $0x388] sm:$0xf]
        %v428 = vld [vmem:[%s197 + $0x38c] sm:$0xf]
        %v429 = vld [vmem:[%s197 + $0x390] sm:$0xf]
        %v430 = vld [vmem:[%s197 + $0x394] sm:$0xf]
        %v431 = vld [vmem:[%s197 + $0x398] sm:$0xf]
        %v432 = vld [vmem:[%s197 + $0x39c] sm:$0xf]
        %v433 = vld [vmem:[%s197 + $0x3a0] sm:$0xf]
        %v434 = vld [vmem:[%s197 + $0x3a4] sm:$0xf]
        %v435 = vld [vmem:[%s197 + $0x3a8] sm:$0xf]
        %v436 = vld [vmem:[%s197 + $0x3ac] sm:$0xf]
        %v437 = vld [vmem:[%s197 + $0x3b0] sm:$0xf]
        %v438 = vld [vmem:[%s197 + $0x3b4] sm:$0xf]
        %v439 = vld [vmem:[%s197 + $0x3b8] sm:$0xf]
        %v440 = vld [vmem:[%s197 + $0x3bc] sm:$0xf]
        %v441 = vld [vmem:[%s197 + $0x3c0] sm:$0xf]
        %v442 = vld [vmem:[%s197 + $0x3c4] sm:$0xf]
        %v443 = vld [vmem:[%s197 + $0x3c8] sm:$0xf]
        %v444 = vld [vmem:[%s197 + $0x3cc] sm:$0xf]
        %v445 = vld [vmem:[%s197 + $0x3d0] sm:$0xf]
        %v446 = vld [vmem:[%s197 + $0x3d4] sm:$0xf]
        %v447 = vld [vmem:[%s197 + $0x3d8] sm:$0xf]
        %v448 = vld [vmem:[%s197 + $0x3dc] sm:$0xf]
        %v449 = vld [vmem:[%s197 + $0x3e0] sm:$0xf]
        %v450 = vld [vmem:[%s197 + $0x3e4] sm:$0xf]
        %v451 = vld [vmem:[%s197 + $0x3e8] sm:$0xf]
        %v452 = vld [vmem:[%s197 + $0x3ec] sm:$0xf]
        %v453 = vld [vmem:[%s197 + $0x3f0] sm:$0xf]
        %v454 = vld [vmem:[%s197 + $0x3f4] sm:$0xf]
        %v455 = vld [vmem:[%s197 + $0x3f8] sm:$0xf]
        %v456 = vld [vmem:[%s197 + $0x3fc] sm:$0xf]
        %v457 = vld [vmem:[%s1] sm:$0xf]
        %v714 = vunpack.c.l.b16 %v201
        %v715 = vunpack.c.l.b16 %v202
        %v716 = vunpack.c.l.b16 %v203
        %v717 = vunpack.c.l.b16 %v204
        %v718 = vunpack.c.l.b16 %v205
        %v719 = vunpack.c.l.b16 %v206
        %v720 = vunpack.c.l.b16 %v207
        %v721 = vunpack.c.l.b16 %v208
        %v722 = vunpack.c.l.b16 %v209
        %v723 = vunpack.c.l.b16 %v210
        %v724 = vunpack.c.l.b16 %v211
        %v725 = vunpack.c.l.b16 %v212
        %v726 = vunpack.c.l.b16 %v213
        %v727 = vunpack.c.l.b16 %v214
        %v728 = vunpack.c.l.b16 %v215
        %v729 = vunpack.c.l.b16 %v216
        %v730 = vunpack.c.l.b16 %v217
        %v731 = vunpack.c.l.b16 %v218
        %v732 = vunpack.c.l.b16 %v219
        %v733 = vunpack.c.l.b16 %v220
        %v734 = vunpack.c.l.b16 %v221
        %v735 = vunpack.c.l.b16 %v222
        %v736 = vunpack.c.l.b16 %v223
        %v737 = vunpack.c.l.b16 %v224
        %v738 = vunpack.c.l.b16 %v225
        %v739 = vunpack.c.l.b16 %v226
        %v740 = vunpack.c.l.b16 %v227
        %v741 = vunpack.c.l.b16 %v228
        %v742 = vunpack.c.l.b16 %v229
        %v743 = vunpack.c.l.b16 %v230
        %v744 = vunpack.c.l.b16 %v231
        %v745 = vunpack.c.l.b16 %v232
        %v746 = vunpack.c.l.b16 %v233
        %v747 = vunpack.c.l.b16 %v234
        %v748 = vunpack.c.l.b16 %v235
        %v749 = vunpack.c.l.b16 %v236
        %v750 = vunpack.c.l.b16 %v237
        %v751 = vunpack.c.l.b16 %v238
        %v752 = vunpack.c.l.b16 %v239
        %v753 = vunpack.c.l.b16 %v240
        %v754 = vunpack.c.l.b16 %v241
        %v755 = vunpack.c.l.b16 %v242
        %v756 = vunpack.c.l.b16 %v243
        %v757 = vunpack.c.l.b16 %v244
        %v758 = vunpack.c.l.b16 %v245
        %v759 = vunpack.c.l.b16 %v246
        %v760 = vunpack.c.l.b16 %v247
        %v761 = vunpack.c.l.b16 %v248
        %v762 = vunpack.c.l.b16 %v249
        %v763 = vunpack.c.l.b16 %v250
        %v764 = vunpack.c.l.b16 %v251
        %v765 = vunpack.c.l.b16 %v252
        %v766 = vunpack.c.l.b16 %v253
        %v767 = vunpack.c.l.b16 %v254
        %v768 = vunpack.c.l.b16 %v255
        %v769 = vunpack.c.l.b16 %v256
        %v770 = vunpack.c.l.b16 %v257
        %v771 = vunpack.c.l.b16 %v258
        %v772 = vunpack.c.l.b16 %v259
        %v773 = vunpack.c.l.b16 %v260
        %v774 = vunpack.c.l.b16 %v261
        %v775 = vunpack.c.l.b16 %v262
        %v776 = vunpack.c.l.b16 %v263
        %v777 = vunpack.c.l.b16 %v264
        %v778 = vunpack.c.l.b16 %v265
        %v779 = vunpack.c.l.b16 %v266
        %v780 = vunpack.c.l.b16 %v267
        %v781 = vunpack.c.l.b16 %v268
        %v782 = vunpack.c.l.b16 %v269
        %v783 = vunpack.c.l.b16 %v270
        %v784 = vunpack.c.l.b16 %v271
        %v785 = vunpack.c.l.b16 %v272
        %v786 = vunpack.c.l.b16 %v273
        %v787 = vunpack.c.l.b16 %v274
        %v788 = vunpack.c.l.b16 %v275
        %v789 = vunpack.c.l.b16 %v276
        %v790 = vunpack.c.l.b16 %v277
        %v791 = vunpack.c.l.b16 %v278
        %v792 = vunpack.c.l.b16 %v279
        %v793 = vunpack.c.l.b16 %v280
        %v794 = vunpack.c.l.b16 %v281
        %v795 = vunpack.c.l.b16 %v282
        %v796 = vunpack.c.l.b16 %v283
        %v797 = vunpack.c.l.b16 %v284
        %v798 = vunpack.c.l.b16 %v285
        %v799 = vunpack.c.l.b16 %v286
        %v800 = vunpack.c.l.b16 %v287
        %v801 = vunpack.c.l.b16 %v288
        %v802 = vunpack.c.l.b16 %v289
        %v803 = vunpack.c.l.b16 %v290
        %v804 = vunpack.c.l.b16 %v291
        %v805 = vunpack.c.l.b16 %v292
        %v806 = vunpack.c.l.b16 %v293
        %v807 = vunpack.c.l.b16 %v294
        %v808 = vunpack.c.l.b16 %v295
        %v809 = vunpack.c.l.b16 %v296
        %v810 = vunpack.c.l.b16 %v297
        %v811 = vunpack.c.l.b16 %v298
        %v812 = vunpack.c.l.b16 %v299
        %v813 = vunpack.c.l.b16 %v300
        %v814 = vunpack.c.l.b16 %v301
        %v815 = vunpack.c.l.b16 %v302
        %v816 = vunpack.c.l.b16 %v303
        %v817 = vunpack.c.l.b16 %v304
        %v818 = vunpack.c.l.b16 %v305
        %v819 = vunpack.c.l.b16 %v306
        %v820 = vunpack.c.l.b16 %v307
        %v821 = vunpack.c.l.b16 %v308
        %v822 = vunpack.c.l.b16 %v309
        %v823 = vunpack.c.l.b16 %v310
        %v824 = vunpack.c.l.b16 %v311
        %v825 = vunpack.c.l.b16 %v312
        %v826 = vunpack.c.l.b16 %v313
        %v827 = vunpack.c.l.b16 %v314
        %v828 = vunpack.c.l.b16 %v315
        %v829 = vunpack.c.l.b16 %v316
        %v830 = vunpack.c.l.b16 %v317
        %v831 = vunpack.c.l.b16 %v318
        %v832 = vunpack.c.l.b16 %v319
        %v833 = vunpack.c.l.b16 %v320
        %v834 = vunpack.c.l.b16 %v321
        %v835 = vunpack.c.l.b16 %v322
        %v836 = vunpack.c.l.b16 %v323
        %v837 = vunpack.c.l.b16 %v324
        %v838 = vunpack.c.l.b16 %v325
        %v839 = vunpack.c.l.b16 %v326
        %v840 = vunpack.c.l.b16 %v327
        %v841 = vunpack.c.l.b16 %v328
        %v842 = vunpack.c.l.b16 %v329
        %v843 = vunpack.c.l.b16 %v330
        %v844 = vunpack.c.l.b16 %v331
        %v845 = vunpack.c.l.b16 %v332
        %v846 = vunpack.c.l.b16 %v333
        %v847 = vunpack.c.l.b16 %v334
        %v848 = vunpack.c.l.b16 %v335
        %v849 = vunpack.c.l.b16 %v336
        %v850 = vunpack.c.l.b16 %v337
        %v851 = vunpack.c.l.b16 %v338
        %v852 = vunpack.c.l.b16 %v339
        %v853 = vunpack.c.l.b16 %v340
        %v854 = vunpack.c.l.b16 %v341
        %v855 = vunpack.c.l.b16 %v342
        %v856 = vunpack.c.l.b16 %v343
        %v857 = vunpack.c.l.b16 %v344
        %v858 = vunpack.c.l.b16 %v345
        %v859 = vunpack.c.l.b16 %v346
        %v860 = vunpack.c.l.b16 %v347
        %v861 = vunpack.c.l.b16 %v348
        %v862 = vunpack.c.l.b16 %v349
        %v863 = vunpack.c.l.b16 %v350
        %v864 = vunpack.c.l.b16 %v351
        %v865 = vunpack.c.l.b16 %v352
        %v866 = vunpack.c.l.b16 %v353
        %v867 = vunpack.c.l.b16 %v354
        %v868 = vunpack.c.l.b16 %v355
        %v869 = vunpack.c.l.b16 %v356
        %v870 = vunpack.c.l.b16 %v357
        %v871 = vunpack.c.l.b16 %v358
        %v872 = vunpack.c.l.b16 %v359
        %v873 = vunpack.c.l.b16 %v360
        %v874 = vunpack.c.l.b16 %v361
        %v875 = vunpack.c.l.b16 %v362
        %v876 = vunpack.c.l.b16 %v363
        %v877 = vunpack.c.l.b16 %v364
        %v878 = vunpack.c.l.b16 %v365
        %v879 = vunpack.c.l.b16 %v366
        %v880 = vunpack.c.l.b16 %v367
        %v881 = vunpack.c.l.b16 %v368
        %v882 = vunpack.c.l.b16 %v369
        %v883 = vunpack.c.l.b16 %v370
        %v884 = vunpack.c.l.b16 %v371
        %v885 = vunpack.c.l.b16 %v372
        %v886 = vunpack.c.l.b16 %v373
        %v887 = vunpack.c.l.b16 %v374
        %v888 = vunpack.c.l.b16 %v375
        %v889 = vunpack.c.l.b16 %v376
        %v890 = vunpack.c.l.b16 %v377
        %v891 = vunpack.c.l.b16 %v378
        %v892 = vunpack.c.l.b16 %v379
        %v893 = vunpack.c.l.b16 %v380
        %v894 = vunpack.c.l.b16 %v381
        %v895 = vunpack.c.l.b16 %v382
        %v896 = vunpack.c.l.b16 %v383
        %v897 = vunpack.c.l.b16 %v384
        %v898 = vunpack.c.l.b16 %v385
        %v899 = vunpack.c.l.b16 %v386
        %v900 = vunpack.c.l.b16 %v387
        %v901 = vunpack.c.l.b16 %v388
        %v902 = vunpack.c.l.b16 %v389
        %v903 = vunpack.c.l.b16 %v390
        %v904 = vunpack.c.l.b16 %v391
        %v905 = vunpack.c.l.b16 %v392
        %v906 = vunpack.c.l.b16 %v393
        %v907 = vunpack.c.l.b16 %v394
        %v908 = vunpack.c.l.b16 %v395
        %v909 = vunpack.c.l.b16 %v396
        %v910 = vunpack.c.l.b16 %v397
        %v911 = vunpack.c.l.b16 %v398
        %v912 = vunpack.c.l.b16 %v399
        %v913 = vunpack.c.l.b16 %v400
        %v914 = vunpack.c.l.b16 %v401
        %v915 = vunpack.c.l.b16 %v402
        %v916 = vunpack.c.l.b16 %v403
        %v917 = vunpack.c.l.b16 %v404
        %v918 = vunpack.c.l.b16 %v405
        %v919 = vunpack.c.l.b16 %v406
        %v920 = vunpack.c.l.b16 %v407
        %v921 = vunpack.c.l.b16 %v408
        %v922 = vunpack.c.l.b16 %v409
        %v923 = vunpack.c.l.b16 %v410
        %v924 = vunpack.c.l.b16 %v411
        %v925 = vunpack.c.l.b16 %v412
        %v926 = vunpack.c.l.b16 %v413
        %v927 = vunpack.c.l.b16 %v414
        %v928 = vunpack.c.l.b16 %v415
        %v929 = vunpack.c.l.b16 %v416
        %v930 = vunpack.c.l.b16 %v417
        %v931 = vunpack.c.l.b16 %v418
        %v932 = vunpack.c.l.b16 %v419
        %v933 = vunpack.c.l.b16 %v420
        %v934 = vunpack.c.l.b16 %v421
        %v935 = vunpack.c.l.b16 %v422
        %v936 = vunpack.c.l.b16 %v423
        %v937 = vunpack.c.l.b16 %v424
        %v938 = vunpack.c.l.b16 %v425
        %v939 = vunpack.c.l.b16 %v426
        %v940 = vunpack.c.l.b16 %v427
        %v941 = vunpack.c.l.b16 %v428
        %v942 = vunpack.c.l.b16 %v429
        %v943 = vunpack.c.l.b16 %v430
        %v944 = vunpack.c.l.b16 %v431
        %v945 = vunpack.c.l.b16 %v432
        %v946 = vunpack.c.l.b16 %v433
        %v947 = vunpack.c.l.b16 %v434
        %v948 = vunpack.c.l.b16 %v435
        %v949 = vunpack.c.l.b16 %v436
        %v950 = vunpack.c.l.b16 %v437
        %v951 = vunpack.c.l.b16 %v438
        %v952 = vunpack.c.l.b16 %v439
        %v953 = vunpack.c.l.b16 %v440
        %v954 = vunpack.c.l.b16 %v441
        %v955 = vunpack.c.l.b16 %v442
        %v956 = vunpack.c.l.b16 %v443
        %v957 = vunpack.c.l.b16 %v444
        %v958 = vunpack.c.l.b16 %v445
        %v959 = vunpack.c.l.b16 %v446
        %v960 = vunpack.c.l.b16 %v447
        %v961 = vunpack.c.l.b16 %v448
        %v962 = vunpack.c.l.b16 %v449
        %v963 = vunpack.c.l.b16 %v450
        %v964 = vunpack.c.l.b16 %v451
        %v965 = vunpack.c.l.b16 %v452
        %v966 = vunpack.c.l.b16 %v453
        %v967 = vunpack.c.l.b16 %v454
        %v968 = vunpack.c.l.b16 %v455
        %v969 = vunpack.c.l.b16 %v456
        %v970 = vpack.c.b16 %v715, %v714
        %v971 = vpack.c.b16 %v717, %v716
        %v972 = vpack.c.b16 %v719, %v718
        %v973 = vpack.c.b16 %v721, %v720
        %v974 = vpack.c.b16 %v723, %v722
        %v975 = vpack.c.b16 %v725, %v724
        %v976 = vpack.c.b16 %v727, %v726
        %v977 = vpack.c.b16 %v729, %v728
        %v978 = vpack.c.b16 %v731, %v730
        %v979 = vpack.c.b16 %v733, %v732
        %v980 = vpack.c.b16 %v735, %v734
        %v981 = vpack.c.b16 %v737, %v736
        %v982 = vpack.c.b16 %v739, %v738
        %v983 = vpack.c.b16 %v741, %v740
        %v984 = vpack.c.b16 %v743, %v742
        %v985 = vpack.c.b16 %v745, %v744
        %v986 = vpack.c.b16 %v747, %v746
        %v987 = vpack.c.b16 %v749, %v748
        %v988 = vpack.c.b16 %v751, %v750
        %v989 = vpack.c.b16 %v753, %v752
        %v990 = vpack.c.b16 %v755, %v754
        %v991 = vpack.c.b16 %v757, %v756
        %v992 = vpack.c.b16 %v759, %v758
        %v993 = vpack.c.b16 %v761, %v760
        %v994 = vpack.c.b16 %v763, %v762
        %v995 = vpack.c.b16 %v765, %v764
        %v996 = vpack.c.b16 %v767, %v766
        %v997 = vpack.c.b16 %v769, %v768
        %v998 = vpack.c.b16 %v771, %v770
        %v999 = vpack.c.b16 %v773, %v772
        %v1000 = vpack.c.b16 %v775, %v774
        %v1001 = vpack.c.b16 %v777, %v776
        %v1002 = vpack.c.b16 %v779, %v778
        %v1003 = vpack.c.b16 %v781, %v780
        %v1004 = vpack.c.b16 %v783, %v782
        %v1005 = vpack.c.b16 %v785, %v784
        %v1006 = vpack.c.b16 %v787, %v786
        %v1007 = vpack.c.b16 %v789, %v788
        %v1008 = vpack.c.b16 %v791, %v790
        %v1009 = vpack.c.b16 %v793, %v792
        %v1010 = vpack.c.b16 %v795, %v794
        %v1011 = vpack.c.b16 %v797, %v796
        %v1012 = vpack.c.b16 %v799, %v798
        %v1013 = vpack.c.b16 %v801, %v800
        %v1014 = vpack.c.b16 %v803, %v802
        %v1015 = vpack.c.b16 %v805, %v804
        %v1016 = vpack.c.b16 %v807, %v806
        %v1017 = vpack.c.b16 %v809, %v808
        %v1018 = vpack.c.b16 %v811, %v810
        %v1019 = vpack.c.b16 %v813, %v812
        %v1020 = vpack.c.b16 %v815, %v814
        %v1021 = vpack.c.b16 %v817, %v816
        %v1022 = vpack.c.b16 %v819, %v818
        %v1023 = vpack.c.b16 %v821, %v820
        %v1024 = vpack.c.b16 %v823, %v822
        %v1025 = vpack.c.b16 %v825, %v824
        %v1026 = vpack.c.b16 %v827, %v826
        %v1027 = vpack.c.b16 %v829, %v828
        %v1028 = vpack.c.b16 %v831, %v830
        %v1029 = vpack.c.b16 %v833, %v832
        %v1030 = vpack.c.b16 %v835, %v834
        %v1031 = vpack.c.b16 %v837, %v836
        %v1032 = vpack.c.b16 %v839, %v838
        %v1033 = vpack.c.b16 %v841, %v840
        %v1034 = vpack.c.b16 %v843, %v842
        %v1035 = vpack.c.b16 %v845, %v844
        %v1036 = vpack.c.b16 %v847, %v846
        %v1037 = vpack.c.b16 %v849, %v848
        %v1038 = vpack.c.b16 %v851, %v850
        %v1039 = vpack.c.b16 %v853, %v852
        %v1040 = vpack.c.b16 %v855, %v854
        %v1041 = vpack.c.b16 %v857, %v856
        %v1042 = vpack.c.b16 %v859, %v858
        %v1043 = vpack.c.b16 %v861, %v860
        %v1044 = vpack.c.b16 %v863, %v862
        %v1045 = vpack.c.b16 %v865, %v864
        %v1046 = vpack.c.b16 %v867, %v866
        %v1047 = vpack.c.b16 %v869, %v868
        %v1048 = vpack.c.b16 %v871, %v870
        %v1049 = vpack.c.b16 %v873, %v872
        %v1050 = vpack.c.b16 %v875, %v874
        %v1051 = vpack.c.b16 %v877, %v876
        %v1052 = vpack.c.b16 %v879, %v878
        %v1053 = vpack.c.b16 %v881, %v880
        %v1054 = vpack.c.b16 %v883, %v882
        %v1055 = vpack.c.b16 %v885, %v884
        %v1056 = vpack.c.b16 %v887, %v886
        %v1057 = vpack.c.b16 %v889, %v888
        %v1058 = vpack.c.b16 %v891, %v890
        %v1059 = vpack.c.b16 %v893, %v892
        %v1060 = vpack.c.b16 %v895, %v894
        %v1061 = vpack.c.b16 %v897, %v896
        %v1062 = vpack.c.b16 %v899, %v898
        %v1063 = vpack.c.b16 %v901, %v900
        %v1064 = vpack.c.b16 %v903, %v902
        %v1065 = vpack.c.b16 %v905, %v904
        %v1066 = vpack.c.b16 %v907, %v906
        %v1067 = vpack.c.b16 %v909, %v908
        %v1068 = vpack.c.b16 %v911, %v910
        %v1069 = vpack.c.b16 %v913, %v912
        %v1070 = vpack.c.b16 %v915, %v914
        %v1071 = vpack.c.b16 %v917, %v916
        %v1072 = vpack.c.b16 %v919, %v918
        %v1073 = vpack.c.b16 %v921, %v920
        %v1074 = vpack.c.b16 %v923, %v922
        %v1075 = vpack.c.b16 %v925, %v924
        %v1076 = vpack.c.b16 %v927, %v926
        %v1077 = vpack.c.b16 %v929, %v928
        %v1078 = vpack.c.b16 %v931, %v930
        %v1079 = vpack.c.b16 %v933, %v932
        %v1080 = vpack.c.b16 %v935, %v934
        %v1081 = vpack.c.b16 %v937, %v936
        %v1082 = vpack.c.b16 %v939, %v938
        %v1083 = vpack.c.b16 %v941, %v940
        %v1084 = vpack.c.b16 %v943, %v942
        %v1085 = vpack.c.b16 %v945, %v944
        %v1086 = vpack.c.b16 %v947, %v946
        %v1087 = vpack.c.b16 %v949, %v948
        %v1088 = vpack.c.b16 %v951, %v950
        %v1089 = vpack.c.b16 %v953, %v952
        %v1090 = vpack.c.b16 %v955, %v954
        %v1091 = vpack.c.b16 %v957, %v956
        %v1092 = vpack.c.b16 %v959, %v958
        %v1093 = vpack.c.b16 %v961, %v960
        %v1094 = vpack.c.b16 %v963, %v962
        %v1095 = vpack.c.b16 %v965, %v964
        %v1096 = vpack.c.b16 %v967, %v966
        %v1097 = vpack.c.b16 %v969, %v968
        %vm1098 = vcmask 64512
        %v1100 = vsel %vm1098, %v970, 0
        %v1103 = vsel %vm1098, %v971, 0
        %v1106 = vsel %vm1098, %v972, 0
        %v1109 = vsel %vm1098, %v973, 0
        %v1112 = vsel %vm1098, %v974, 0
        %v1115 = vsel %vm1098, %v975, 0
        %v1118 = vsel %vm1098, %v976, 0
        %v1121 = vsel %vm1098, %v977, 0
        %v1124 = vsel %vm1098, %v978, 0
        %v1127 = vsel %vm1098, %v979, 0
        %v1130 = vsel %vm1098, %v980, 0
        %v1133 = vsel %vm1098, %v981, 0
        %v1136 = vsel %vm1098, %v982, 0
        %v1139 = vsel %vm1098, %v983, 0
        %v1142 = vsel %vm1098, %v984, 0
        %v1145 = vsel %vm1098, %v985, 0
        %v1148 = vsel %vm1098, %v986, 0
        %v1151 = vsel %vm1098, %v987, 0
        %v1154 = vsel %vm1098, %v988, 0
        %v1157 = vsel %vm1098, %v989, 0
        %v1160 = vsel %vm1098, %v990, 0
        %v1163 = vsel %vm1098, %v991, 0
        %v1166 = vsel %vm1098, %v992, 0
        %v1169 = vsel %vm1098, %v993, 0
        %v1172 = vsel %vm1098, %v994, 0
        %v1175 = vsel %vm1098, %v995, 0
        %v1178 = vsel %vm1098, %v996, 0
        %v1181 = vsel %vm1098, %v997, 0
        %v1184 = vsel %vm1098, %v998, 0
        %v1187 = vsel %vm1098, %v999, 0
        %v1190 = vsel %vm1098, %v1000, 0
        %v1193 = vsel %vm1098, %v1001, 0
        %v1196 = vsel %vm1098, %v1002, 0
        %v1199 = vsel %vm1098, %v1003, 0
        %v1202 = vsel %vm1098, %v1004, 0
        %v1205 = vsel %vm1098, %v1005, 0
        %v1208 = vsel %vm1098, %v1006, 0
        %v1211 = vsel %vm1098, %v1007, 0
        %v1214 = vsel %vm1098, %v1008, 0
        %v1217 = vsel %vm1098, %v1009, 0
        %v1220 = vsel %vm1098, %v1010, 0
        %v1223 = vsel %vm1098, %v1011, 0
        %v1226 = vsel %vm1098, %v1012, 0
        %v1229 = vsel %vm1098, %v1013, 0
        %v1232 = vsel %vm1098, %v1014, 0
        %v1235 = vsel %vm1098, %v1015, 0
        %v1238 = vsel %vm1098, %v1016, 0
        %v1241 = vsel %vm1098, %v1017, 0
        %v1244 = vsel %vm1098, %v1018, 0
        %v1247 = vsel %vm1098, %v1019, 0
        %v1250 = vsel %vm1098, %v1020, 0
        %v1253 = vsel %vm1098, %v1021, 0
        %v1256 = vsel %vm1098, %v1022, 0
        %v1259 = vsel %vm1098, %v1023, 0
        %v1262 = vsel %vm1098, %v1024, 0
        %v1265 = vsel %vm1098, %v1025, 0
        %v1268 = vsel %vm1098, %v1026, 0
        %v1271 = vsel %vm1098, %v1027, 0
        %v1274 = vsel %vm1098, %v1028, 0
        %v1277 = vsel %vm1098, %v1029, 0
        %v1280 = vsel %vm1098, %v1030, 0
        %v1283 = vsel %vm1098, %v1031, 0
        %v1286 = vsel %vm1098, %v1032, 0
        %v1289 = vsel %vm1098, %v1033, 0
        %v1292 = vsel %vm1098, %v1034, 0
        %v1295 = vsel %vm1098, %v1035, 0
        %v1298 = vsel %vm1098, %v1036, 0
        %v1301 = vsel %vm1098, %v1037, 0
        %v1304 = vsel %vm1098, %v1038, 0
        %v1307 = vsel %vm1098, %v1039, 0
        %v1310 = vsel %vm1098, %v1040, 0
        %v1313 = vsel %vm1098, %v1041, 0
        %v1316 = vsel %vm1098, %v1042, 0
        %v1319 = vsel %vm1098, %v1043, 0
        %v1322 = vsel %vm1098, %v1044, 0
        %v1325 = vsel %vm1098, %v1045, 0
        %v1328 = vsel %vm1098, %v1046, 0
        %v1331 = vsel %vm1098, %v1047, 0
        %v1334 = vsel %vm1098, %v1048, 0
        %v1337 = vsel %vm1098, %v1049, 0
        %v1340 = vsel %vm1098, %v1050, 0
        %v1343 = vsel %vm1098, %v1051, 0
        %v1346 = vsel %vm1098, %v1052, 0
        %v1349 = vsel %vm1098, %v1053, 0
        %v1352 = vsel %vm1098, %v1054, 0
        %v1355 = vsel %vm1098, %v1055, 0
        %v1358 = vsel %vm1098, %v1056, 0
        %v1361 = vsel %vm1098, %v1057, 0
        %v1364 = vsel %vm1098, %v1058, 0
        %v1367 = vsel %vm1098, %v1059, 0
        %v1370 = vsel %vm1098, %v1060, 0
        %v1373 = vsel %vm1098, %v1061, 0
        %v1376 = vsel %vm1098, %v1062, 0
        %v1379 = vsel %vm1098, %v1063, 0
        %v1382 = vsel %vm1098, %v1064, 0
        %v1385 = vsel %vm1098, %v1065, 0
        %v1388 = vsel %vm1098, %v1066, 0
        %v1391 = vsel %vm1098, %v1067, 0
        %v1394 = vsel %vm1098, %v1068, 0
        %v1397 = vsel %vm1098, %v1069, 0
        %v1400 = vsel %vm1098, %v1070, 0
        %v1403 = vsel %vm1098, %v1071, 0
        %v1406 = vsel %vm1098, %v1072, 0
        %v1409 = vsel %vm1098, %v1073, 0
        %v1412 = vsel %vm1098, %v1074, 0
        %v1415 = vsel %vm1098, %v1075, 0
        %v1418 = vsel %vm1098, %v1076, 0
        %v1421 = vsel %vm1098, %v1077, 0
        %v1424 = vsel %vm1098, %v1078, 0
        %v1427 = vsel %vm1098, %v1079, 0
        %v1430 = vsel %vm1098, %v1080, 0
        %v1433 = vsel %vm1098, %v1081, 0
        %v1436 = vsel %vm1098, %v1082, 0
        %v1439 = vsel %vm1098, %v1083, 0
        %v1442 = vsel %vm1098, %v1084, 0
        %v1445 = vsel %vm1098, %v1085, 0
        %v1448 = vsel %vm1098, %v1086, 0
        %v1451 = vsel %vm1098, %v1087, 0
        %v1454 = vsel %vm1098, %v1088, 0
        %v1457 = vsel %vm1098, %v1089, 0
        %v1460 = vsel %vm1098, %v1090, 0
        %v1463 = vsel %vm1098, %v1091, 0
        %v1466 = vsel %vm1098, %v1092, 0
        %v1469 = vsel %vm1098, %v1093, 0
        %v1472 = vsel %vm1098, %v1094, 0
        %v1475 = vsel %vm1098, %v1095, 0
        %v1478 = vsel %vm1098, %v1096, 0
        %v1481 = vsel %vm1098, %v1097, 0
        %vm1483 = vcmask 1043456
        %v1485 = vsel %vm1483, %v457, 0
        %1487 = vmatpush.bf16.msra.mxu0 0
        %1488 = vmatpush.bf16.msra.mxu0 0
        %1489 = vmatpush.bf16.msra.mxu0 0
        %1490 = vmatpush.bf16.msra.mxu0 0
        %1491 = vmatpush.bf16.msra.mxu0 0
        %1492 = vmatpush.bf16.msra.mxu0 0
        %1493 = vmatpush.bf16.msra.mxu0 0
        %1494 = vmatpush.bf16.msra.mxu0 %v1485
        %1495 = vmatmul.bf16.gmra.mxu0 %v1100
        %v1496 = vpop.f32.mrf.mxu0
        %v1497 = vadd.f32 0.0, %v1496
        %v1498 = vpop.f32.mrf.mxu0
        %v1499 = vadd.f32 0.0, %v1498
        %1500 = vmatmul.bf16.gmra.mxu0 %v1103
        %v1501 = vpop.f32.mrf.mxu0
        %v1502 = vadd.f32 0.0, %v1501
        %v1503 = vpop.f32.mrf.mxu0
        %v1504 = vadd.f32 0.0, %v1503
        %1505 = vmatmul.bf16.gmra.mxu0 %v1106
        %v1506 = vpop.f32.mrf.mxu0
        %v1507 = vadd.f32 0.0, %v1506
        %v1508 = vpop.f32.mrf.mxu0
        %v1509 = vadd.f32 0.0, %v1508
        %1510 = vmatmul.bf16.gmra.mxu0 %v1109
        %v1511 = vpop.f32.mrf.mxu0
        %v1512 = vadd.f32 0.0, %v1511
        %v1513 = vpop.f32.mrf.mxu0
        %v1514 = vadd.f32 0.0, %v1513
        %1515 = vmatmul.bf16.gmra.mxu0 %v1112
        %v1516 = vpop.f32.mrf.mxu0
        %v1517 = vadd.f32 0.0, %v1516
        %v1518 = vpop.f32.mrf.mxu0
        %v1519 = vadd.f32 0.0, %v1518
        %1520 = vmatmul.bf16.gmra.mxu0 %v1115
        %v1521 = vpop.f32.mrf.mxu0
        %v1522 = vadd.f32 0.0, %v1521
        %v1523 = vpop.f32.mrf.mxu0
        %v1524 = vadd.f32 0.0, %v1523
        %1525 = vmatmul.bf16.gmra.mxu0 %v1118
        %v1526 = vpop.f32.mrf.mxu0
        %v1527 = vadd.f32 0.0, %v1526
        %v1528 = vpop.f32.mrf.mxu0
        %v1529 = vadd.f32 0.0, %v1528
        %1530 = vmatmul.bf16.gmra.mxu0 %v1121
        %v1531 = vpop.f32.mrf.mxu0
        %v1532 = vadd.f32 0.0, %v1531
        %v1533 = vpop.f32.mrf.mxu0
        %v1534 = vadd.f32 0.0, %v1533
        %1535 = vmatmul.bf16.gmra.mxu0 %v1124
        %v1536 = vpop.f32.mrf.mxu0
        %v1537 = vadd.f32 0.0, %v1536
        %v1538 = vpop.f32.mrf.mxu0
        %v1539 = vadd.f32 0.0, %v1538
        %1540 = vmatmul.bf16.gmra.mxu0 %v1127
        %v1541 = vpop.f32.mrf.mxu0
        %v1542 = vadd.f32 0.0, %v1541
        %v1543 = vpop.f32.mrf.mxu0
        %v1544 = vadd.f32 0.0, %v1543
        %1545 = vmatmul.bf16.gmra.mxu0 %v1130
        %v1546 = vpop.f32.mrf.mxu0
        %v1547 = vadd.f32 0.0, %v1546
        %v1548 = vpop.f32.mrf.mxu0
        %v1549 = vadd.f32 0.0, %v1548
        %1550 = vmatmul.bf16.gmra.mxu0 %v1133
        %v1551 = vpop.f32.mrf.mxu0
        %v1552 = vadd.f32 0.0, %v1551
        %v1553 = vpop.f32.mrf.mxu0
        %v1554 = vadd.f32 0.0, %v1553
        %1555 = vmatmul.bf16.gmra.mxu0 %v1136
        %v1556 = vpop.f32.mrf.mxu0
        %v1557 = vadd.f32 0.0, %v1556
        %v1558 = vpop.f32.mrf.mxu0
        %v1559 = vadd.f32 0.0, %v1558
        %1560 = vmatmul.bf16.gmra.mxu0 %v1139
        %v1561 = vpop.f32.mrf.mxu0
        %v1562 = vadd.f32 0.0, %v1561
        %v1563 = vpop.f32.mrf.mxu0
        %v1564 = vadd.f32 0.0, %v1563
        %1565 = vmatmul.bf16.gmra.mxu0 %v1142
        %v1566 = vpop.f32.mrf.mxu0
        %v1567 = vadd.f32 0.0, %v1566
        %v1568 = vpop.f32.mrf.mxu0
        %v1569 = vadd.f32 0.0, %v1568
        %1570 = vmatmul.bf16.gmra.mxu0 %v1145
        %v1571 = vpop.f32.mrf.mxu0
        %v1572 = vadd.f32 0.0, %v1571
        %v1573 = vpop.f32.mrf.mxu0
        %v1574 = vadd.f32 0.0, %v1573
        %1575 = vmatmul.bf16.gmra.mxu0 %v1148
        %v1576 = vpop.f32.mrf.mxu0
        %v1577 = vadd.f32 0.0, %v1576
        %v1578 = vpop.f32.mrf.mxu0
        %v1579 = vadd.f32 0.0, %v1578
        %1580 = vmatmul.bf16.gmra.mxu0 %v1151
        %v1581 = vpop.f32.mrf.mxu0
        %v1582 = vadd.f32 0.0, %v1581
        %v1583 = vpop.f32.mrf.mxu0
        %v1584 = vadd.f32 0.0, %v1583
        %1585 = vmatmul.bf16.gmra.mxu0 %v1154
        %v1586 = vpop.f32.mrf.mxu0
        %v1587 = vadd.f32 0.0, %v1586
        %v1588 = vpop.f32.mrf.mxu0
        %v1589 = vadd.f32 0.0, %v1588
        %1590 = vmatmul.bf16.gmra.mxu0 %v1157
        %v1591 = vpop.f32.mrf.mxu0
        %v1592 = vadd.f32 0.0, %v1591
        %v1593 = vpop.f32.mrf.mxu0
        %v1594 = vadd.f32 0.0, %v1593
        %1595 = vmatmul.bf16.gmra.mxu0 %v1160
        %v1596 = vpop.f32.mrf.mxu0
        %v1597 = vadd.f32 0.0, %v1596
        %v1598 = vpop.f32.mrf.mxu0
        %v1599 = vadd.f32 0.0, %v1598
        %1600 = vmatmul.bf16.gmra.mxu0 %v1163
        %v1601 = vpop.f32.mrf.mxu0
        %v1602 = vadd.f32 0.0, %v1601
        %v1603 = vpop.f32.mrf.mxu0
        %v1604 = vadd.f32 0.0, %v1603
        %1605 = vmatmul.bf16.gmra.mxu0 %v1166
        %v1606 = vpop.f32.mrf.mxu0
        %v1607 = vadd.f32 0.0, %v1606
        %v1608 = vpop.f32.mrf.mxu0
        %v1609 = vadd.f32 0.0, %v1608
        %1610 = vmatmul.bf16.gmra.mxu0 %v1169
        %v1611 = vpop.f32.mrf.mxu0
        %v1612 = vadd.f32 0.0, %v1611
        %v1613 = vpop.f32.mrf.mxu0
        %v1614 = vadd.f32 0.0, %v1613
        %1615 = vmatmul.bf16.gmra.mxu0 %v1172
        %v1616 = vpop.f32.mrf.mxu0
        %v1617 = vadd.f32 0.0, %v1616
        %v1618 = vpop.f32.mrf.mxu0
        %v1619 = vadd.f32 0.0, %v1618
        %1620 = vmatmul.bf16.gmra.mxu0 %v1175
        %v1621 = vpop.f32.mrf.mxu0
        %v1622 = vadd.f32 0.0, %v1621
        %v1623 = vpop.f32.mrf.mxu0
        %v1624 = vadd.f32 0.0, %v1623
        %1625 = vmatmul.bf16.gmra.mxu0 %v1178
        %v1626 = vpop.f32.mrf.mxu0
        %v1627 = vadd.f32 0.0, %v1626
        %v1628 = vpop.f32.mrf.mxu0
        %v1629 = vadd.f32 0.0, %v1628
        %1630 = vmatmul.bf16.gmra.mxu0 %v1181
        %v1631 = vpop.f32.mrf.mxu0
        %v1632 = vadd.f32 0.0, %v1631
        %v1633 = vpop.f32.mrf.mxu0
        %v1634 = vadd.f32 0.0, %v1633
        %1635 = vmatmul.bf16.gmra.mxu0 %v1184
        %v1636 = vpop.f32.mrf.mxu0
        %v1637 = vadd.f32 0.0, %v1636
        %v1638 = vpop.f32.mrf.mxu0
        %v1639 = vadd.f32 0.0, %v1638
        %1640 = vmatmul.bf16.gmra.mxu0 %v1187
        %v1641 = vpop.f32.mrf.mxu0
        %v1642 = vadd.f32 0.0, %v1641
        %v1643 = vpop.f32.mrf.mxu0
        %v1644 = vadd.f32 0.0, %v1643
        %1645 = vmatmul.bf16.gmra.mxu0 %v1190
        %v1646 = vpop.f32.mrf.mxu0
        %v1647 = vadd.f32 0.0, %v1646
        %v1648 = vpop.f32.mrf.mxu0
        %v1649 = vadd.f32 0.0, %v1648
        %1650 = vmatmul.bf16.gmra.mxu0 %v1193
        %v1651 = vpop.f32.mrf.mxu0
        %v1652 = vadd.f32 0.0, %v1651
        %v1653 = vpop.f32.mrf.mxu0
        %v1654 = vadd.f32 0.0, %v1653
        %1655 = vmatmul.bf16.gmra.mxu0 %v1196
        %v1656 = vpop.f32.mrf.mxu0
        %v1657 = vadd.f32 0.0, %v1656
        %v1658 = vpop.f32.mrf.mxu0
        %v1659 = vadd.f32 0.0, %v1658
        %1660 = vmatmul.bf16.gmra.mxu0 %v1199
        %v1661 = vpop.f32.mrf.mxu0
        %v1662 = vadd.f32 0.0, %v1661
        %v1663 = vpop.f32.mrf.mxu0
        %v1664 = vadd.f32 0.0, %v1663
        %1665 = vmatmul.bf16.gmra.mxu0 %v1202
        %v1666 = vpop.f32.mrf.mxu0
        %v1667 = vadd.f32 0.0, %v1666
        %v1668 = vpop.f32.mrf.mxu0
        %v1669 = vadd.f32 0.0, %v1668
        %1670 = vmatmul.bf16.gmra.mxu0 %v1205
        %v1671 = vpop.f32.mrf.mxu0
        %v1672 = vadd.f32 0.0, %v1671
        %v1673 = vpop.f32.mrf.mxu0
        %v1674 = vadd.f32 0.0, %v1673
        %1675 = vmatmul.bf16.gmra.mxu0 %v1208
        %v1676 = vpop.f32.mrf.mxu0
        %v1677 = vadd.f32 0.0, %v1676
        %v1678 = vpop.f32.mrf.mxu0
        %v1679 = vadd.f32 0.0, %v1678
        %1680 = vmatmul.bf16.gmra.mxu0 %v1211
        %v1681 = vpop.f32.mrf.mxu0
        %v1682 = vadd.f32 0.0, %v1681
        %v1683 = vpop.f32.mrf.mxu0
        %v1684 = vadd.f32 0.0, %v1683
        %1685 = vmatmul.bf16.gmra.mxu0 %v1214
        %v1686 = vpop.f32.mrf.mxu0
        %v1687 = vadd.f32 0.0, %v1686
        %v1688 = vpop.f32.mrf.mxu0
        %v1689 = vadd.f32 0.0, %v1688
        %1690 = vmatmul.bf16.gmra.mxu0 %v1217
        %v1691 = vpop.f32.mrf.mxu0
        %v1692 = vadd.f32 0.0, %v1691
        %v1693 = vpop.f32.mrf.mxu0
        %v1694 = vadd.f32 0.0, %v1693
        %1695 = vmatmul.bf16.gmra.mxu0 %v1220
        %v1696 = vpop.f32.mrf.mxu0
        %v1697 = vadd.f32 0.0, %v1696
        %v1698 = vpop.f32.mrf.mxu0
        %v1699 = vadd.f32 0.0, %v1698
        %1700 = vmatmul.bf16.gmra.mxu0 %v1223
        %v1701 = vpop.f32.mrf.mxu0
        %v1702 = vadd.f32 0.0, %v1701
        %v1703 = vpop.f32.mrf.mxu0
        %v1704 = vadd.f32 0.0, %v1703
        %1705 = vmatmul.bf16.gmra.mxu0 %v1226
        %v1706 = vpop.f32.mrf.mxu0
        %v1707 = vadd.f32 0.0, %v1706
        %v1708 = vpop.f32.mrf.mxu0
        %v1709 = vadd.f32 0.0, %v1708
        %1710 = vmatmul.bf16.gmra.mxu0 %v1229
        %v1711 = vpop.f32.mrf.mxu0
        %v1712 = vadd.f32 0.0, %v1711
        %v1713 = vpop.f32.mrf.mxu0
        %v1714 = vadd.f32 0.0, %v1713
        %1715 = vmatmul.bf16.gmra.mxu0 %v1232
        %v1716 = vpop.f32.mrf.mxu0
        %v1717 = vadd.f32 0.0, %v1716
        %v1718 = vpop.f32.mrf.mxu0
        %v1719 = vadd.f32 0.0, %v1718
        %1720 = vmatmul.bf16.gmra.mxu0 %v1235
        %v1721 = vpop.f32.mrf.mxu0
        %v1722 = vadd.f32 0.0, %v1721
        %v1723 = vpop.f32.mrf.mxu0
        %v1724 = vadd.f32 0.0, %v1723
        %1725 = vmatmul.bf16.gmra.mxu0 %v1238
        %v1726 = vpop.f32.mrf.mxu0
        %v1727 = vadd.f32 0.0, %v1726
        %v1728 = vpop.f32.mrf.mxu0
        %v1729 = vadd.f32 0.0, %v1728
        %1730 = vmatmul.bf16.gmra.mxu0 %v1241
        %v1731 = vpop.f32.mrf.mxu0
        %v1732 = vadd.f32 0.0, %v1731
        %v1733 = vpop.f32.mrf.mxu0
        %v1734 = vadd.f32 0.0, %v1733
        %1735 = vmatmul.bf16.gmra.mxu0 %v1244
        %v1736 = vpop.f32.mrf.mxu0
        %v1737 = vadd.f32 0.0, %v1736
        %v1738 = vpop.f32.mrf.mxu0
        %v1739 = vadd.f32 0.0, %v1738
        %1740 = vmatmul.bf16.gmra.mxu0 %v1247
        %v1741 = vpop.f32.mrf.mxu0
        %v1742 = vadd.f32 0.0, %v1741
        %v1743 = vpop.f32.mrf.mxu0
        %v1744 = vadd.f32 0.0, %v1743
        %1745 = vmatmul.bf16.gmra.mxu0 %v1250
        %v1746 = vpop.f32.mrf.mxu0
        %v1747 = vadd.f32 0.0, %v1746
        %v1748 = vpop.f32.mrf.mxu0
        %v1749 = vadd.f32 0.0, %v1748
        %1750 = vmatmul.bf16.gmra.mxu0 %v1253
        %v1751 = vpop.f32.mrf.mxu0
        %v1752 = vadd.f32 0.0, %v1751
        %v1753 = vpop.f32.mrf.mxu0
        %v1754 = vadd.f32 0.0, %v1753
        %1755 = vmatmul.bf16.gmra.mxu0 %v1256
        %v1756 = vpop.f32.mrf.mxu0
        %v1757 = vadd.f32 0.0, %v1756
        %v1758 = vpop.f32.mrf.mxu0
        %v1759 = vadd.f32 0.0, %v1758
        %1760 = vmatmul.bf16.gmra.mxu0 %v1259
        %v1761 = vpop.f32.mrf.mxu0
        %v1762 = vadd.f32 0.0, %v1761
        %v1763 = vpop.f32.mrf.mxu0
        %v1764 = vadd.f32 0.0, %v1763
        %1765 = vmatmul.bf16.gmra.mxu0 %v1262
        %v1766 = vpop.f32.mrf.mxu0
        %v1767 = vadd.f32 0.0, %v1766
        %v1768 = vpop.f32.mrf.mxu0
        %v1769 = vadd.f32 0.0, %v1768
        %1770 = vmatmul.bf16.gmra.mxu0 %v1265
        %v1771 = vpop.f32.mrf.mxu0
        %v1772 = vadd.f32 0.0, %v1771
        %v1773 = vpop.f32.mrf.mxu0
        %v1774 = vadd.f32 0.0, %v1773
        %1775 = vmatmul.bf16.gmra.mxu0 %v1268
        %v1776 = vpop.f32.mrf.mxu0
        %v1777 = vadd.f32 0.0, %v1776
        %v1778 = vpop.f32.mrf.mxu0
        %v1779 = vadd.f32 0.0, %v1778
        %1780 = vmatmul.bf16.gmra.mxu0 %v1271
        %v1781 = vpop.f32.mrf.mxu0
        %v1782 = vadd.f32 0.0, %v1781
        %v1783 = vpop.f32.mrf.mxu0
        %v1784 = vadd.f32 0.0, %v1783
        %1785 = vmatmul.bf16.gmra.mxu0 %v1274
        %v1786 = vpop.f32.mrf.mxu0
        %v1787 = vadd.f32 0.0, %v1786
        %v1788 = vpop.f32.mrf.mxu0
        %v1789 = vadd.f32 0.0, %v1788
        %1790 = vmatmul.bf16.gmra.mxu0 %v1277
        %v1791 = vpop.f32.mrf.mxu0
        %v1792 = vadd.f32 0.0, %v1791
        %v1793 = vpop.f32.mrf.mxu0
        %v1794 = vadd.f32 0.0, %v1793
        %1795 = vmatmul.bf16.gmra.mxu0 %v1280
        %v1796 = vpop.f32.mrf.mxu0
        %v1797 = vadd.f32 0.0, %v1796
        %v1798 = vpop.f32.mrf.mxu0
        %v1799 = vadd.f32 0.0, %v1798
        %1800 = vmatmul.bf16.gmra.mxu0 %v1283
        %v1801 = vpop.f32.mrf.mxu0
        %v1802 = vadd.f32 0.0, %v1801
        %v1803 = vpop.f32.mrf.mxu0
        %v1804 = vadd.f32 0.0, %v1803
        %1805 = vmatmul.bf16.gmra.mxu0 %v1286
        %v1806 = vpop.f32.mrf.mxu0
        %v1807 = vadd.f32 0.0, %v1806
        %v1808 = vpop.f32.mrf.mxu0
        %v1809 = vadd.f32 0.0, %v1808
        %1810 = vmatmul.bf16.gmra.mxu0 %v1289
        %v1811 = vpop.f32.mrf.mxu0
        %v1812 = vadd.f32 0.0, %v1811
        %v1813 = vpop.f32.mrf.mxu0
        %v1814 = vadd.f32 0.0, %v1813
        %1815 = vmatmul.bf16.gmra.mxu0 %v1292
        %v1816 = vpop.f32.mrf.mxu0
        %v1817 = vadd.f32 0.0, %v1816
        %v1818 = vpop.f32.mrf.mxu0
        %v1819 = vadd.f32 0.0, %v1818
        %1820 = vmatmul.bf16.gmra.mxu0 %v1295
        %v1821 = vpop.f32.mrf.mxu0
        %v1822 = vadd.f32 0.0, %v1821
        %v1823 = vpop.f32.mrf.mxu0
        %v1824 = vadd.f32 0.0, %v1823
        %1825 = vmatmul.bf16.gmra.mxu0 %v1298
        %v1826 = vpop.f32.mrf.mxu0
        %v1827 = vadd.f32 0.0, %v1826
        %v1828 = vpop.f32.mrf.mxu0
        %v1829 = vadd.f32 0.0, %v1828
        %1830 = vmatmul.bf16.gmra.mxu0 %v1301
        %v1831 = vpop.f32.mrf.mxu0
        %v1832 = vadd.f32 0.0, %v1831
        %v1833 = vpop.f32.mrf.mxu0
        %v1834 = vadd.f32 0.0, %v1833
        %1835 = vmatmul.bf16.gmra.mxu0 %v1304
        %v1836 = vpop.f32.mrf.mxu0
        %v1837 = vadd.f32 0.0, %v1836
        %v1838 = vpop.f32.mrf.mxu0
        %v1839 = vadd.f32 0.0, %v1838
        %1840 = vmatmul.bf16.gmra.mxu0 %v1307
        %v1841 = vpop.f32.mrf.mxu0
        %v1842 = vadd.f32 0.0, %v1841
        %v1843 = vpop.f32.mrf.mxu0
        %v1844 = vadd.f32 0.0, %v1843
        %1845 = vmatmul.bf16.gmra.mxu0 %v1310
        %v1846 = vpop.f32.mrf.mxu0
        %v1847 = vadd.f32 0.0, %v1846
        %v1848 = vpop.f32.mrf.mxu0
        %v1849 = vadd.f32 0.0, %v1848
        %1850 = vmatmul.bf16.gmra.mxu0 %v1313
        %v1851 = vpop.f32.mrf.mxu0
        %v1852 = vadd.f32 0.0, %v1851
        %v1853 = vpop.f32.mrf.mxu0
        %v1854 = vadd.f32 0.0, %v1853
        %1855 = vmatmul.bf16.gmra.mxu0 %v1316
        %v1856 = vpop.f32.mrf.mxu0
        %v1857 = vadd.f32 0.0, %v1856
        %v1858 = vpop.f32.mrf.mxu0
        %v1859 = vadd.f32 0.0, %v1858
        %1860 = vmatmul.bf16.gmra.mxu0 %v1319
        %v1861 = vpop.f32.mrf.mxu0
        %v1862 = vadd.f32 0.0, %v1861
        %v1863 = vpop.f32.mrf.mxu0
        %v1864 = vadd.f32 0.0, %v1863
        %1865 = vmatmul.bf16.gmra.mxu0 %v1322
        %v1866 = vpop.f32.mrf.mxu0
        %v1867 = vadd.f32 0.0, %v1866
        %v1868 = vpop.f32.mrf.mxu0
        %v1869 = vadd.f32 0.0, %v1868
        %1870 = vmatmul.bf16.gmra.mxu0 %v1325
        %v1871 = vpop.f32.mrf.mxu0
        %v1872 = vadd.f32 0.0, %v1871
        %v1873 = vpop.f32.mrf.mxu0
        %v1874 = vadd.f32 0.0, %v1873
        %1875 = vmatmul.bf16.gmra.mxu0 %v1328
        %v1876 = vpop.f32.mrf.mxu0
        %v1877 = vadd.f32 0.0, %v1876
        %v1878 = vpop.f32.mrf.mxu0
        %v1879 = vadd.f32 0.0, %v1878
        %1880 = vmatmul.bf16.gmra.mxu0 %v1331
        %v1881 = vpop.f32.mrf.mxu0
        %v1882 = vadd.f32 0.0, %v1881
        %v1883 = vpop.f32.mrf.mxu0
        %v1884 = vadd.f32 0.0, %v1883
        %1885 = vmatmul.bf16.gmra.mxu0 %v1334
        %v1886 = vpop.f32.mrf.mxu0
        %v1887 = vadd.f32 0.0, %v1886
        %v1888 = vpop.f32.mrf.mxu0
        %v1889 = vadd.f32 0.0, %v1888
        %1890 = vmatmul.bf16.gmra.mxu0 %v1337
        %v1891 = vpop.f32.mrf.mxu0
        %v1892 = vadd.f32 0.0, %v1891
        %v1893 = vpop.f32.mrf.mxu0
        %v1894 = vadd.f32 0.0, %v1893
        %1895 = vmatmul.bf16.gmra.mxu0 %v1340
        %v1896 = vpop.f32.mrf.mxu0
        %v1897 = vadd.f32 0.0, %v1896
        %v1898 = vpop.f32.mrf.mxu0
        %v1899 = vadd.f32 0.0, %v1898
        %1900 = vmatmul.bf16.gmra.mxu0 %v1343
        %v1901 = vpop.f32.mrf.mxu0
        %v1902 = vadd.f32 0.0, %v1901
        %v1903 = vpop.f32.mrf.mxu0
        %v1904 = vadd.f32 0.0, %v1903
        %1905 = vmatmul.bf16.gmra.mxu0 %v1346
        %v1906 = vpop.f32.mrf.mxu0
        %v1907 = vadd.f32 0.0, %v1906
        %v1908 = vpop.f32.mrf.mxu0
        %v1909 = vadd.f32 0.0, %v1908
        %1910 = vmatmul.bf16.gmra.mxu0 %v1349
        %v1911 = vpop.f32.mrf.mxu0
        %v1912 = vadd.f32 0.0, %v1911
        %v1913 = vpop.f32.mrf.mxu0
        %v1914 = vadd.f32 0.0, %v1913
        %1915 = vmatmul.bf16.gmra.mxu0 %v1352
        %v1916 = vpop.f32.mrf.mxu0
        %v1917 = vadd.f32 0.0, %v1916
        %v1918 = vpop.f32.mrf.mxu0
        %v1919 = vadd.f32 0.0, %v1918
        %1920 = vmatmul.bf16.gmra.mxu0 %v1355
        %v1921 = vpop.f32.mrf.mxu0
        %v1922 = vadd.f32 0.0, %v1921
        %v1923 = vpop.f32.mrf.mxu0
        %v1924 = vadd.f32 0.0, %v1923
        %1925 = vmatmul.bf16.gmra.mxu0 %v1358
        %v1926 = vpop.f32.mrf.mxu0
        %v1927 = vadd.f32 0.0, %v1926
        %v1928 = vpop.f32.mrf.mxu0
        %v1929 = vadd.f32 0.0, %v1928
        %1930 = vmatmul.bf16.gmra.mxu0 %v1361
        %v1931 = vpop.f32.mrf.mxu0
        %v1932 = vadd.f32 0.0, %v1931
        %v1933 = vpop.f32.mrf.mxu0
        %v1934 = vadd.f32 0.0, %v1933
        %1935 = vmatmul.bf16.gmra.mxu0 %v1364
        %v1936 = vpop.f32.mrf.mxu0
        %v1937 = vadd.f32 0.0, %v1936
        %v1938 = vpop.f32.mrf.mxu0
        %v1939 = vadd.f32 0.0, %v1938
        %1940 = vmatmul.bf16.gmra.mxu0 %v1367
        %v1941 = vpop.f32.mrf.mxu0
        %v1942 = vadd.f32 0.0, %v1941
        %v1943 = vpop.f32.mrf.mxu0
        %v1944 = vadd.f32 0.0, %v1943
        %1945 = vmatmul.bf16.gmra.mxu0 %v1370
        %v1946 = vpop.f32.mrf.mxu0
        %v1947 = vadd.f32 0.0, %v1946
        %v1948 = vpop.f32.mrf.mxu0
        %v1949 = vadd.f32 0.0, %v1948
        %1950 = vmatmul.bf16.gmra.mxu0 %v1373
        %v1951 = vpop.f32.mrf.mxu0
        %v1952 = vadd.f32 0.0, %v1951
        %v1953 = vpop.f32.mrf.mxu0
        %v1954 = vadd.f32 0.0, %v1953
        %1955 = vmatmul.bf16.gmra.mxu0 %v1376
        %v1956 = vpop.f32.mrf.mxu0
        %v1957 = vadd.f32 0.0, %v1956
        %v1958 = vpop.f32.mrf.mxu0
        %v1959 = vadd.f32 0.0, %v1958
        %1960 = vmatmul.bf16.gmra.mxu0 %v1379
        %v1961 = vpop.f32.mrf.mxu0
        %v1962 = vadd.f32 0.0, %v1961
        %v1963 = vpop.f32.mrf.mxu0
        %v1964 = vadd.f32 0.0, %v1963
        %1965 = vmatmul.bf16.gmra.mxu0 %v1382
        %v1966 = vpop.f32.mrf.mxu0
        %v1967 = vadd.f32 0.0, %v1966
        %v1968 = vpop.f32.mrf.mxu0
        %v1969 = vadd.f32 0.0, %v1968
        %1970 = vmatmul.bf16.gmra.mxu0 %v1385
        %v1971 = vpop.f32.mrf.mxu0
        %v1972 = vadd.f32 0.0, %v1971
        %v1973 = vpop.f32.mrf.mxu0
        %v1974 = vadd.f32 0.0, %v1973
        %1975 = vmatmul.bf16.gmra.mxu0 %v1388
        %v1976 = vpop.f32.mrf.mxu0
        %v1977 = vadd.f32 0.0, %v1976
        %v1978 = vpop.f32.mrf.mxu0
        %v1979 = vadd.f32 0.0, %v1978
        %1980 = vmatmul.bf16.gmra.mxu0 %v1391
        %v1981 = vpop.f32.mrf.mxu0
        %v1982 = vadd.f32 0.0, %v1981
        %v1983 = vpop.f32.mrf.mxu0
        %v1984 = vadd.f32 0.0, %v1983
        %1985 = vmatmul.bf16.gmra.mxu0 %v1394
        %v1986 = vpop.f32.mrf.mxu0
        %v1987 = vadd.f32 0.0, %v1986
        %v1988 = vpop.f32.mrf.mxu0
        %v1989 = vadd.f32 0.0, %v1988
        %1990 = vmatmul.bf16.gmra.mxu0 %v1397
        %v1991 = vpop.f32.mrf.mxu0
        %v1992 = vadd.f32 0.0, %v1991
        %v1993 = vpop.f32.mrf.mxu0
        %v1994 = vadd.f32 0.0, %v1993
        %1995 = vmatmul.bf16.gmra.mxu0 %v1400
        %v1996 = vpop.f32.mrf.mxu0
        %v1997 = vadd.f32 0.0, %v1996
        %v1998 = vpop.f32.mrf.mxu0
        %v1999 = vadd.f32 0.0, %v1998
        %2000 = vmatmul.bf16.gmra.mxu0 %v1403
        %v2001 = vpop.f32.mrf.mxu0
        %v2002 = vadd.f32 0.0, %v2001
        %v2003 = vpop.f32.mrf.mxu0
        %v2004 = vadd.f32 0.0, %v2003
        %2005 = vmatmul.bf16.gmra.mxu0 %v1406
        %v2006 = vpop.f32.mrf.mxu0
        %v2007 = vadd.f32 0.0, %v2006
        %v2008 = vpop.f32.mrf.mxu0
        %v2009 = vadd.f32 0.0, %v2008
        %2010 = vmatmul.bf16.gmra.mxu0 %v1409
        %v2011 = vpop.f32.mrf.mxu0
        %v2012 = vadd.f32 0.0, %v2011
        %v2013 = vpop.f32.mrf.mxu0
        %v2014 = vadd.f32 0.0, %v2013
        %2015 = vmatmul.bf16.gmra.mxu0 %v1412
        %v2016 = vpop.f32.mrf.mxu0
        %v2017 = vadd.f32 0.0, %v2016
        %v2018 = vpop.f32.mrf.mxu0
        %v2019 = vadd.f32 0.0, %v2018
        %2020 = vmatmul.bf16.gmra.mxu0 %v1415
        %v2021 = vpop.f32.mrf.mxu0
        %v2022 = vadd.f32 0.0, %v2021
        %v2023 = vpop.f32.mrf.mxu0
        %v2024 = vadd.f32 0.0, %v2023
        %2025 = vmatmul.bf16.gmra.mxu0 %v1418
        %v2026 = vpop.f32.mrf.mxu0
        %v2027 = vadd.f32 0.0, %v2026
        %v2028 = vpop.f32.mrf.mxu0
        %v2029 = vadd.f32 0.0, %v2028
        %2030 = vmatmul.bf16.gmra.mxu0 %v1421
        %v2031 = vpop.f32.mrf.mxu0
        %v2032 = vadd.f32 0.0, %v2031
        %v2033 = vpop.f32.mrf.mxu0
        %v2034 = vadd.f32 0.0, %v2033
        %2035 = vmatmul.bf16.gmra.mxu0 %v1424
        %v2036 = vpop.f32.mrf.mxu0
        %v2037 = vadd.f32 0.0, %v2036
        %v2038 = vpop.f32.mrf.mxu0
        %v2039 = vadd.f32 0.0, %v2038
        %2040 = vmatmul.bf16.gmra.mxu0 %v1427
        %v2041 = vpop.f32.mrf.mxu0
        %v2042 = vadd.f32 0.0, %v2041
        %v2043 = vpop.f32.mrf.mxu0
        %v2044 = vadd.f32 0.0, %v2043
        %2045 = vmatmul.bf16.gmra.mxu0 %v1430
        %v2046 = vpop.f32.mrf.mxu0
        %v2047 = vadd.f32 0.0, %v2046
        %v2048 = vpop.f32.mrf.mxu0
        %v2049 = vadd.f32 0.0, %v2048
        %2050 = vmatmul.bf16.gmra.mxu0 %v1433
        %v2051 = vpop.f32.mrf.mxu0
        %v2052 = vadd.f32 0.0, %v2051
        %v2053 = vpop.f32.mrf.mxu0
        %v2054 = vadd.f32 0.0, %v2053
        %2055 = vmatmul.bf16.gmra.mxu0 %v1436
        %v2056 = vpop.f32.mrf.mxu0
        %v2057 = vadd.f32 0.0, %v2056
        %v2058 = vpop.f32.mrf.mxu0
        %v2059 = vadd.f32 0.0, %v2058
        %2060 = vmatmul.bf16.gmra.mxu0 %v1439
        %v2061 = vpop.f32.mrf.mxu0
        %v2062 = vadd.f32 0.0, %v2061
        %v2063 = vpop.f32.mrf.mxu0
        %v2064 = vadd.f32 0.0, %v2063
        %2065 = vmatmul.bf16.gmra.mxu0 %v1442
        %v2066 = vpop.f32.mrf.mxu0
        %v2067 = vadd.f32 0.0, %v2066
        %v2068 = vpop.f32.mrf.mxu0
        %v2069 = vadd.f32 0.0, %v2068
        %2070 = vmatmul.bf16.gmra.mxu0 %v1445
        %v2071 = vpop.f32.mrf.mxu0
        %v2072 = vadd.f32 0.0, %v2071
        %v2073 = vpop.f32.mrf.mxu0
        %v2074 = vadd.f32 0.0, %v2073
        %2075 = vmatmul.bf16.gmra.mxu0 %v1448
        %v2076 = vpop.f32.mrf.mxu0
        %v2077 = vadd.f32 0.0, %v2076
        %v2078 = vpop.f32.mrf.mxu0
        %v2079 = vadd.f32 0.0, %v2078
        %2080 = vmatmul.bf16.gmra.mxu0 %v1451
        %v2081 = vpop.f32.mrf.mxu0
        %v2082 = vadd.f32 0.0, %v2081
        %v2083 = vpop.f32.mrf.mxu0
        %v2084 = vadd.f32 0.0, %v2083
        %2085 = vmatmul.bf16.gmra.mxu0 %v1454
        %v2086 = vpop.f32.mrf.mxu0
        %v2087 = vadd.f32 0.0, %v2086
        %v2088 = vpop.f32.mrf.mxu0
        %v2089 = vadd.f32 0.0, %v2088
        %2090 = vmatmul.bf16.gmra.mxu0 %v1457
        %v2091 = vpop.f32.mrf.mxu0
        %v2092 = vadd.f32 0.0, %v2091
        %v2093 = vpop.f32.mrf.mxu0
        %v2094 = vadd.f32 0.0, %v2093
        %2095 = vmatmul.bf16.gmra.mxu0 %v1460
        %v2096 = vpop.f32.mrf.mxu0
        %v2097 = vadd.f32 0.0, %v2096
        %v2098 = vpop.f32.mrf.mxu0
        %v2099 = vadd.f32 0.0, %v2098
        %2100 = vmatmul.bf16.gmra.mxu0 %v1463
        %v2101 = vpop.f32.mrf.mxu0
        %v2102 = vadd.f32 0.0, %v2101
        %v2103 = vpop.f32.mrf.mxu0
        %v2104 = vadd.f32 0.0, %v2103
        %2105 = vmatmul.bf16.gmra.mxu0 %v1466
        %v2106 = vpop.f32.mrf.mxu0
        %v2107 = vadd.f32 0.0, %v2106
        %v2108 = vpop.f32.mrf.mxu0
        %v2109 = vadd.f32 0.0, %v2108
        %2110 = vmatmul.bf16.gmra.mxu0 %v1469
        %v2111 = vpop.f32.mrf.mxu0
        %v2112 = vadd.f32 0.0, %v2111
        %v2113 = vpop.f32.mrf.mxu0
        %v2114 = vadd.f32 0.0, %v2113
        %2115 = vmatmul.bf16.gmra.mxu0 %v1472
        %v2116 = vpop.f32.mrf.mxu0
        %v2117 = vadd.f32 0.0, %v2116
        %v2118 = vpop.f32.mrf.mxu0
        %v2119 = vadd.f32 0.0, %v2118
        %2120 = vmatmul.bf16.gmra.mxu0 %v1475
        %v2121 = vpop.f32.mrf.mxu0
        %v2122 = vadd.f32 0.0, %v2121
        %v2123 = vpop.f32.mrf.mxu0
        %v2124 = vadd.f32 0.0, %v2123
        %2125 = vmatmul.bf16.gmra.mxu0 %v1478
        %v2126 = vpop.f32.mrf.mxu0
        %v2127 = vadd.f32 0.0, %v2126
        %v2128 = vpop.f32.mrf.mxu0
        %v2129 = vadd.f32 0.0, %v2128
        %2130 = vmatmul.bf16.gmra.mxu0 %v1481
        %v2131 = vpop.f32.mrf.mxu0
        %v2132 = vadd.f32 0.0, %v2131
        %v2133 = vpop.f32.mrf.mxu0
        %v2134 = vadd.f32 0.0, %v2133
        %2135 = vdwg.mxu0
        %v2136 = vmax.f32 %v1497, 0.0
        %v2137 = vmax.f32 %v1499, 0.0
        %v2138 = vmax.f32 %v1502, 0.0
        %v2139 = vmax.f32 %v1504, 0.0
        %v2140 = vmax.f32 %v1507, 0.0
        %v2141 = vmax.f32 %v1509, 0.0
        %v2142 = vmax.f32 %v1512, 0.0
        %v2143 = vmax.f32 %v1514, 0.0
        %v2144 = vmax.f32 %v1517, 0.0
        %v2145 = vmax.f32 %v1519, 0.0
        %v2146 = vmax.f32 %v1522, 0.0
        %v2147 = vmax.f32 %v1524, 0.0
        %v2148 = vmax.f32 %v1527, 0.0
        %v2149 = vmax.f32 %v1529, 0.0
        %v2150 = vmax.f32 %v1532, 0.0
        %v2151 = vmax.f32 %v1534, 0.0
        %v2152 = vmax.f32 %v1537, 0.0
        %v2153 = vmax.f32 %v1539, 0.0
        %v2154 = vmax.f32 %v1542, 0.0
        %v2155 = vmax.f32 %v1544, 0.0
        %v2156 = vmax.f32 %v1547, 0.0
        %v2157 = vmax.f32 %v1549, 0.0
        %v2158 = vmax.f32 %v1552, 0.0
        %v2159 = vmax.f32 %v1554, 0.0
        %v2160 = vmax.f32 %v1557, 0.0
        %v2161 = vmax.f32 %v1559, 0.0
        %v2162 = vmax.f32 %v1562, 0.0
        %v2163 = vmax.f32 %v1564, 0.0
        %v2164 = vmax.f32 %v1567, 0.0
        %v2165 = vmax.f32 %v1569, 0.0
        %v2166 = vmax.f32 %v1572, 0.0
        %v2167 = vmax.f32 %v1574, 0.0
        %v2168 = vmax.f32 %v1577, 0.0
        %v2169 = vmax.f32 %v1579, 0.0
        %v2170 = vmax.f32 %v1582, 0.0
        %v2171 = vmax.f32 %v1584, 0.0
        %v2172 = vmax.f32 %v1587, 0.0
        %v2173 = vmax.f32 %v1589, 0.0
        %v2174 = vmax.f32 %v1592, 0.0
        %v2175 = vmax.f32 %v1594, 0.0
        %v2176 = vmax.f32 %v1597, 0.0
        %v2177 = vmax.f32 %v1599, 0.0
        %v2178 = vmax.f32 %v1602, 0.0
        %v2179 = vmax.f32 %v1604, 0.0
        %v2180 = vmax.f32 %v1607, 0.0
        %v2181 = vmax.f32 %v1609, 0.0
        %v2182 = vmax.f32 %v1612, 0.0
        %v2183 = vmax.f32 %v1614, 0.0
        %v2184 = vmax.f32 %v1617, 0.0
        %v2185 = vmax.f32 %v1619, 0.0
        %v2186 = vmax.f32 %v1622, 0.0
        %v2187 = vmax.f32 %v1624, 0.0
        %v2188 = vmax.f32 %v1627, 0.0
        %v2189 = vmax.f32 %v1629, 0.0
        %v2190 = vmax.f32 %v1632, 0.0
        %v2191 = vmax.f32 %v1634, 0.0
        %v2192 = vmax.f32 %v1637, 0.0
        %v2193 = vmax.f32 %v1639, 0.0
        %v2194 = vmax.f32 %v1642, 0.0
        %v2195 = vmax.f32 %v1644, 0.0
        %v2196 = vmax.f32 %v1647, 0.0
        %v2197 = vmax.f32 %v1649, 0.0
        %v2198 = vmax.f32 %v1652, 0.0
        %v2199 = vmax.f32 %v1654, 0.0
        %v2200 = vmax.f32 %v1657, 0.0
        %v2201 = vmax.f32 %v1659, 0.0
        %v2202 = vmax.f32 %v1662, 0.0
        %v2203 = vmax.f32 %v1664, 0.0
        %v2204 = vmax.f32 %v1667, 0.0
        %v2205 = vmax.f32 %v1669, 0.0
        %v2206 = vmax.f32 %v1672, 0.0
        %v2207 = vmax.f32 %v1674, 0.0
        %v2208 = vmax.f32 %v1677, 0.0
        %v2209 = vmax.f32 %v1679, 0.0
        %v2210 = vmax.f32 %v1682, 0.0
        %v2211 = vmax.f32 %v1684, 0.0
        %v2212 = vmax.f32 %v1687, 0.0
        %v2213 = vmax.f32 %v1689, 0.0
        %v2214 = vmax.f32 %v1692, 0.0
        %v2215 = vmax.f32 %v1694, 0.0
        %v2216 = vmax.f32 %v1697, 0.0
        %v2217 = vmax.f32 %v1699, 0.0
        %v2218 = vmax.f32 %v1702, 0.0
        %v2219 = vmax.f32 %v1704, 0.0
        %v2220 = vmax.f32 %v1707, 0.0
        %v2221 = vmax.f32 %v1709, 0.0
        %v2222 = vmax.f32 %v1712, 0.0
        %v2223 = vmax.f32 %v1714, 0.0
        %v2224 = vmax.f32 %v1717, 0.0
        %v2225 = vmax.f32 %v1719, 0.0
        %v2226 = vmax.f32 %v1722, 0.0
        %v2227 = vmax.f32 %v1724, 0.0
        %v2228 = vmax.f32 %v1727, 0.0
        %v2229 = vmax.f32 %v1729, 0.0
        %v2230 = vmax.f32 %v1732, 0.0
        %v2231 = vmax.f32 %v1734, 0.0
        %v2232 = vmax.f32 %v1737, 0.0
        %v2233 = vmax.f32 %v1739, 0.0
        %v2234 = vmax.f32 %v1742, 0.0
        %v2235 = vmax.f32 %v1744, 0.0
        %v2236 = vmax.f32 %v1747, 0.0
        %v2237 = vmax.f32 %v1749, 0.0
        %v2238 = vmax.f32 %v1752, 0.0
        %v2239 = vmax.f32 %v1754, 0.0
        %v2240 = vmax.f32 %v1757, 0.0
        %v2241 = vmax.f32 %v1759, 0.0
        %v2242 = vmax.f32 %v1762, 0.0
        %v2243 = vmax.f32 %v1764, 0.0
        %v2244 = vmax.f32 %v1767, 0.0
        %v2245 = vmax.f32 %v1769, 0.0
        %v2246 = vmax.f32 %v1772, 0.0
        %v2247 = vmax.f32 %v1774, 0.0
        %v2248 = vmax.f32 %v1777, 0.0
        %v2249 = vmax.f32 %v1779, 0.0
        %v2250 = vmax.f32 %v1782, 0.0
        %v2251 = vmax.f32 %v1784, 0.0
        %v2252 = vmax.f32 %v1787, 0.0
        %v2253 = vmax.f32 %v1789, 0.0
        %v2254 = vmax.f32 %v1792, 0.0
        %v2255 = vmax.f32 %v1794, 0.0
        %v2256 = vmax.f32 %v1797, 0.0
        %v2257 = vmax.f32 %v1799, 0.0
        %v2258 = vmax.f32 %v1802, 0.0
        %v2259 = vmax.f32 %v1804, 0.0
        %v2260 = vmax.f32 %v1807, 0.0
        %v2261 = vmax.f32 %v1809, 0.0
        %v2262 = vmax.f32 %v1812, 0.0
        %v2263 = vmax.f32 %v1814, 0.0
        %v2264 = vmax.f32 %v1817, 0.0
        %v2265 = vmax.f32 %v1819, 0.0
        %v2266 = vmax.f32 %v1822, 0.0
        %v2267 = vmax.f32 %v1824, 0.0
        %v2268 = vmax.f32 %v1827, 0.0
        %v2269 = vmax.f32 %v1829, 0.0
        %v2270 = vmax.f32 %v1832, 0.0
        %v2271 = vmax.f32 %v1834, 0.0
        %v2272 = vmax.f32 %v1837, 0.0
        %v2273 = vmax.f32 %v1839, 0.0
        %v2274 = vmax.f32 %v1842, 0.0
        %v2275 = vmax.f32 %v1844, 0.0
        %v2276 = vmax.f32 %v1847, 0.0
        %v2277 = vmax.f32 %v1849, 0.0
        %v2278 = vmax.f32 %v1852, 0.0
        %v2279 = vmax.f32 %v1854, 0.0
        %v2280 = vmax.f32 %v1857, 0.0
        %v2281 = vmax.f32 %v1859, 0.0
        %v2282 = vmax.f32 %v1862, 0.0
        %v2283 = vmax.f32 %v1864, 0.0
        %v2284 = vmax.f32 %v1867, 0.0
        %v2285 = vmax.f32 %v1869, 0.0
        %v2286 = vmax.f32 %v1872, 0.0
        %v2287 = vmax.f32 %v1874, 0.0
        %v2288 = vmax.f32 %v1877, 0.0
        %v2289 = vmax.f32 %v1879, 0.0
        %v2290 = vmax.f32 %v1882, 0.0
        %v2291 = vmax.f32 %v1884, 0.0
        %v2292 = vmax.f32 %v1887, 0.0
        %v2293 = vmax.f32 %v1889, 0.0
        %v2294 = vmax.f32 %v1892, 0.0
        %v2295 = vmax.f32 %v1894, 0.0
        %v2296 = vmax.f32 %v1897, 0.0
        %v2297 = vmax.f32 %v1899, 0.0
        %v2298 = vmax.f32 %v1902, 0.0
        %v2299 = vmax.f32 %v1904, 0.0
        %v2300 = vmax.f32 %v1907, 0.0
        %v2301 = vmax.f32 %v1909, 0.0
        %v2302 = vmax.f32 %v1912, 0.0
        %v2303 = vmax.f32 %v1914, 0.0
        %v2304 = vmax.f32 %v1917, 0.0
        %v2305 = vmax.f32 %v1919, 0.0
        %v2306 = vmax.f32 %v1922, 0.0
        %v2307 = vmax.f32 %v1924, 0.0
        %v2308 = vmax.f32 %v1927, 0.0
        %v2309 = vmax.f32 %v1929, 0.0
        %v2310 = vmax.f32 %v1932, 0.0
        %v2311 = vmax.f32 %v1934, 0.0
        %v2312 = vmax.f32 %v1937, 0.0
        %v2313 = vmax.f32 %v1939, 0.0
        %v2314 = vmax.f32 %v1942, 0.0
        %v2315 = vmax.f32 %v1944, 0.0
        %v2316 = vmax.f32 %v1947, 0.0
        %v2317 = vmax.f32 %v1949, 0.0
        %v2318 = vmax.f32 %v1952, 0.0
        %v2319 = vmax.f32 %v1954, 0.0
        %v2320 = vmax.f32 %v1957, 0.0
        %v2321 = vmax.f32 %v1959, 0.0
        %v2322 = vmax.f32 %v1962, 0.0
        %v2323 = vmax.f32 %v1964, 0.0
        %v2324 = vmax.f32 %v1967, 0.0
        %v2325 = vmax.f32 %v1969, 0.0
        %v2326 = vmax.f32 %v1972, 0.0
        %v2327 = vmax.f32 %v1974, 0.0
        %v2328 = vmax.f32 %v1977, 0.0
        %v2329 = vmax.f32 %v1979, 0.0
        %v2330 = vmax.f32 %v1982, 0.0
        %v2331 = vmax.f32 %v1984, 0.0
        %v2332 = vmax.f32 %v1987, 0.0
        %v2333 = vmax.f32 %v1989, 0.0
        %v2334 = vmax.f32 %v1992, 0.0
        %v2335 = vmax.f32 %v1994, 0.0
        %v2336 = vmax.f32 %v1997, 0.0
        %v2337 = vmax.f32 %v1999, 0.0
        %v2338 = vmax.f32 %v2002, 0.0
        %v2339 = vmax.f32 %v2004, 0.0
        %v2340 = vmax.f32 %v2007, 0.0
        %v2341 = vmax.f32 %v2009, 0.0
        %v2342 = vmax.f32 %v2012, 0.0
        %v2343 = vmax.f32 %v2014, 0.0
        %v2344 = vmax.f32 %v2017, 0.0
        %v2345 = vmax.f32 %v2019, 0.0
        %v2346 = vmax.f32 %v2022, 0.0
        %v2347 = vmax.f32 %v2024, 0.0
        %v2348 = vmax.f32 %v2027, 0.0
        %v2349 = vmax.f32 %v2029, 0.0
        %v2350 = vmax.f32 %v2032, 0.0
        %v2351 = vmax.f32 %v2034, 0.0
        %v2352 = vmax.f32 %v2037, 0.0
        %v2353 = vmax.f32 %v2039, 0.0
        %v2354 = vmax.f32 %v2042, 0.0
        %v2355 = vmax.f32 %v2044, 0.0
        %v2356 = vmax.f32 %v2047, 0.0
        %v2357 = vmax.f32 %v2049, 0.0
        %v2358 = vmax.f32 %v2052, 0.0
        %v2359 = vmax.f32 %v2054, 0.0
        %v2360 = vmax.f32 %v2057, 0.0
        %v2361 = vmax.f32 %v2059, 0.0
        %v2362 = vmax.f32 %v2062, 0.0
        %v2363 = vmax.f32 %v2064, 0.0
        %v2364 = vmax.f32 %v2067, 0.0
        %v2365 = vmax.f32 %v2069, 0.0
        %v2366 = vmax.f32 %v2072, 0.0
        %v2367 = vmax.f32 %v2074, 0.0
        %v2368 = vmax.f32 %v2077, 0.0
        %v2369 = vmax.f32 %v2079, 0.0
        %v2370 = vmax.f32 %v2082, 0.0
        %v2371 = vmax.f32 %v2084, 0.0
        %v2372 = vmax.f32 %v2087, 0.0
        %v2373 = vmax.f32 %v2089, 0.0
        %v2374 = vmax.f32 %v2092, 0.0
        %v2375 = vmax.f32 %v2094, 0.0
        %v2376 = vmax.f32 %v2097, 0.0
        %v2377 = vmax.f32 %v2099, 0.0
        %v2378 = vmax.f32 %v2102, 0.0
        %v2379 = vmax.f32 %v2104, 0.0
        %v2380 = vmax.f32 %v2107, 0.0
        %v2381 = vmax.f32 %v2109, 0.0
        %v2382 = vmax.f32 %v2112, 0.0
        %v2383 = vmax.f32 %v2114, 0.0
        %v2384 = vmax.f32 %v2117, 0.0
        %v2385 = vmax.f32 %v2119, 0.0
        %v2386 = vmax.f32 %v2122, 0.0
        %v2387 = vmax.f32 %v2124, 0.0
        %v2388 = vmax.f32 %v2127, 0.0
        %v2389 = vmax.f32 %v2129, 0.0
        %v2390 = vmax.f32 %v2132, 0.0
        %v2391 = vmax.f32 %v2134, 0.0
        %v2392 = vpack.c.bf16 %v2137, %v2136
        %v2393 = vpack.c.bf16 %v2139, %v2138
        %v2394 = vpack.c.bf16 %v2141, %v2140
        %v2395 = vpack.c.bf16 %v2143, %v2142
        %v2396 = vpack.c.bf16 %v2145, %v2144
        %v2397 = vpack.c.bf16 %v2147, %v2146
        %v2398 = vpack.c.bf16 %v2149, %v2148
        %v2399 = vpack.c.bf16 %v2151, %v2150
        %v2400 = vpack.c.bf16 %v2153, %v2152
        %v2401 = vpack.c.bf16 %v2155, %v2154
        %v2402 = vpack.c.bf16 %v2157, %v2156
        %v2403 = vpack.c.bf16 %v2159, %v2158
        %v2404 = vpack.c.bf16 %v2161, %v2160
        %v2405 = vpack.c.bf16 %v2163, %v2162
        %v2406 = vpack.c.bf16 %v2165, %v2164
        %v2407 = vpack.c.bf16 %v2167, %v2166
        %v2408 = vpack.c.bf16 %v2169, %v2168
        %v2409 = vpack.c.bf16 %v2171, %v2170
        %v2410 = vpack.c.bf16 %v2173, %v2172
        %v2411 = vpack.c.bf16 %v2175, %v2174
        %v2412 = vpack.c.bf16 %v2177, %v2176
        %v2413 = vpack.c.bf16 %v2179, %v2178
        %v2414 = vpack.c.bf16 %v2181, %v2180
        %v2415 = vpack.c.bf16 %v2183, %v2182
        %v2416 = vpack.c.bf16 %v2185, %v2184
        %v2417 = vpack.c.bf16 %v2187, %v2186
        %v2418 = vpack.c.bf16 %v2189, %v2188
        %v2419 = vpack.c.bf16 %v2191, %v2190
        %v2420 = vpack.c.bf16 %v2193, %v2192
        %v2421 = vpack.c.bf16 %v2195, %v2194
        %v2422 = vpack.c.bf16 %v2197, %v2196
        %v2423 = vpack.c.bf16 %v2199, %v2198
        %v2424 = vpack.c.bf16 %v2201, %v2200
        %v2425 = vpack.c.bf16 %v2203, %v2202
        %v2426 = vpack.c.bf16 %v2205, %v2204
        %v2427 = vpack.c.bf16 %v2207, %v2206
        %v2428 = vpack.c.bf16 %v2209, %v2208
        %v2429 = vpack.c.bf16 %v2211, %v2210
        %v2430 = vpack.c.bf16 %v2213, %v2212
        %v2431 = vpack.c.bf16 %v2215, %v2214
        %v2432 = vpack.c.bf16 %v2217, %v2216
        %v2433 = vpack.c.bf16 %v2219, %v2218
        %v2434 = vpack.c.bf16 %v2221, %v2220
        %v2435 = vpack.c.bf16 %v2223, %v2222
        %v2436 = vpack.c.bf16 %v2225, %v2224
        %v2437 = vpack.c.bf16 %v2227, %v2226
        %v2438 = vpack.c.bf16 %v2229, %v2228
        %v2439 = vpack.c.bf16 %v2231, %v2230
        %v2440 = vpack.c.bf16 %v2233, %v2232
        %v2441 = vpack.c.bf16 %v2235, %v2234
        %v2442 = vpack.c.bf16 %v2237, %v2236
        %v2443 = vpack.c.bf16 %v2239, %v2238
        %v2444 = vpack.c.bf16 %v2241, %v2240
        %v2445 = vpack.c.bf16 %v2243, %v2242
        %v2446 = vpack.c.bf16 %v2245, %v2244
        %v2447 = vpack.c.bf16 %v2247, %v2246
        %v2448 = vpack.c.bf16 %v2249, %v2248
        %v2449 = vpack.c.bf16 %v2251, %v2250
        %v2450 = vpack.c.bf16 %v2253, %v2252
        %v2451 = vpack.c.bf16 %v2255, %v2254
        %v2452 = vpack.c.bf16 %v2257, %v2256
        %v2453 = vpack.c.bf16 %v2259, %v2258
        %v2454 = vpack.c.bf16 %v2261, %v2260
        %v2455 = vpack.c.bf16 %v2263, %v2262
        %v2456 = vpack.c.bf16 %v2265, %v2264
        %v2457 = vpack.c.bf16 %v2267, %v2266
        %v2458 = vpack.c.bf16 %v2269, %v2268
        %v2459 = vpack.c.bf16 %v2271, %v2270
        %v2460 = vpack.c.bf16 %v2273, %v2272
        %v2461 = vpack.c.bf16 %v2275, %v2274
        %v2462 = vpack.c.bf16 %v2277, %v2276
        %v2463 = vpack.c.bf16 %v2279, %v2278
        %v2464 = vpack.c.bf16 %v2281, %v2280
        %v2465 = vpack.c.bf16 %v2283, %v2282
        %v2466 = vpack.c.bf16 %v2285, %v2284
        %v2467 = vpack.c.bf16 %v2287, %v2286
        %v2468 = vpack.c.bf16 %v2289, %v2288
        %v2469 = vpack.c.bf16 %v2291, %v2290
        %v2470 = vpack.c.bf16 %v2293, %v2292
        %v2471 = vpack.c.bf16 %v2295, %v2294
        %v2472 = vpack.c.bf16 %v2297, %v2296
        %v2473 = vpack.c.bf16 %v2299, %v2298
        %v2474 = vpack.c.bf16 %v2301, %v2300
        %v2475 = vpack.c.bf16 %v2303, %v2302
        %v2476 = vpack.c.bf16 %v2305, %v2304
        %v2477 = vpack.c.bf16 %v2307, %v2306
        %v2478 = vpack.c.bf16 %v2309, %v2308
        %v2479 = vpack.c.bf16 %v2311, %v2310
        %v2480 = vpack.c.bf16 %v2313, %v2312
        %v2481 = vpack.c.bf16 %v2315, %v2314
        %v2482 = vpack.c.bf16 %v2317, %v2316
        %v2483 = vpack.c.bf16 %v2319, %v2318
        %v2484 = vpack.c.bf16 %v2321, %v2320
        %v2485 = vpack.c.bf16 %v2323, %v2322
        %v2486 = vpack.c.bf16 %v2325, %v2324
        %v2487 = vpack.c.bf16 %v2327, %v2326
        %v2488 = vpack.c.bf16 %v2329, %v2328
        %v2489 = vpack.c.bf16 %v2331, %v2330
        %v2490 = vpack.c.bf16 %v2333, %v2332
        %v2491 = vpack.c.bf16 %v2335, %v2334
        %v2492 = vpack.c.bf16 %v2337, %v2336
        %v2493 = vpack.c.bf16 %v2339, %v2338
        %v2494 = vpack.c.bf16 %v2341, %v2340
        %v2495 = vpack.c.bf16 %v2343, %v2342
        %v2496 = vpack.c.bf16 %v2345, %v2344
        %v2497 = vpack.c.bf16 %v2347, %v2346
        %v2498 = vpack.c.bf16 %v2349, %v2348
        %v2499 = vpack.c.bf16 %v2351, %v2350
        %v2500 = vpack.c.bf16 %v2353, %v2352
        %v2501 = vpack.c.bf16 %v2355, %v2354
        %v2502 = vpack.c.bf16 %v2357, %v2356
        %v2503 = vpack.c.bf16 %v2359, %v2358
        %v2504 = vpack.c.bf16 %v2361, %v2360
        %v2505 = vpack.c.bf16 %v2363, %v2362
        %v2506 = vpack.c.bf16 %v2365, %v2364
        %v2507 = vpack.c.bf16 %v2367, %v2366
        %v2508 = vpack.c.bf16 %v2369, %v2368
        %v2509 = vpack.c.bf16 %v2371, %v2370
        %v2510 = vpack.c.bf16 %v2373, %v2372
        %v2511 = vpack.c.bf16 %v2375, %v2374
        %v2512 = vpack.c.bf16 %v2377, %v2376
        %v2513 = vpack.c.bf16 %v2379, %v2378
        %v2514 = vpack.c.bf16 %v2381, %v2380
        %v2515 = vpack.c.bf16 %v2383, %v2382
        %v2516 = vpack.c.bf16 %v2385, %v2384
        %v2517 = vpack.c.bf16 %v2387, %v2386
        %v2518 = vpack.c.bf16 %v2389, %v2388
        %v2519 = vpack.c.bf16 %v2391, %v2390
        %v2520 = vld [vmem:[%s2] sm:$0xf]
        %v2521 = vld [vmem:[%s2 + $0x4] sm:$0xf]
        %v2522 = vld [vmem:[%s2 + $0x8] sm:$0xf]
        %v2523 = vld [vmem:[%s2 + $0xc] sm:$0xf]
        %v2524 = vld [vmem:[%s2 + $0x10] sm:$0xf]
        %v2525 = vld [vmem:[%s2 + $0x14] sm:$0xf]
        %v2526 = vld [vmem:[%s2 + $0x18] sm:$0xf]
        %v2527 = vld [vmem:[%s2 + $0x1c] sm:$0xf]
        %v2528 = vld [vmem:[%s2 + $0x20] sm:$0xf]
        %v2529 = vld [vmem:[%s2 + $0x24] sm:$0xf]
        %v2530 = vld [vmem:[%s2 + $0x28] sm:$0xf]
        %v2531 = vld [vmem:[%s2 + $0x2c] sm:$0xf]
        %v2532 = vld [vmem:[%s2 + $0x30] sm:$0xf]
        %v2533 = vld [vmem:[%s2 + $0x34] sm:$0xf]
        %v2534 = vld [vmem:[%s2 + $0x38] sm:$0xf]
        %v2535 = vld [vmem:[%s2 + $0x3c] sm:$0xf]
        %v2552 = vunpack.c.l.b16 %v2520
        %v2553 = vunpack.c.l.b16 %v2521
        %v2554 = vunpack.c.l.b16 %v2522
        %v2555 = vunpack.c.l.b16 %v2523
        %v2556 = vunpack.c.l.b16 %v2524
        %v2557 = vunpack.c.l.b16 %v2525
        %v2558 = vunpack.c.l.b16 %v2526
        %v2559 = vunpack.c.l.b16 %v2527
        %v2560 = vunpack.c.l.b16 %v2528
        %v2561 = vunpack.c.l.b16 %v2529
        %v2562 = vunpack.c.l.b16 %v2530
        %v2563 = vunpack.c.l.b16 %v2531
        %v2564 = vunpack.c.l.b16 %v2532
        %v2565 = vunpack.c.l.b16 %v2533
        %v2566 = vunpack.c.l.b16 %v2534
        %v2567 = vunpack.c.l.b16 %v2535
        %v2568 = vpack.c.b16 %v2553, %v2552
        %v2569 = vpack.c.b16 %v2555, %v2554
        %v2570 = vpack.c.b16 %v2557, %v2556
        %v2571 = vpack.c.b16 %v2559, %v2558
        %v2572 = vpack.c.b16 %v2561, %v2560
        %v2573 = vpack.c.b16 %v2563, %v2562
        %v2574 = vpack.c.b16 %v2565, %v2564
        %v2575 = vpack.c.b16 %v2567, %v2566
        %2584 = vmatpush.bf16.msra.mxu0 %v2575
        %2585 = vmatpush.bf16.msra.mxu0 %v2574
        %2586 = vmatpush.bf16.msra.mxu0 %v2573
        %2587 = vmatpush.bf16.msra.mxu0 %v2572
        %2588 = vmatpush.bf16.msra.mxu0 %v2571
        %2589 = vmatpush.bf16.msra.mxu0 %v2570
        %2590 = vmatpush.bf16.msra.mxu0 %v2569
        %2591 = vmatpush.bf16.msra.mxu0 %v2568
        %2592 = vmatmul.bf16.gmra.mxu0 %v2392
        %v2593 = vpop.f32.mrf.mxu0
        %v2594 = vadd.f32 0.0, %v2593
        %v2595 = vpop.f32.mrf.mxu0
        %v2596 = vadd.f32 0.0, %v2595
        %2597 = vmatmul.bf16.gmra.mxu0 %v2393
        %v2598 = vpop.f32.mrf.mxu0
        %v2599 = vadd.f32 0.0, %v2598
        %v2600 = vpop.f32.mrf.mxu0
        %v2601 = vadd.f32 0.0, %v2600
        %2602 = vmatmul.bf16.gmra.mxu0 %v2394
        %v2603 = vpop.f32.mrf.mxu0
        %v2604 = vadd.f32 0.0, %v2603
        %v2605 = vpop.f32.mrf.mxu0
        %v2606 = vadd.f32 0.0, %v2605
        %2607 = vmatmul.bf16.gmra.mxu0 %v2395
        %v2608 = vpop.f32.mrf.mxu0
        %v2609 = vadd.f32 0.0, %v2608
        %v2610 = vpop.f32.mrf.mxu0
        %v2611 = vadd.f32 0.0, %v2610
        %2612 = vmatmul.bf16.gmra.mxu0 %v2396
        %v2613 = vpop.f32.mrf.mxu0
        %v2614 = vadd.f32 0.0, %v2613
        %v2615 = vpop.f32.mrf.mxu0
        %v2616 = vadd.f32 0.0, %v2615
        %2617 = vmatmul.bf16.gmra.mxu0 %v2397
        %v2618 = vpop.f32.mrf.mxu0
        %v2619 = vadd.f32 0.0, %v2618
        %v2620 = vpop.f32.mrf.mxu0
        %v2621 = vadd.f32 0.0, %v2620
        %2622 = vmatmul.bf16.gmra.mxu0 %v2398
        %v2623 = vpop.f32.mrf.mxu0
        %v2624 = vadd.f32 0.0, %v2623
        %v2625 = vpop.f32.mrf.mxu0
        %v2626 = vadd.f32 0.0, %v2625
        %2627 = vmatmul.bf16.gmra.mxu0 %v2399
        %v2628 = vpop.f32.mrf.mxu0
        %v2629 = vadd.f32 0.0, %v2628
        %v2630 = vpop.f32.mrf.mxu0
        %v2631 = vadd.f32 0.0, %v2630
        %2632 = vmatmul.bf16.gmra.mxu0 %v2400
        %v2633 = vpop.f32.mrf.mxu0
        %v2634 = vadd.f32 0.0, %v2633
        %v2635 = vpop.f32.mrf.mxu0
        %v2636 = vadd.f32 0.0, %v2635
        %2637 = vmatmul.bf16.gmra.mxu0 %v2401
        %v2638 = vpop.f32.mrf.mxu0
        %v2639 = vadd.f32 0.0, %v2638
        %v2640 = vpop.f32.mrf.mxu0
        %v2641 = vadd.f32 0.0, %v2640
        %2642 = vmatmul.bf16.gmra.mxu0 %v2402
        %v2643 = vpop.f32.mrf.mxu0
        %v2644 = vadd.f32 0.0, %v2643
        %v2645 = vpop.f32.mrf.mxu0
        %v2646 = vadd.f32 0.0, %v2645
        %2647 = vmatmul.bf16.gmra.mxu0 %v2403
        %v2648 = vpop.f32.mrf.mxu0
        %v2649 = vadd.f32 0.0, %v2648
        %v2650 = vpop.f32.mrf.mxu0
        %v2651 = vadd.f32 0.0, %v2650
        %2652 = vmatmul.bf16.gmra.mxu0 %v2404
        %v2653 = vpop.f32.mrf.mxu0
        %v2654 = vadd.f32 0.0, %v2653
        %v2655 = vpop.f32.mrf.mxu0
        %v2656 = vadd.f32 0.0, %v2655
        %2657 = vmatmul.bf16.gmra.mxu0 %v2405
        %v2658 = vpop.f32.mrf.mxu0
        %v2659 = vadd.f32 0.0, %v2658
        %v2660 = vpop.f32.mrf.mxu0
        %v2661 = vadd.f32 0.0, %v2660
        %2662 = vmatmul.bf16.gmra.mxu0 %v2406
        %v2663 = vpop.f32.mrf.mxu0
        %v2664 = vadd.f32 0.0, %v2663
        %v2665 = vpop.f32.mrf.mxu0
        %v2666 = vadd.f32 0.0, %v2665
        %2667 = vmatmul.bf16.gmra.mxu0 %v2407
        %v2668 = vpop.f32.mrf.mxu0
        %v2669 = vadd.f32 0.0, %v2668
        %v2670 = vpop.f32.mrf.mxu0
        %v2671 = vadd.f32 0.0, %v2670
        %2672 = vmatmul.bf16.gmra.mxu0 %v2408
        %v2673 = vpop.f32.mrf.mxu0
        %v2674 = vadd.f32 0.0, %v2673
        %v2675 = vpop.f32.mrf.mxu0
        %v2676 = vadd.f32 0.0, %v2675
        %2677 = vmatmul.bf16.gmra.mxu0 %v2409
        %v2678 = vpop.f32.mrf.mxu0
        %v2679 = vadd.f32 0.0, %v2678
        %v2680 = vpop.f32.mrf.mxu0
        %v2681 = vadd.f32 0.0, %v2680
        %2682 = vmatmul.bf16.gmra.mxu0 %v2410
        %v2683 = vpop.f32.mrf.mxu0
        %v2684 = vadd.f32 0.0, %v2683
        %v2685 = vpop.f32.mrf.mxu0
        %v2686 = vadd.f32 0.0, %v2685
        %2687 = vmatmul.bf16.gmra.mxu0 %v2411
        %v2688 = vpop.f32.mrf.mxu0
        %v2689 = vadd.f32 0.0, %v2688
        %v2690 = vpop.f32.mrf.mxu0
        %v2691 = vadd.f32 0.0, %v2690
        %2692 = vmatmul.bf16.gmra.mxu0 %v2412
        %v2693 = vpop.f32.mrf.mxu0
        %v2694 = vadd.f32 0.0, %v2693
        %v2695 = vpop.f32.mrf.mxu0
        %v2696 = vadd.f32 0.0, %v2695
        %2697 = vmatmul.bf16.gmra.mxu0 %v2413
        %v2698 = vpop.f32.mrf.mxu0
        %v2699 = vadd.f32 0.0, %v2698
        %v2700 = vpop.f32.mrf.mxu0
        %v2701 = vadd.f32 0.0, %v2700
        %2702 = vmatmul.bf16.gmra.mxu0 %v2414
        %v2703 = vpop.f32.mrf.mxu0
        %v2704 = vadd.f32 0.0, %v2703
        %v2705 = vpop.f32.mrf.mxu0
        %v2706 = vadd.f32 0.0, %v2705
        %2707 = vmatmul.bf16.gmra.mxu0 %v2415
        %v2708 = vpop.f32.mrf.mxu0
        %v2709 = vadd.f32 0.0, %v2708
        %v2710 = vpop.f32.mrf.mxu0
        %v2711 = vadd.f32 0.0, %v2710
        %2712 = vmatmul.bf16.gmra.mxu0 %v2416
        %v2713 = vpop.f32.mrf.mxu0
        %v2714 = vadd.f32 0.0, %v2713
        %v2715 = vpop.f32.mrf.mxu0
        %v2716 = vadd.f32 0.0, %v2715
        %2717 = vmatmul.bf16.gmra.mxu0 %v2417
        %v2718 = vpop.f32.mrf.mxu0
        %v2719 = vadd.f32 0.0, %v2718
        %v2720 = vpop.f32.mrf.mxu0
        %v2721 = vadd.f32 0.0, %v2720
        %2722 = vmatmul.bf16.gmra.mxu0 %v2418
        %v2723 = vpop.f32.mrf.mxu0
        %v2724 = vadd.f32 0.0, %v2723
        %v2725 = vpop.f32.mrf.mxu0
        %v2726 = vadd.f32 0.0, %v2725
        %2727 = vmatmul.bf16.gmra.mxu0 %v2419
        %v2728 = vpop.f32.mrf.mxu0
        %v2729 = vadd.f32 0.0, %v2728
        %v2730 = vpop.f32.mrf.mxu0
        %v2731 = vadd.f32 0.0, %v2730
        %2732 = vmatmul.bf16.gmra.mxu0 %v2420
        %v2733 = vpop.f32.mrf.mxu0
        %v2734 = vadd.f32 0.0, %v2733
        %v2735 = vpop.f32.mrf.mxu0
        %v2736 = vadd.f32 0.0, %v2735
        %2737 = vmatmul.bf16.gmra.mxu0 %v2421
        %v2738 = vpop.f32.mrf.mxu0
        %v2739 = vadd.f32 0.0, %v2738
        %v2740 = vpop.f32.mrf.mxu0
        %v2741 = vadd.f32 0.0, %v2740
        %2742 = vmatmul.bf16.gmra.mxu0 %v2422
        %v2743 = vpop.f32.mrf.mxu0
        %v2744 = vadd.f32 0.0, %v2743
        %v2745 = vpop.f32.mrf.mxu0
        %v2746 = vadd.f32 0.0, %v2745
        %2747 = vmatmul.bf16.gmra.mxu0 %v2423
        %v2748 = vpop.f32.mrf.mxu0
        %v2749 = vadd.f32 0.0, %v2748
        %v2750 = vpop.f32.mrf.mxu0
        %v2751 = vadd.f32 0.0, %v2750
        %2752 = vmatmul.bf16.gmra.mxu0 %v2424
        %v2753 = vpop.f32.mrf.mxu0
        %v2754 = vadd.f32 0.0, %v2753
        %v2755 = vpop.f32.mrf.mxu0
        %v2756 = vadd.f32 0.0, %v2755
        %2757 = vmatmul.bf16.gmra.mxu0 %v2425
        %v2758 = vpop.f32.mrf.mxu0
        %v2759 = vadd.f32 0.0, %v2758
        %v2760 = vpop.f32.mrf.mxu0
        %v2761 = vadd.f32 0.0, %v2760
        %2762 = vmatmul.bf16.gmra.mxu0 %v2426
        %v2763 = vpop.f32.mrf.mxu0
        %v2764 = vadd.f32 0.0, %v2763
        %v2765 = vpop.f32.mrf.mxu0
        %v2766 = vadd.f32 0.0, %v2765
        %2767 = vmatmul.bf16.gmra.mxu0 %v2427
        %v2768 = vpop.f32.mrf.mxu0
        %v2769 = vadd.f32 0.0, %v2768
        %v2770 = vpop.f32.mrf.mxu0
        %v2771 = vadd.f32 0.0, %v2770
        %2772 = vmatmul.bf16.gmra.mxu0 %v2428
        %v2773 = vpop.f32.mrf.mxu0
        %v2774 = vadd.f32 0.0, %v2773
        %v2775 = vpop.f32.mrf.mxu0
        %v2776 = vadd.f32 0.0, %v2775
        %2777 = vmatmul.bf16.gmra.mxu0 %v2429
        %v2778 = vpop.f32.mrf.mxu0
        %v2779 = vadd.f32 0.0, %v2778
        %v2780 = vpop.f32.mrf.mxu0
        %v2781 = vadd.f32 0.0, %v2780
        %2782 = vmatmul.bf16.gmra.mxu0 %v2430
        %v2783 = vpop.f32.mrf.mxu0
        %v2784 = vadd.f32 0.0, %v2783
        %v2785 = vpop.f32.mrf.mxu0
        %v2786 = vadd.f32 0.0, %v2785
        %2787 = vmatmul.bf16.gmra.mxu0 %v2431
        %v2788 = vpop.f32.mrf.mxu0
        %v2789 = vadd.f32 0.0, %v2788
        %v2790 = vpop.f32.mrf.mxu0
        %v2791 = vadd.f32 0.0, %v2790
        %2792 = vmatmul.bf16.gmra.mxu0 %v2432
        %v2793 = vpop.f32.mrf.mxu0
        %v2794 = vadd.f32 0.0, %v2793
        %v2795 = vpop.f32.mrf.mxu0
        %v2796 = vadd.f32 0.0, %v2795
        %2797 = vmatmul.bf16.gmra.mxu0 %v2433
        %v2798 = vpop.f32.mrf.mxu0
        %v2799 = vadd.f32 0.0, %v2798
        %v2800 = vpop.f32.mrf.mxu0
        %v2801 = vadd.f32 0.0, %v2800
        %2802 = vmatmul.bf16.gmra.mxu0 %v2434
        %v2803 = vpop.f32.mrf.mxu0
        %v2804 = vadd.f32 0.0, %v2803
        %v2805 = vpop.f32.mrf.mxu0
        %v2806 = vadd.f32 0.0, %v2805
        %2807 = vmatmul.bf16.gmra.mxu0 %v2435
        %v2808 = vpop.f32.mrf.mxu0
        %v2809 = vadd.f32 0.0, %v2808
        %v2810 = vpop.f32.mrf.mxu0
        %v2811 = vadd.f32 0.0, %v2810
        %2812 = vmatmul.bf16.gmra.mxu0 %v2436
        %v2813 = vpop.f32.mrf.mxu0
        %v2814 = vadd.f32 0.0, %v2813
        %v2815 = vpop.f32.mrf.mxu0
        %v2816 = vadd.f32 0.0, %v2815
        %2817 = vmatmul.bf16.gmra.mxu0 %v2437
        %v2818 = vpop.f32.mrf.mxu0
        %v2819 = vadd.f32 0.0, %v2818
        %v2820 = vpop.f32.mrf.mxu0
        %v2821 = vadd.f32 0.0, %v2820
        %2822 = vmatmul.bf16.gmra.mxu0 %v2438
        %v2823 = vpop.f32.mrf.mxu0
        %v2824 = vadd.f32 0.0, %v2823
        %v2825 = vpop.f32.mrf.mxu0
        %v2826 = vadd.f32 0.0, %v2825
        %2827 = vmatmul.bf16.gmra.mxu0 %v2439
        %v2828 = vpop.f32.mrf.mxu0
        %v2829 = vadd.f32 0.0, %v2828
        %v2830 = vpop.f32.mrf.mxu0
        %v2831 = vadd.f32 0.0, %v2830
        %2832 = vmatmul.bf16.gmra.mxu0 %v2440
        %v2833 = vpop.f32.mrf.mxu0
        %v2834 = vadd.f32 0.0, %v2833
        %v2835 = vpop.f32.mrf.mxu0
        %v2836 = vadd.f32 0.0, %v2835
        %2837 = vmatmul.bf16.gmra.mxu0 %v2441
        %v2838 = vpop.f32.mrf.mxu0
        %v2839 = vadd.f32 0.0, %v2838
        %v2840 = vpop.f32.mrf.mxu0
        %v2841 = vadd.f32 0.0, %v2840
        %2842 = vmatmul.bf16.gmra.mxu0 %v2442
        %v2843 = vpop.f32.mrf.mxu0
        %v2844 = vadd.f32 0.0, %v2843
        %v2845 = vpop.f32.mrf.mxu0
        %v2846 = vadd.f32 0.0, %v2845
        %2847 = vmatmul.bf16.gmra.mxu0 %v2443
        %v2848 = vpop.f32.mrf.mxu0
        %v2849 = vadd.f32 0.0, %v2848
        %v2850 = vpop.f32.mrf.mxu0
        %v2851 = vadd.f32 0.0, %v2850
        %2852 = vmatmul.bf16.gmra.mxu0 %v2444
        %v2853 = vpop.f32.mrf.mxu0
        %v2854 = vadd.f32 0.0, %v2853
        %v2855 = vpop.f32.mrf.mxu0
        %v2856 = vadd.f32 0.0, %v2855
        %2857 = vmatmul.bf16.gmra.mxu0 %v2445
        %v2858 = vpop.f32.mrf.mxu0
        %v2859 = vadd.f32 0.0, %v2858
        %v2860 = vpop.f32.mrf.mxu0
        %v2861 = vadd.f32 0.0, %v2860
        %2862 = vmatmul.bf16.gmra.mxu0 %v2446
        %v2863 = vpop.f32.mrf.mxu0
        %v2864 = vadd.f32 0.0, %v2863
        %v2865 = vpop.f32.mrf.mxu0
        %v2866 = vadd.f32 0.0, %v2865
        %2867 = vmatmul.bf16.gmra.mxu0 %v2447
        %v2868 = vpop.f32.mrf.mxu0
        %v2869 = vadd.f32 0.0, %v2868
        %v2870 = vpop.f32.mrf.mxu0
        %v2871 = vadd.f32 0.0, %v2870
        %2872 = vmatmul.bf16.gmra.mxu0 %v2448
        %v2873 = vpop.f32.mrf.mxu0
        %v2874 = vadd.f32 0.0, %v2873
        %v2875 = vpop.f32.mrf.mxu0
        %v2876 = vadd.f32 0.0, %v2875
        %2877 = vmatmul.bf16.gmra.mxu0 %v2449
        %v2878 = vpop.f32.mrf.mxu0
        %v2879 = vadd.f32 0.0, %v2878
        %v2880 = vpop.f32.mrf.mxu0
        %v2881 = vadd.f32 0.0, %v2880
        %2882 = vmatmul.bf16.gmra.mxu0 %v2450
        %v2883 = vpop.f32.mrf.mxu0
        %v2884 = vadd.f32 0.0, %v2883
        %v2885 = vpop.f32.mrf.mxu0
        %v2886 = vadd.f32 0.0, %v2885
        %2887 = vmatmul.bf16.gmra.mxu0 %v2451
        %v2888 = vpop.f32.mrf.mxu0
        %v2889 = vadd.f32 0.0, %v2888
        %v2890 = vpop.f32.mrf.mxu0
        %v2891 = vadd.f32 0.0, %v2890
        %2892 = vmatmul.bf16.gmra.mxu0 %v2452
        %v2893 = vpop.f32.mrf.mxu0
        %v2894 = vadd.f32 0.0, %v2893
        %v2895 = vpop.f32.mrf.mxu0
        %v2896 = vadd.f32 0.0, %v2895
        %2897 = vmatmul.bf16.gmra.mxu0 %v2453
        %v2898 = vpop.f32.mrf.mxu0
        %v2899 = vadd.f32 0.0, %v2898
        %v2900 = vpop.f32.mrf.mxu0
        %v2901 = vadd.f32 0.0, %v2900
        %2902 = vmatmul.bf16.gmra.mxu0 %v2454
        %v2903 = vpop.f32.mrf.mxu0
        %v2904 = vadd.f32 0.0, %v2903
        %v2905 = vpop.f32.mrf.mxu0
        %v2906 = vadd.f32 0.0, %v2905
        %2907 = vmatmul.bf16.gmra.mxu0 %v2455
        %v2908 = vpop.f32.mrf.mxu0
        %v2909 = vadd.f32 0.0, %v2908
        %v2910 = vpop.f32.mrf.mxu0
        %v2911 = vadd.f32 0.0, %v2910
        %2912 = vmatmul.bf16.gmra.mxu0 %v2456
        %v2913 = vpop.f32.mrf.mxu0
        %v2914 = vadd.f32 0.0, %v2913
        %v2915 = vpop.f32.mrf.mxu0
        %v2916 = vadd.f32 0.0, %v2915
        %2917 = vmatmul.bf16.gmra.mxu0 %v2457
        %v2918 = vpop.f32.mrf.mxu0
        %v2919 = vadd.f32 0.0, %v2918
        %v2920 = vpop.f32.mrf.mxu0
        %v2921 = vadd.f32 0.0, %v2920
        %2922 = vmatmul.bf16.gmra.mxu0 %v2458
        %v2923 = vpop.f32.mrf.mxu0
        %v2924 = vadd.f32 0.0, %v2923
        %v2925 = vpop.f32.mrf.mxu0
        %v2926 = vadd.f32 0.0, %v2925
        %2927 = vmatmul.bf16.gmra.mxu0 %v2459
        %v2928 = vpop.f32.mrf.mxu0
        %v2929 = vadd.f32 0.0, %v2928
        %v2930 = vpop.f32.mrf.mxu0
        %v2931 = vadd.f32 0.0, %v2930
        %2932 = vmatmul.bf16.gmra.mxu0 %v2460
        %v2933 = vpop.f32.mrf.mxu0
        %v2934 = vadd.f32 0.0, %v2933
        %v2935 = vpop.f32.mrf.mxu0
        %v2936 = vadd.f32 0.0, %v2935
        %2937 = vmatmul.bf16.gmra.mxu0 %v2461
        %v2938 = vpop.f32.mrf.mxu0
        %v2939 = vadd.f32 0.0, %v2938
        %v2940 = vpop.f32.mrf.mxu0
        %v2941 = vadd.f32 0.0, %v2940
        %2942 = vmatmul.bf16.gmra.mxu0 %v2462
        %v2943 = vpop.f32.mrf.mxu0
        %v2944 = vadd.f32 0.0, %v2943
        %v2945 = vpop.f32.mrf.mxu0
        %v2946 = vadd.f32 0.0, %v2945
        %2947 = vmatmul.bf16.gmra.mxu0 %v2463
        %v2948 = vpop.f32.mrf.mxu0
        %v2949 = vadd.f32 0.0, %v2948
        %v2950 = vpop.f32.mrf.mxu0
        %v2951 = vadd.f32 0.0, %v2950
        %2952 = vmatmul.bf16.gmra.mxu0 %v2464
        %v2953 = vpop.f32.mrf.mxu0
        %v2954 = vadd.f32 0.0, %v2953
        %v2955 = vpop.f32.mrf.mxu0
        %v2956 = vadd.f32 0.0, %v2955
        %2957 = vmatmul.bf16.gmra.mxu0 %v2465
        %v2958 = vpop.f32.mrf.mxu0
        %v2959 = vadd.f32 0.0, %v2958
        %v2960 = vpop.f32.mrf.mxu0
        %v2961 = vadd.f32 0.0, %v2960
        %2962 = vmatmul.bf16.gmra.mxu0 %v2466
        %v2963 = vpop.f32.mrf.mxu0
        %v2964 = vadd.f32 0.0, %v2963
        %v2965 = vpop.f32.mrf.mxu0
        %v2966 = vadd.f32 0.0, %v2965
        %2967 = vmatmul.bf16.gmra.mxu0 %v2467
        %v2968 = vpop.f32.mrf.mxu0
        %v2969 = vadd.f32 0.0, %v2968
        %v2970 = vpop.f32.mrf.mxu0
        %v2971 = vadd.f32 0.0, %v2970
        %2972 = vmatmul.bf16.gmra.mxu0 %v2468
        %v2973 = vpop.f32.mrf.mxu0
        %v2974 = vadd.f32 0.0, %v2973
        %v2975 = vpop.f32.mrf.mxu0
        %v2976 = vadd.f32 0.0, %v2975
        %2977 = vmatmul.bf16.gmra.mxu0 %v2469
        %v2978 = vpop.f32.mrf.mxu0
        %v2979 = vadd.f32 0.0, %v2978
        %v2980 = vpop.f32.mrf.mxu0
        %v2981 = vadd.f32 0.0, %v2980
        %2982 = vmatmul.bf16.gmra.mxu0 %v2470
        %v2983 = vpop.f32.mrf.mxu0
        %v2984 = vadd.f32 0.0, %v2983
        %v2985 = vpop.f32.mrf.mxu0
        %v2986 = vadd.f32 0.0, %v2985
        %2987 = vmatmul.bf16.gmra.mxu0 %v2471
        %v2988 = vpop.f32.mrf.mxu0
        %v2989 = vadd.f32 0.0, %v2988
        %v2990 = vpop.f32.mrf.mxu0
        %v2991 = vadd.f32 0.0, %v2990
        %2992 = vmatmul.bf16.gmra.mxu0 %v2472
        %v2993 = vpop.f32.mrf.mxu0
        %v2994 = vadd.f32 0.0, %v2993
        %v2995 = vpop.f32.mrf.mxu0
        %v2996 = vadd.f32 0.0, %v2995
        %2997 = vmatmul.bf16.gmra.mxu0 %v2473
        %v2998 = vpop.f32.mrf.mxu0
        %v2999 = vadd.f32 0.0, %v2998
        %v3000 = vpop.f32.mrf.mxu0
        %v3001 = vadd.f32 0.0, %v3000
        %3002 = vmatmul.bf16.gmra.mxu0 %v2474
        %v3003 = vpop.f32.mrf.mxu0
        %v3004 = vadd.f32 0.0, %v3003
        %v3005 = vpop.f32.mrf.mxu0
        %v3006 = vadd.f32 0.0, %v3005
        %3007 = vmatmul.bf16.gmra.mxu0 %v2475
        %v3008 = vpop.f32.mrf.mxu0
        %v3009 = vadd.f32 0.0, %v3008
        %v3010 = vpop.f32.mrf.mxu0
        %v3011 = vadd.f32 0.0, %v3010
        %3012 = vmatmul.bf16.gmra.mxu0 %v2476
        %v3013 = vpop.f32.mrf.mxu0
        %v3014 = vadd.f32 0.0, %v3013
        %v3015 = vpop.f32.mrf.mxu0
        %v3016 = vadd.f32 0.0, %v3015
        %3017 = vmatmul.bf16.gmra.mxu0 %v2477
        %v3018 = vpop.f32.mrf.mxu0
        %v3019 = vadd.f32 0.0, %v3018
        %v3020 = vpop.f32.mrf.mxu0
        %v3021 = vadd.f32 0.0, %v3020
        %3022 = vmatmul.bf16.gmra.mxu0 %v2478
        %v3023 = vpop.f32.mrf.mxu0
        %v3024 = vadd.f32 0.0, %v3023
        %v3025 = vpop.f32.mrf.mxu0
        %v3026 = vadd.f32 0.0, %v3025
        %3027 = vmatmul.bf16.gmra.mxu0 %v2479
        %v3028 = vpop.f32.mrf.mxu0
        %v3029 = vadd.f32 0.0, %v3028
        %v3030 = vpop.f32.mrf.mxu0
        %v3031 = vadd.f32 0.0, %v3030
        %3032 = vmatmul.bf16.gmra.mxu0 %v2480
        %v3033 = vpop.f32.mrf.mxu0
        %v3034 = vadd.f32 0.0, %v3033
        %v3035 = vpop.f32.mrf.mxu0
        %v3036 = vadd.f32 0.0, %v3035
        %3037 = vmatmul.bf16.gmra.mxu0 %v2481
        %v3038 = vpop.f32.mrf.mxu0
        %v3039 = vadd.f32 0.0, %v3038
        %v3040 = vpop.f32.mrf.mxu0
        %v3041 = vadd.f32 0.0, %v3040
        %3042 = vmatmul.bf16.gmra.mxu0 %v2482
        %v3043 = vpop.f32.mrf.mxu0
        %v3044 = vadd.f32 0.0, %v3043
        %v3045 = vpop.f32.mrf.mxu0
        %v3046 = vadd.f32 0.0, %v3045
        %3047 = vmatmul.bf16.gmra.mxu0 %v2483
        %v3048 = vpop.f32.mrf.mxu0
        %v3049 = vadd.f32 0.0, %v3048
        %v3050 = vpop.f32.mrf.mxu0
        %v3051 = vadd.f32 0.0, %v3050
        %3052 = vmatmul.bf16.gmra.mxu0 %v2484
        %v3053 = vpop.f32.mrf.mxu0
        %v3054 = vadd.f32 0.0, %v3053
        %v3055 = vpop.f32.mrf.mxu0
        %v3056 = vadd.f32 0.0, %v3055
        %3057 = vmatmul.bf16.gmra.mxu0 %v2485
        %v3058 = vpop.f32.mrf.mxu0
        %v3059 = vadd.f32 0.0, %v3058
        %v3060 = vpop.f32.mrf.mxu0
        %v3061 = vadd.f32 0.0, %v3060
        %3062 = vmatmul.bf16.gmra.mxu0 %v2486
        %v3063 = vpop.f32.mrf.mxu0
        %v3064 = vadd.f32 0.0, %v3063
        %v3065 = vpop.f32.mrf.mxu0
        %v3066 = vadd.f32 0.0, %v3065
        %3067 = vmatmul.bf16.gmra.mxu0 %v2487
        %v3068 = vpop.f32.mrf.mxu0
        %v3069 = vadd.f32 0.0, %v3068
        %v3070 = vpop.f32.mrf.mxu0
        %v3071 = vadd.f32 0.0, %v3070
        %3072 = vmatmul.bf16.gmra.mxu0 %v2488
        %v3073 = vpop.f32.mrf.mxu0
        %v3074 = vadd.f32 0.0, %v3073
        %v3075 = vpop.f32.mrf.mxu0
        %v3076 = vadd.f32 0.0, %v3075
        %3077 = vmatmul.bf16.gmra.mxu0 %v2489
        %v3078 = vpop.f32.mrf.mxu0
        %v3079 = vadd.f32 0.0, %v3078
        %v3080 = vpop.f32.mrf.mxu0
        %v3081 = vadd.f32 0.0, %v3080
        %3082 = vmatmul.bf16.gmra.mxu0 %v2490
        %v3083 = vpop.f32.mrf.mxu0
        %v3084 = vadd.f32 0.0, %v3083
        %v3085 = vpop.f32.mrf.mxu0
        %v3086 = vadd.f32 0.0, %v3085
        %3087 = vmatmul.bf16.gmra.mxu0 %v2491
        %v3088 = vpop.f32.mrf.mxu0
        %v3089 = vadd.f32 0.0, %v3088
        %v3090 = vpop.f32.mrf.mxu0
        %v3091 = vadd.f32 0.0, %v3090
        %3092 = vmatmul.bf16.gmra.mxu0 %v2492
        %v3093 = vpop.f32.mrf.mxu0
        %v3094 = vadd.f32 0.0, %v3093
        %v3095 = vpop.f32.mrf.mxu0
        %v3096 = vadd.f32 0.0, %v3095
        %3097 = vmatmul.bf16.gmra.mxu0 %v2493
        %v3098 = vpop.f32.mrf.mxu0
        %v3099 = vadd.f32 0.0, %v3098
        %v3100 = vpop.f32.mrf.mxu0
        %v3101 = vadd.f32 0.0, %v3100
        %3102 = vmatmul.bf16.gmra.mxu0 %v2494
        %v3103 = vpop.f32.mrf.mxu0
        %v3104 = vadd.f32 0.0, %v3103
        %v3105 = vpop.f32.mrf.mxu0
        %v3106 = vadd.f32 0.0, %v3105
        %3107 = vmatmul.bf16.gmra.mxu0 %v2495
        %v3108 = vpop.f32.mrf.mxu0
        %v3109 = vadd.f32 0.0, %v3108
        %v3110 = vpop.f32.mrf.mxu0
        %v3111 = vadd.f32 0.0, %v3110
        %3112 = vmatmul.bf16.gmra.mxu0 %v2496
        %v3113 = vpop.f32.mrf.mxu0
        %v3114 = vadd.f32 0.0, %v3113
        %v3115 = vpop.f32.mrf.mxu0
        %v3116 = vadd.f32 0.0, %v3115
        %3117 = vmatmul.bf16.gmra.mxu0 %v2497
        %v3118 = vpop.f32.mrf.mxu0
        %v3119 = vadd.f32 0.0, %v3118
        %v3120 = vpop.f32.mrf.mxu0
        %v3121 = vadd.f32 0.0, %v3120
        %3122 = vmatmul.bf16.gmra.mxu0 %v2498
        %v3123 = vpop.f32.mrf.mxu0
        %v3124 = vadd.f32 0.0, %v3123
        %v3125 = vpop.f32.mrf.mxu0
        %v3126 = vadd.f32 0.0, %v3125
        %3127 = vmatmul.bf16.gmra.mxu0 %v2499
        %v3128 = vpop.f32.mrf.mxu0
        %v3129 = vadd.f32 0.0, %v3128
        %v3130 = vpop.f32.mrf.mxu0
        %v3131 = vadd.f32 0.0, %v3130
        %3132 = vmatmul.bf16.gmra.mxu0 %v2500
        %v3133 = vpop.f32.mrf.mxu0
        %v3134 = vadd.f32 0.0, %v3133
        %v3135 = vpop.f32.mrf.mxu0
        %v3136 = vadd.f32 0.0, %v3135
        %3137 = vmatmul.bf16.gmra.mxu0 %v2501
        %v3138 = vpop.f32.mrf.mxu0
        %v3139 = vadd.f32 0.0, %v3138
        %v3140 = vpop.f32.mrf.mxu0
        %v3141 = vadd.f32 0.0, %v3140
        %3142 = vmatmul.bf16.gmra.mxu0 %v2502
        %v3143 = vpop.f32.mrf.mxu0
        %v3144 = vadd.f32 0.0, %v3143
        %v3145 = vpop.f32.mrf.mxu0
        %v3146 = vadd.f32 0.0, %v3145
        %3147 = vmatmul.bf16.gmra.mxu0 %v2503
        %v3148 = vpop.f32.mrf.mxu0
        %v3149 = vadd.f32 0.0, %v3148
        %v3150 = vpop.f32.mrf.mxu0
        %v3151 = vadd.f32 0.0, %v3150
        %3152 = vmatmul.bf16.gmra.mxu0 %v2504
        %v3153 = vpop.f32.mrf.mxu0
        %v3154 = vadd.f32 0.0, %v3153
        %v3155 = vpop.f32.mrf.mxu0
        %v3156 = vadd.f32 0.0, %v3155
        %3157 = vmatmul.bf16.gmra.mxu0 %v2505
        %v3158 = vpop.f32.mrf.mxu0
        %v3159 = vadd.f32 0.0, %v3158
        %v3160 = vpop.f32.mrf.mxu0
        %v3161 = vadd.f32 0.0, %v3160
        %3162 = vmatmul.bf16.gmra.mxu0 %v2506
        %v3163 = vpop.f32.mrf.mxu0
        %v3164 = vadd.f32 0.0, %v3163
        %v3165 = vpop.f32.mrf.mxu0
        %v3166 = vadd.f32 0.0, %v3165
        %3167 = vmatmul.bf16.gmra.mxu0 %v2507
        %v3168 = vpop.f32.mrf.mxu0
        %v3169 = vadd.f32 0.0, %v3168
        %v3170 = vpop.f32.mrf.mxu0
        %v3171 = vadd.f32 0.0, %v3170
        %3172 = vmatmul.bf16.gmra.mxu0 %v2508
        %v3173 = vpop.f32.mrf.mxu0
        %v3174 = vadd.f32 0.0, %v3173
        %v3175 = vpop.f32.mrf.mxu0
        %v3176 = vadd.f32 0.0, %v3175
        %3177 = vmatmul.bf16.gmra.mxu0 %v2509
        %v3178 = vpop.f32.mrf.mxu0
        %v3179 = vadd.f32 0.0, %v3178
        %v3180 = vpop.f32.mrf.mxu0
        %v3181 = vadd.f32 0.0, %v3180
        %3182 = vmatmul.bf16.gmra.mxu0 %v2510
        %v3183 = vpop.f32.mrf.mxu0
        %v3184 = vadd.f32 0.0, %v3183
        %v3185 = vpop.f32.mrf.mxu0
        %v3186 = vadd.f32 0.0, %v3185
        %3187 = vmatmul.bf16.gmra.mxu0 %v2511
        %v3188 = vpop.f32.mrf.mxu0
        %v3189 = vadd.f32 0.0, %v3188
        %v3190 = vpop.f32.mrf.mxu0
        %v3191 = vadd.f32 0.0, %v3190
        %3192 = vmatmul.bf16.gmra.mxu0 %v2512
        %v3193 = vpop.f32.mrf.mxu0
        %v3194 = vadd.f32 0.0, %v3193
        %v3195 = vpop.f32.mrf.mxu0
        %v3196 = vadd.f32 0.0, %v3195
        %3197 = vmatmul.bf16.gmra.mxu0 %v2513
        %v3198 = vpop.f32.mrf.mxu0
        %v3199 = vadd.f32 0.0, %v3198
        %v3200 = vpop.f32.mrf.mxu0
        %v3201 = vadd.f32 0.0, %v3200
        %3202 = vmatmul.bf16.gmra.mxu0 %v2514
        %v3203 = vpop.f32.mrf.mxu0
        %v3204 = vadd.f32 0.0, %v3203
        %v3205 = vpop.f32.mrf.mxu0
        %v3206 = vadd.f32 0.0, %v3205
        %3207 = vmatmul.bf16.gmra.mxu0 %v2515
        %v3208 = vpop.f32.mrf.mxu0
        %v3209 = vadd.f32 0.0, %v3208
        %v3210 = vpop.f32.mrf.mxu0
        %v3211 = vadd.f32 0.0, %v3210
        %3212 = vmatmul.bf16.gmra.mxu0 %v2516
        %v3213 = vpop.f32.mrf.mxu0
        %v3214 = vadd.f32 0.0, %v3213
        %v3215 = vpop.f32.mrf.mxu0
        %v3216 = vadd.f32 0.0, %v3215
        %3217 = vmatmul.bf16.gmra.mxu0 %v2517
        %v3218 = vpop.f32.mrf.mxu0
        %v3219 = vadd.f32 0.0, %v3218
        %v3220 = vpop.f32.mrf.mxu0
        %v3221 = vadd.f32 0.0, %v3220
        %3222 = vmatmul.bf16.gmra.mxu0 %v2518
        %v3223 = vpop.f32.mrf.mxu0
        %v3224 = vadd.f32 0.0, %v3223
        %v3225 = vpop.f32.mrf.mxu0
        %v3226 = vadd.f32 0.0, %v3225
        %3227 = vmatmul.bf16.gmra.mxu0 %v2519
        %v3228 = vpop.f32.mrf.mxu0
        %v3229 = vadd.f32 0.0, %v3228
        %v3230 = vpop.f32.mrf.mxu0
        %v3231 = vadd.f32 0.0, %v3230
        %3232 = vdwg.mxu0
        %v3233 = vmax.f32 %v2594, 0.0
        %v3234 = vmax.f32 %v2596, 0.0
        %v3235 = vmax.f32 %v2599, 0.0
        %v3236 = vmax.f32 %v2601, 0.0
        %v3237 = vmax.f32 %v2604, 0.0
        %v3238 = vmax.f32 %v2606, 0.0
        %v3239 = vmax.f32 %v2609, 0.0
        %v3240 = vmax.f32 %v2611, 0.0
        %v3241 = vmax.f32 %v2614, 0.0
        %v3242 = vmax.f32 %v2616, 0.0
        %v3243 = vmax.f32 %v2619, 0.0
        %v3244 = vmax.f32 %v2621, 0.0
        %v3245 = vmax.f32 %v2624, 0.0
        %v3246 = vmax.f32 %v2626, 0.0
        %v3247 = vmax.f32 %v2629, 0.0
        %v3248 = vmax.f32 %v2631, 0.0
        %v3249 = vmax.f32 %v2634, 0.0
        %v3250 = vmax.f32 %v2636, 0.0
        %v3251 = vmax.f32 %v2639, 0.0
        %v3252 = vmax.f32 %v2641, 0.0
        %v3253 = vmax.f32 %v2644, 0.0
        %v3254 = vmax.f32 %v2646, 0.0
        %v3255 = vmax.f32 %v2649, 0.0
        %v3256 = vmax.f32 %v2651, 0.0
        %v3257 = vmax.f32 %v2654, 0.0
        %v3258 = vmax.f32 %v2656, 0.0
        %v3259 = vmax.f32 %v2659, 0.0
        %v3260 = vmax.f32 %v2661, 0.0
        %v3261 = vmax.f32 %v2664, 0.0
        %v3262 = vmax.f32 %v2666, 0.0
        %v3263 = vmax.f32 %v2669, 0.0
        %v3264 = vmax.f32 %v2671, 0.0
        %v3265 = vmax.f32 %v2674, 0.0
        %v3266 = vmax.f32 %v2676, 0.0
        %v3267 = vmax.f32 %v2679, 0.0
        %v3268 = vmax.f32 %v2681, 0.0
        %v3269 = vmax.f32 %v2684, 0.0
        %v3270 = vmax.f32 %v2686, 0.0
        %v3271 = vmax.f32 %v2689, 0.0
        %v3272 = vmax.f32 %v2691, 0.0
        %v3273 = vmax.f32 %v2694, 0.0
        %v3274 = vmax.f32 %v2696, 0.0
        %v3275 = vmax.f32 %v2699, 0.0
        %v3276 = vmax.f32 %v2701, 0.0
        %v3277 = vmax.f32 %v2704, 0.0
        %v3278 = vmax.f32 %v2706, 0.0
        %v3279 = vmax.f32 %v2709, 0.0
        %v3280 = vmax.f32 %v2711, 0.0
        %v3281 = vmax.f32 %v2714, 0.0
        %v3282 = vmax.f32 %v2716, 0.0
        %v3283 = vmax.f32 %v2719, 0.0
        %v3284 = vmax.f32 %v2721, 0.0
        %v3285 = vmax.f32 %v2724, 0.0
        %v3286 = vmax.f32 %v2726, 0.0
        %v3287 = vmax.f32 %v2729, 0.0
        %v3288 = vmax.f32 %v2731, 0.0
        %v3289 = vmax.f32 %v2734, 0.0
        %v3290 = vmax.f32 %v2736, 0.0
        %v3291 = vmax.f32 %v2739, 0.0
        %v3292 = vmax.f32 %v2741, 0.0
        %v3293 = vmax.f32 %v2744, 0.0
        %v3294 = vmax.f32 %v2746, 0.0
        %v3295 = vmax.f32 %v2749, 0.0
        %v3296 = vmax.f32 %v2751, 0.0
        %v3297 = vmax.f32 %v2754, 0.0
        %v3298 = vmax.f32 %v2756, 0.0
        %v3299 = vmax.f32 %v2759, 0.0
        %v3300 = vmax.f32 %v2761, 0.0
        %v3301 = vmax.f32 %v2764, 0.0
        %v3302 = vmax.f32 %v2766, 0.0
        %v3303 = vmax.f32 %v2769, 0.0
        %v3304 = vmax.f32 %v2771, 0.0
        %v3305 = vmax.f32 %v2774, 0.0
        %v3306 = vmax.f32 %v2776, 0.0
        %v3307 = vmax.f32 %v2779, 0.0
        %v3308 = vmax.f32 %v2781, 0.0
        %v3309 = vmax.f32 %v2784, 0.0
        %v3310 = vmax.f32 %v2786, 0.0
        %v3311 = vmax.f32 %v2789, 0.0
        %v3312 = vmax.f32 %v2791, 0.0
        %v3313 = vmax.f32 %v2794, 0.0
        %v3314 = vmax.f32 %v2796, 0.0
        %v3315 = vmax.f32 %v2799, 0.0
        %v3316 = vmax.f32 %v2801, 0.0
        %v3317 = vmax.f32 %v2804, 0.0
        %v3318 = vmax.f32 %v2806, 0.0
        %v3319 = vmax.f32 %v2809, 0.0
        %v3320 = vmax.f32 %v2811, 0.0
        %v3321 = vmax.f32 %v2814, 0.0
        %v3322 = vmax.f32 %v2816, 0.0
        %v3323 = vmax.f32 %v2819, 0.0
        %v3324 = vmax.f32 %v2821, 0.0
        %v3325 = vmax.f32 %v2824, 0.0
        %v3326 = vmax.f32 %v2826, 0.0
        %v3327 = vmax.f32 %v2829, 0.0
        %v3328 = vmax.f32 %v2831, 0.0
        %v3329 = vmax.f32 %v2834, 0.0
        %v3330 = vmax.f32 %v2836, 0.0
        %v3331 = vmax.f32 %v2839, 0.0
        %v3332 = vmax.f32 %v2841, 0.0
        %v3333 = vmax.f32 %v2844, 0.0
        %v3334 = vmax.f32 %v2846, 0.0
        %v3335 = vmax.f32 %v2849, 0.0
        %v3336 = vmax.f32 %v2851, 0.0
        %v3337 = vmax.f32 %v2854, 0.0
        %v3338 = vmax.f32 %v2856, 0.0
        %v3339 = vmax.f32 %v2859, 0.0
        %v3340 = vmax.f32 %v2861, 0.0
        %v3341 = vmax.f32 %v2864, 0.0
        %v3342 = vmax.f32 %v2866, 0.0
        %v3343 = vmax.f32 %v2869, 0.0
        %v3344 = vmax.f32 %v2871, 0.0
        %v3345 = vmax.f32 %v2874, 0.0
        %v3346 = vmax.f32 %v2876, 0.0
        %v3347 = vmax.f32 %v2879, 0.0
        %v3348 = vmax.f32 %v2881, 0.0
        %v3349 = vmax.f32 %v2884, 0.0
        %v3350 = vmax.f32 %v2886, 0.0
        %v3351 = vmax.f32 %v2889, 0.0
        %v3352 = vmax.f32 %v2891, 0.0
        %v3353 = vmax.f32 %v2894, 0.0
        %v3354 = vmax.f32 %v2896, 0.0
        %v3355 = vmax.f32 %v2899, 0.0
        %v3356 = vmax.f32 %v2901, 0.0
        %v3357 = vmax.f32 %v2904, 0.0
        %v3358 = vmax.f32 %v2906, 0.0
        %v3359 = vmax.f32 %v2909, 0.0
        %v3360 = vmax.f32 %v2911, 0.0
        %v3361 = vmax.f32 %v2914, 0.0
        %v3362 = vmax.f32 %v2916, 0.0
        %v3363 = vmax.f32 %v2919, 0.0
        %v3364 = vmax.f32 %v2921, 0.0
        %v3365 = vmax.f32 %v2924, 0.0
        %v3366 = vmax.f32 %v2926, 0.0
        %v3367 = vmax.f32 %v2929, 0.0
        %v3368 = vmax.f32 %v2931, 0.0
        %v3369 = vmax.f32 %v2934, 0.0
        %v3370 = vmax.f32 %v2936, 0.0
        %v3371 = vmax.f32 %v2939, 0.0
        %v3372 = vmax.f32 %v2941, 0.0
        %v3373 = vmax.f32 %v2944, 0.0
        %v3374 = vmax.f32 %v2946, 0.0
        %v3375 = vmax.f32 %v2949, 0.0
        %v3376 = vmax.f32 %v2951, 0.0
        %v3377 = vmax.f32 %v2954, 0.0
        %v3378 = vmax.f32 %v2956, 0.0
        %v3379 = vmax.f32 %v2959, 0.0
        %v3380 = vmax.f32 %v2961, 0.0
        %v3381 = vmax.f32 %v2964, 0.0
        %v3382 = vmax.f32 %v2966, 0.0
        %v3383 = vmax.f32 %v2969, 0.0
        %v3384 = vmax.f32 %v2971, 0.0
        %v3385 = vmax.f32 %v2974, 0.0
        %v3386 = vmax.f32 %v2976, 0.0
        %v3387 = vmax.f32 %v2979, 0.0
        %v3388 = vmax.f32 %v2981, 0.0
        %v3389 = vmax.f32 %v2984, 0.0
        %v3390 = vmax.f32 %v2986, 0.0
        %v3391 = vmax.f32 %v2989, 0.0
        %v3392 = vmax.f32 %v2991, 0.0
        %v3393 = vmax.f32 %v2994, 0.0
        %v3394 = vmax.f32 %v2996, 0.0
        %v3395 = vmax.f32 %v2999, 0.0
        %v3396 = vmax.f32 %v3001, 0.0
        %v3397 = vmax.f32 %v3004, 0.0
        %v3398 = vmax.f32 %v3006, 0.0
        %v3399 = vmax.f32 %v3009, 0.0
        %v3400 = vmax.f32 %v3011, 0.0
        %v3401 = vmax.f32 %v3014, 0.0
        %v3402 = vmax.f32 %v3016, 0.0
        %v3403 = vmax.f32 %v3019, 0.0
        %v3404 = vmax.f32 %v3021, 0.0
        %v3405 = vmax.f32 %v3024, 0.0
        %v3406 = vmax.f32 %v3026, 0.0
        %v3407 = vmax.f32 %v3029, 0.0
        %v3408 = vmax.f32 %v3031, 0.0
        %v3409 = vmax.f32 %v3034, 0.0
        %v3410 = vmax.f32 %v3036, 0.0
        %v3411 = vmax.f32 %v3039, 0.0
        %v3412 = vmax.f32 %v3041, 0.0
        %v3413 = vmax.f32 %v3044, 0.0
        %v3414 = vmax.f32 %v3046, 0.0
        %v3415 = vmax.f32 %v3049, 0.0
        %v3416 = vmax.f32 %v3051, 0.0
        %v3417 = vmax.f32 %v3054, 0.0
        %v3418 = vmax.f32 %v3056, 0.0
        %v3419 = vmax.f32 %v3059, 0.0
        %v3420 = vmax.f32 %v3061, 0.0
        %v3421 = vmax.f32 %v3064, 0.0
        %v3422 = vmax.f32 %v3066, 0.0
        %v3423 = vmax.f32 %v3069, 0.0
        %v3424 = vmax.f32 %v3071, 0.0
        %v3425 = vmax.f32 %v3074, 0.0
        %v3426 = vmax.f32 %v3076, 0.0
        %v3427 = vmax.f32 %v3079, 0.0
        %v3428 = vmax.f32 %v3081, 0.0
        %v3429 = vmax.f32 %v3084, 0.0
        %v3430 = vmax.f32 %v3086, 0.0
        %v3431 = vmax.f32 %v3089, 0.0
        %v3432 = vmax.f32 %v3091, 0.0
        %v3433 = vmax.f32 %v3094, 0.0
        %v3434 = vmax.f32 %v3096, 0.0
        %v3435 = vmax.f32 %v3099, 0.0
        %v3436 = vmax.f32 %v3101, 0.0
        %v3437 = vmax.f32 %v3104, 0.0
        %v3438 = vmax.f32 %v3106, 0.0
        %v3439 = vmax.f32 %v3109, 0.0
        %v3440 = vmax.f32 %v3111, 0.0
        %v3441 = vmax.f32 %v3114, 0.0
        %v3442 = vmax.f32 %v3116, 0.0
        %v3443 = vmax.f32 %v3119, 0.0
        %v3444 = vmax.f32 %v3121, 0.0
        %v3445 = vmax.f32 %v3124, 0.0
        %v3446 = vmax.f32 %v3126, 0.0
        %v3447 = vmax.f32 %v3129, 0.0
        %v3448 = vmax.f32 %v3131, 0.0
        %v3449 = vmax.f32 %v3134, 0.0
        %v3450 = vmax.f32 %v3136, 0.0
        %v3451 = vmax.f32 %v3139, 0.0
        %v3452 = vmax.f32 %v3141, 0.0
        %v3453 = vmax.f32 %v3144, 0.0
        %v3454 = vmax.f32 %v3146, 0.0
        %v3455 = vmax.f32 %v3149, 0.0
        %v3456 = vmax.f32 %v3151, 0.0
        %v3457 = vmax.f32 %v3154, 0.0
        %v3458 = vmax.f32 %v3156, 0.0
        %v3459 = vmax.f32 %v3159, 0.0
        %v3460 = vmax.f32 %v3161, 0.0
        %v3461 = vmax.f32 %v3164, 0.0
        %v3462 = vmax.f32 %v3166, 0.0
        %v3463 = vmax.f32 %v3169, 0.0
        %v3464 = vmax.f32 %v3171, 0.0
        %v3465 = vmax.f32 %v3174, 0.0
        %v3466 = vmax.f32 %v3176, 0.0
        %v3467 = vmax.f32 %v3179, 0.0
        %v3468 = vmax.f32 %v3181, 0.0
        %v3469 = vmax.f32 %v3184, 0.0
        %v3470 = vmax.f32 %v3186, 0.0
        %v3471 = vmax.f32 %v3189, 0.0
        %v3472 = vmax.f32 %v3191, 0.0
        %v3473 = vmax.f32 %v3194, 0.0
        %v3474 = vmax.f32 %v3196, 0.0
        %v3475 = vmax.f32 %v3199, 0.0
        %v3476 = vmax.f32 %v3201, 0.0
        %v3477 = vmax.f32 %v3204, 0.0
        %v3478 = vmax.f32 %v3206, 0.0
        %v3479 = vmax.f32 %v3209, 0.0
        %v3480 = vmax.f32 %v3211, 0.0
        %v3481 = vmax.f32 %v3214, 0.0
        %v3482 = vmax.f32 %v3216, 0.0
        %v3483 = vmax.f32 %v3219, 0.0
        %v3484 = vmax.f32 %v3221, 0.0
        %v3485 = vmax.f32 %v3224, 0.0
        %v3486 = vmax.f32 %v3226, 0.0
        %v3487 = vmax.f32 %v3229, 0.0
        %v3488 = vmax.f32 %v3231, 0.0
        %v3489 = vpack.c.bf16 %v3234, %v3233
        %v3490 = vpack.c.bf16 %v3236, %v3235
        %v3491 = vpack.c.bf16 %v3238, %v3237
        %v3492 = vpack.c.bf16 %v3240, %v3239
        %v3493 = vpack.c.bf16 %v3242, %v3241
        %v3494 = vpack.c.bf16 %v3244, %v3243
        %v3495 = vpack.c.bf16 %v3246, %v3245
        %v3496 = vpack.c.bf16 %v3248, %v3247
        %v3497 = vpack.c.bf16 %v3250, %v3249
        %v3498 = vpack.c.bf16 %v3252, %v3251
        %v3499 = vpack.c.bf16 %v3254, %v3253
        %v3500 = vpack.c.bf16 %v3256, %v3255
        %v3501 = vpack.c.bf16 %v3258, %v3257
        %v3502 = vpack.c.bf16 %v3260, %v3259
        %v3503 = vpack.c.bf16 %v3262, %v3261
        %v3504 = vpack.c.bf16 %v3264, %v3263
        %v3505 = vpack.c.bf16 %v3266, %v3265
        %v3506 = vpack.c.bf16 %v3268, %v3267
        %v3507 = vpack.c.bf16 %v3270, %v3269
        %v3508 = vpack.c.bf16 %v3272, %v3271
        %v3509 = vpack.c.bf16 %v3274, %v3273
        %v3510 = vpack.c.bf16 %v3276, %v3275
        %v3511 = vpack.c.bf16 %v3278, %v3277
        %v3512 = vpack.c.bf16 %v3280, %v3279
        %v3513 = vpack.c.bf16 %v3282, %v3281
        %v3514 = vpack.c.bf16 %v3284, %v3283
        %v3515 = vpack.c.bf16 %v3286, %v3285
        %v3516 = vpack.c.bf16 %v3288, %v3287
        %v3517 = vpack.c.bf16 %v3290, %v3289
        %v3518 = vpack.c.bf16 %v3292, %v3291
        %v3519 = vpack.c.bf16 %v3294, %v3293
        %v3520 = vpack.c.bf16 %v3296, %v3295
        %v3521 = vpack.c.bf16 %v3298, %v3297
        %v3522 = vpack.c.bf16 %v3300, %v3299
        %v3523 = vpack.c.bf16 %v3302, %v3301
        %v3524 = vpack.c.bf16 %v3304, %v3303
        %v3525 = vpack.c.bf16 %v3306, %v3305
        %v3526 = vpack.c.bf16 %v3308, %v3307
        %v3527 = vpack.c.bf16 %v3310, %v3309
        %v3528 = vpack.c.bf16 %v3312, %v3311
        %v3529 = vpack.c.bf16 %v3314, %v3313
        %v3530 = vpack.c.bf16 %v3316, %v3315
        %v3531 = vpack.c.bf16 %v3318, %v3317
        %v3532 = vpack.c.bf16 %v3320, %v3319
        %v3533 = vpack.c.bf16 %v3322, %v3321
        %v3534 = vpack.c.bf16 %v3324, %v3323
        %v3535 = vpack.c.bf16 %v3326, %v3325
        %v3536 = vpack.c.bf16 %v3328, %v3327
        %v3537 = vpack.c.bf16 %v3330, %v3329
        %v3538 = vpack.c.bf16 %v3332, %v3331
        %v3539 = vpack.c.bf16 %v3334, %v3333
        %v3540 = vpack.c.bf16 %v3336, %v3335
        %v3541 = vpack.c.bf16 %v3338, %v3337
        %v3542 = vpack.c.bf16 %v3340, %v3339
        %v3543 = vpack.c.bf16 %v3342, %v3341
        %v3544 = vpack.c.bf16 %v3344, %v3343
        %v3545 = vpack.c.bf16 %v3346, %v3345
        %v3546 = vpack.c.bf16 %v3348, %v3347
        %v3547 = vpack.c.bf16 %v3350, %v3349
        %v3548 = vpack.c.bf16 %v3352, %v3351
        %v3549 = vpack.c.bf16 %v3354, %v3353
        %v3550 = vpack.c.bf16 %v3356, %v3355
        %v3551 = vpack.c.bf16 %v3358, %v3357
        %v3552 = vpack.c.bf16 %v3360, %v3359
        %v3553 = vpack.c.bf16 %v3362, %v3361
        %v3554 = vpack.c.bf16 %v3364, %v3363
        %v3555 = vpack.c.bf16 %v3366, %v3365
        %v3556 = vpack.c.bf16 %v3368, %v3367
        %v3557 = vpack.c.bf16 %v3370, %v3369
        %v3558 = vpack.c.bf16 %v3372, %v3371
        %v3559 = vpack.c.bf16 %v3374, %v3373
        %v3560 = vpack.c.bf16 %v3376, %v3375
        %v3561 = vpack.c.bf16 %v3378, %v3377
        %v3562 = vpack.c.bf16 %v3380, %v3379
        %v3563 = vpack.c.bf16 %v3382, %v3381
        %v3564 = vpack.c.bf16 %v3384, %v3383
        %v3565 = vpack.c.bf16 %v3386, %v3385
        %v3566 = vpack.c.bf16 %v3388, %v3387
        %v3567 = vpack.c.bf16 %v3390, %v3389
        %v3568 = vpack.c.bf16 %v3392, %v3391
        %v3569 = vpack.c.bf16 %v3394, %v3393
        %v3570 = vpack.c.bf16 %v3396, %v3395
        %v3571 = vpack.c.bf16 %v3398, %v3397
        %v3572 = vpack.c.bf16 %v3400, %v3399
        %v3573 = vpack.c.bf16 %v3402, %v3401
        %v3574 = vpack.c.bf16 %v3404, %v3403
        %v3575 = vpack.c.bf16 %v3406, %v3405
        %v3576 = vpack.c.bf16 %v3408, %v3407
        %v3577 = vpack.c.bf16 %v3410, %v3409
        %v3578 = vpack.c.bf16 %v3412, %v3411
        %v3579 = vpack.c.bf16 %v3414, %v3413
        %v3580 = vpack.c.bf16 %v3416, %v3415
        %v3581 = vpack.c.bf16 %v3418, %v3417
        %v3582 = vpack.c.bf16 %v3420, %v3419
        %v3583 = vpack.c.bf16 %v3422, %v3421
        %v3584 = vpack.c.bf16 %v3424, %v3423
        %v3585 = vpack.c.bf16 %v3426, %v3425
        %v3586 = vpack.c.bf16 %v3428, %v3427
        %v3587 = vpack.c.bf16 %v3430, %v3429
        %v3588 = vpack.c.bf16 %v3432, %v3431
        %v3589 = vpack.c.bf16 %v3434, %v3433
        %v3590 = vpack.c.bf16 %v3436, %v3435
        %v3591 = vpack.c.bf16 %v3438, %v3437
        %v3592 = vpack.c.bf16 %v3440, %v3439
        %v3593 = vpack.c.bf16 %v3442, %v3441
        %v3594 = vpack.c.bf16 %v3444, %v3443
        %v3595 = vpack.c.bf16 %v3446, %v3445
        %v3596 = vpack.c.bf16 %v3448, %v3447
        %v3597 = vpack.c.bf16 %v3450, %v3449
        %v3598 = vpack.c.bf16 %v3452, %v3451
        %v3599 = vpack.c.bf16 %v3454, %v3453
        %v3600 = vpack.c.bf16 %v3456, %v3455
        %v3601 = vpack.c.bf16 %v3458, %v3457
        %v3602 = vpack.c.bf16 %v3460, %v3459
        %v3603 = vpack.c.bf16 %v3462, %v3461
        %v3604 = vpack.c.bf16 %v3464, %v3463
        %v3605 = vpack.c.bf16 %v3466, %v3465
        %v3606 = vpack.c.bf16 %v3468, %v3467
        %v3607 = vpack.c.bf16 %v3470, %v3469
        %v3608 = vpack.c.bf16 %v3472, %v3471
        %v3609 = vpack.c.bf16 %v3474, %v3473
        %v3610 = vpack.c.bf16 %v3476, %v3475
        %v3611 = vpack.c.bf16 %v3478, %v3477
        %v3612 = vpack.c.bf16 %v3480, %v3479
        %v3613 = vpack.c.bf16 %v3482, %v3481
        %v3614 = vpack.c.bf16 %v3484, %v3483
        %v3615 = vpack.c.bf16 %v3486, %v3485
        %v3616 = vpack.c.bf16 %v3488, %v3487
        %s3617 = scalar_lea.vmem %s2, 64
        %v3618 = vld [vmem:[%s3617] sm:$0xf]
        %v3619 = vld [vmem:[%s3617 + $0x4] sm:$0xf]
        %v3620 = vld [vmem:[%s3617 + $0x8] sm:$0xf]
        %v3621 = vld [vmem:[%s3617 + $0xc] sm:$0xf]
        %v3622 = vld [vmem:[%s3617 + $0x10] sm:$0xf]
        %v3623 = vld [vmem:[%s3617 + $0x14] sm:$0xf]
        %v3624 = vld [vmem:[%s3617 + $0x18] sm:$0xf]
        %v3625 = vld [vmem:[%s3617 + $0x1c] sm:$0xf]
        %v3626 = vld [vmem:[%s3617 + $0x20] sm:$0xf]
        %v3627 = vld [vmem:[%s3617 + $0x24] sm:$0xf]
        %v3628 = vld [vmem:[%s3617 + $0x28] sm:$0xf]
        %v3629 = vld [vmem:[%s3617 + $0x2c] sm:$0xf]
        %v3630 = vld [vmem:[%s3617 + $0x30] sm:$0xf]
        %v3631 = vld [vmem:[%s3617 + $0x34] sm:$0xf]
        %v3632 = vld [vmem:[%s3617 + $0x38] sm:$0xf]
        %v3633 = vld [vmem:[%s3617 + $0x3c] sm:$0xf]
        %v3650 = vunpack.c.l.b16 %v3618
        %v3651 = vunpack.c.l.b16 %v3619
        %v3652 = vunpack.c.l.b16 %v3620
        %v3653 = vunpack.c.l.b16 %v3621
        %v3654 = vunpack.c.l.b16 %v3622
        %v3655 = vunpack.c.l.b16 %v3623
        %v3656 = vunpack.c.l.b16 %v3624
        %v3657 = vunpack.c.l.b16 %v3625
        %v3658 = vunpack.c.l.b16 %v3626
        %v3659 = vunpack.c.l.b16 %v3627
        %v3660 = vunpack.c.l.b16 %v3628
        %v3661 = vunpack.c.l.b16 %v3629
        %v3662 = vunpack.c.l.b16 %v3630
        %v3663 = vunpack.c.l.b16 %v3631
        %v3664 = vunpack.c.l.b16 %v3632
        %v3665 = vunpack.c.l.b16 %v3633
        %v3666 = vpack.c.b16 %v3651, %v3650
        %v3667 = vpack.c.b16 %v3653, %v3652
        %v3668 = vpack.c.b16 %v3655, %v3654
        %v3669 = vpack.c.b16 %v3657, %v3656
        %v3670 = vpack.c.b16 %v3659, %v3658
        %v3671 = vpack.c.b16 %v3661, %v3660
        %v3672 = vpack.c.b16 %v3663, %v3662
        %v3673 = vpack.c.b16 %v3665, %v3664
        %3682 = vmatpush.bf16.msra.mxu0 %v3673
        %3683 = vmatpush.bf16.msra.mxu0 %v3672
        %3684 = vmatpush.bf16.msra.mxu0 %v3671
        %3685 = vmatpush.bf16.msra.mxu0 %v3670
        %3686 = vmatpush.bf16.msra.mxu0 %v3669
        %3687 = vmatpush.bf16.msra.mxu0 %v3668
        %3688 = vmatpush.bf16.msra.mxu0 %v3667
        %3689 = vmatpush.bf16.msra.mxu0 %v3666
        %3690 = vmatmul.bf16.gmra.mxu0 %v3489
        %v3691 = vpop.f32.mrf.mxu0
        %v3692 = vadd.f32 0.0, %v3691
        %v3693 = vpop.f32.mrf.mxu0
        %v3694 = vadd.f32 0.0, %v3693
        %3695 = vmatmul.bf16.gmra.mxu0 %v3490
        %v3696 = vpop.f32.mrf.mxu0
        %v3697 = vadd.f32 0.0, %v3696
        %v3698 = vpop.f32.mrf.mxu0
        %v3699 = vadd.f32 0.0, %v3698
        %3700 = vmatmul.bf16.gmra.mxu0 %v3491
        %v3701 = vpop.f32.mrf.mxu0
        %v3702 = vadd.f32 0.0, %v3701
        %v3703 = vpop.f32.mrf.mxu0
        %v3704 = vadd.f32 0.0, %v3703
        %3705 = vmatmul.bf16.gmra.mxu0 %v3492
        %v3706 = vpop.f32.mrf.mxu0
        %v3707 = vadd.f32 0.0, %v3706
        %v3708 = vpop.f32.mrf.mxu0
        %v3709 = vadd.f32 0.0, %v3708
        %3710 = vmatmul.bf16.gmra.mxu0 %v3493
        %v3711 = vpop.f32.mrf.mxu0
        %v3712 = vadd.f32 0.0, %v3711
        %v3713 = vpop.f32.mrf.mxu0
        %v3714 = vadd.f32 0.0, %v3713
        %3715 = vmatmul.bf16.gmra.mxu0 %v3494
        %v3716 = vpop.f32.mrf.mxu0
        %v3717 = vadd.f32 0.0, %v3716
        %v3718 = vpop.f32.mrf.mxu0
        %v3719 = vadd.f32 0.0, %v3718
        %3720 = vmatmul.bf16.gmra.mxu0 %v3495
        %v3721 = vpop.f32.mrf.mxu0
        %v3722 = vadd.f32 0.0, %v3721
        %v3723 = vpop.f32.mrf.mxu0
        %v3724 = vadd.f32 0.0, %v3723
        %3725 = vmatmul.bf16.gmra.mxu0 %v3496
        %v3726 = vpop.f32.mrf.mxu0
        %v3727 = vadd.f32 0.0, %v3726
        %v3728 = vpop.f32.mrf.mxu0
        %v3729 = vadd.f32 0.0, %v3728
        %3730 = vmatmul.bf16.gmra.mxu0 %v3497
        %v3731 = vpop.f32.mrf.mxu0
        %v3732 = vadd.f32 0.0, %v3731
        %v3733 = vpop.f32.mrf.mxu0
        %v3734 = vadd.f32 0.0, %v3733
        %3735 = vmatmul.bf16.gmra.mxu0 %v3498
        %v3736 = vpop.f32.mrf.mxu0
        %v3737 = vadd.f32 0.0, %v3736
        %v3738 = vpop.f32.mrf.mxu0
        %v3739 = vadd.f32 0.0, %v3738
        %3740 = vmatmul.bf16.gmra.mxu0 %v3499
        %v3741 = vpop.f32.mrf.mxu0
        %v3742 = vadd.f32 0.0, %v3741
        %v3743 = vpop.f32.mrf.mxu0
        %v3744 = vadd.f32 0.0, %v3743
        %3745 = vmatmul.bf16.gmra.mxu0 %v3500
        %v3746 = vpop.f32.mrf.mxu0
        %v3747 = vadd.f32 0.0, %v3746
        %v3748 = vpop.f32.mrf.mxu0
        %v3749 = vadd.f32 0.0, %v3748
        %3750 = vmatmul.bf16.gmra.mxu0 %v3501
        %v3751 = vpop.f32.mrf.mxu0
        %v3752 = vadd.f32 0.0, %v3751
        %v3753 = vpop.f32.mrf.mxu0
        %v3754 = vadd.f32 0.0, %v3753
        %3755 = vmatmul.bf16.gmra.mxu0 %v3502
        %v3756 = vpop.f32.mrf.mxu0
        %v3757 = vadd.f32 0.0, %v3756
        %v3758 = vpop.f32.mrf.mxu0
        %v3759 = vadd.f32 0.0, %v3758
        %3760 = vmatmul.bf16.gmra.mxu0 %v3503
        %v3761 = vpop.f32.mrf.mxu0
        %v3762 = vadd.f32 0.0, %v3761
        %v3763 = vpop.f32.mrf.mxu0
        %v3764 = vadd.f32 0.0, %v3763
        %3765 = vmatmul.bf16.gmra.mxu0 %v3504
        %v3766 = vpop.f32.mrf.mxu0
        %v3767 = vadd.f32 0.0, %v3766
        %v3768 = vpop.f32.mrf.mxu0
        %v3769 = vadd.f32 0.0, %v3768
        %3770 = vmatmul.bf16.gmra.mxu0 %v3505
        %v3771 = vpop.f32.mrf.mxu0
        %v3772 = vadd.f32 0.0, %v3771
        %v3773 = vpop.f32.mrf.mxu0
        %v3774 = vadd.f32 0.0, %v3773
        %3775 = vmatmul.bf16.gmra.mxu0 %v3506
        %v3776 = vpop.f32.mrf.mxu0
        %v3777 = vadd.f32 0.0, %v3776
        %v3778 = vpop.f32.mrf.mxu0
        %v3779 = vadd.f32 0.0, %v3778
        %3780 = vmatmul.bf16.gmra.mxu0 %v3507
        %v3781 = vpop.f32.mrf.mxu0
        %v3782 = vadd.f32 0.0, %v3781
        %v3783 = vpop.f32.mrf.mxu0
        %v3784 = vadd.f32 0.0, %v3783
        %3785 = vmatmul.bf16.gmra.mxu0 %v3508
        %v3786 = vpop.f32.mrf.mxu0
        %v3787 = vadd.f32 0.0, %v3786
        %v3788 = vpop.f32.mrf.mxu0
        %v3789 = vadd.f32 0.0, %v3788
        %3790 = vmatmul.bf16.gmra.mxu0 %v3509
        %v3791 = vpop.f32.mrf.mxu0
        %v3792 = vadd.f32 0.0, %v3791
        %v3793 = vpop.f32.mrf.mxu0
        %v3794 = vadd.f32 0.0, %v3793
        %3795 = vmatmul.bf16.gmra.mxu0 %v3510
        %v3796 = vpop.f32.mrf.mxu0
        %v3797 = vadd.f32 0.0, %v3796
        %v3798 = vpop.f32.mrf.mxu0
        %v3799 = vadd.f32 0.0, %v3798
        %3800 = vmatmul.bf16.gmra.mxu0 %v3511
        %v3801 = vpop.f32.mrf.mxu0
        %v3802 = vadd.f32 0.0, %v3801
        %v3803 = vpop.f32.mrf.mxu0
        %v3804 = vadd.f32 0.0, %v3803
        %3805 = vmatmul.bf16.gmra.mxu0 %v3512
        %v3806 = vpop.f32.mrf.mxu0
        %v3807 = vadd.f32 0.0, %v3806
        %v3808 = vpop.f32.mrf.mxu0
        %v3809 = vadd.f32 0.0, %v3808
        %3810 = vmatmul.bf16.gmra.mxu0 %v3513
        %v3811 = vpop.f32.mrf.mxu0
        %v3812 = vadd.f32 0.0, %v3811
        %v3813 = vpop.f32.mrf.mxu0
        %v3814 = vadd.f32 0.0, %v3813
        %3815 = vmatmul.bf16.gmra.mxu0 %v3514
        %v3816 = vpop.f32.mrf.mxu0
        %v3817 = vadd.f32 0.0, %v3816
        %v3818 = vpop.f32.mrf.mxu0
        %v3819 = vadd.f32 0.0, %v3818
        %3820 = vmatmul.bf16.gmra.mxu0 %v3515
        %v3821 = vpop.f32.mrf.mxu0
        %v3822 = vadd.f32 0.0, %v3821
        %v3823 = vpop.f32.mrf.mxu0
        %v3824 = vadd.f32 0.0, %v3823
        %3825 = vmatmul.bf16.gmra.mxu0 %v3516
        %v3826 = vpop.f32.mrf.mxu0
        %v3827 = vadd.f32 0.0, %v3826
        %v3828 = vpop.f32.mrf.mxu0
        %v3829 = vadd.f32 0.0, %v3828
        %3830 = vmatmul.bf16.gmra.mxu0 %v3517
        %v3831 = vpop.f32.mrf.mxu0
        %v3832 = vadd.f32 0.0, %v3831
        %v3833 = vpop.f32.mrf.mxu0
        %v3834 = vadd.f32 0.0, %v3833
        %3835 = vmatmul.bf16.gmra.mxu0 %v3518
        %v3836 = vpop.f32.mrf.mxu0
        %v3837 = vadd.f32 0.0, %v3836
        %v3838 = vpop.f32.mrf.mxu0
        %v3839 = vadd.f32 0.0, %v3838
        %3840 = vmatmul.bf16.gmra.mxu0 %v3519
        %v3841 = vpop.f32.mrf.mxu0
        %v3842 = vadd.f32 0.0, %v3841
        %v3843 = vpop.f32.mrf.mxu0
        %v3844 = vadd.f32 0.0, %v3843
        %3845 = vmatmul.bf16.gmra.mxu0 %v3520
        %v3846 = vpop.f32.mrf.mxu0
        %v3847 = vadd.f32 0.0, %v3846
        %v3848 = vpop.f32.mrf.mxu0
        %v3849 = vadd.f32 0.0, %v3848
        %3850 = vmatmul.bf16.gmra.mxu0 %v3521
        %v3851 = vpop.f32.mrf.mxu0
        %v3852 = vadd.f32 0.0, %v3851
        %v3853 = vpop.f32.mrf.mxu0
        %v3854 = vadd.f32 0.0, %v3853
        %3855 = vmatmul.bf16.gmra.mxu0 %v3522
        %v3856 = vpop.f32.mrf.mxu0
        %v3857 = vadd.f32 0.0, %v3856
        %v3858 = vpop.f32.mrf.mxu0
        %v3859 = vadd.f32 0.0, %v3858
        %3860 = vmatmul.bf16.gmra.mxu0 %v3523
        %v3861 = vpop.f32.mrf.mxu0
        %v3862 = vadd.f32 0.0, %v3861
        %v3863 = vpop.f32.mrf.mxu0
        %v3864 = vadd.f32 0.0, %v3863
        %3865 = vmatmul.bf16.gmra.mxu0 %v3524
        %v3866 = vpop.f32.mrf.mxu0
        %v3867 = vadd.f32 0.0, %v3866
        %v3868 = vpop.f32.mrf.mxu0
        %v3869 = vadd.f32 0.0, %v3868
        %3870 = vmatmul.bf16.gmra.mxu0 %v3525
        %v3871 = vpop.f32.mrf.mxu0
        %v3872 = vadd.f32 0.0, %v3871
        %v3873 = vpop.f32.mrf.mxu0
        %v3874 = vadd.f32 0.0, %v3873
        %3875 = vmatmul.bf16.gmra.mxu0 %v3526
        %v3876 = vpop.f32.mrf.mxu0
        %v3877 = vadd.f32 0.0, %v3876
        %v3878 = vpop.f32.mrf.mxu0
        %v3879 = vadd.f32 0.0, %v3878
        %3880 = vmatmul.bf16.gmra.mxu0 %v3527
        %v3881 = vpop.f32.mrf.mxu0
        %v3882 = vadd.f32 0.0, %v3881
        %v3883 = vpop.f32.mrf.mxu0
        %v3884 = vadd.f32 0.0, %v3883
        %3885 = vmatmul.bf16.gmra.mxu0 %v3528
        %v3886 = vpop.f32.mrf.mxu0
        %v3887 = vadd.f32 0.0, %v3886
        %v3888 = vpop.f32.mrf.mxu0
        %v3889 = vadd.f32 0.0, %v3888
        %3890 = vmatmul.bf16.gmra.mxu0 %v3529
        %v3891 = vpop.f32.mrf.mxu0
        %v3892 = vadd.f32 0.0, %v3891
        %v3893 = vpop.f32.mrf.mxu0
        %v3894 = vadd.f32 0.0, %v3893
        %3895 = vmatmul.bf16.gmra.mxu0 %v3530
        %v3896 = vpop.f32.mrf.mxu0
        %v3897 = vadd.f32 0.0, %v3896
        %v3898 = vpop.f32.mrf.mxu0
        %v3899 = vadd.f32 0.0, %v3898
        %3900 = vmatmul.bf16.gmra.mxu0 %v3531
        %v3901 = vpop.f32.mrf.mxu0
        %v3902 = vadd.f32 0.0, %v3901
        %v3903 = vpop.f32.mrf.mxu0
        %v3904 = vadd.f32 0.0, %v3903
        %3905 = vmatmul.bf16.gmra.mxu0 %v3532
        %v3906 = vpop.f32.mrf.mxu0
        %v3907 = vadd.f32 0.0, %v3906
        %v3908 = vpop.f32.mrf.mxu0
        %v3909 = vadd.f32 0.0, %v3908
        %3910 = vmatmul.bf16.gmra.mxu0 %v3533
        %v3911 = vpop.f32.mrf.mxu0
        %v3912 = vadd.f32 0.0, %v3911
        %v3913 = vpop.f32.mrf.mxu0
        %v3914 = vadd.f32 0.0, %v3913
        %3915 = vmatmul.bf16.gmra.mxu0 %v3534
        %v3916 = vpop.f32.mrf.mxu0
        %v3917 = vadd.f32 0.0, %v3916
        %v3918 = vpop.f32.mrf.mxu0
        %v3919 = vadd.f32 0.0, %v3918
        %3920 = vmatmul.bf16.gmra.mxu0 %v3535
        %v3921 = vpop.f32.mrf.mxu0
        %v3922 = vadd.f32 0.0, %v3921
        %v3923 = vpop.f32.mrf.mxu0
        %v3924 = vadd.f32 0.0, %v3923
        %3925 = vmatmul.bf16.gmra.mxu0 %v3536
        %v3926 = vpop.f32.mrf.mxu0
        %v3927 = vadd.f32 0.0, %v3926
        %v3928 = vpop.f32.mrf.mxu0
        %v3929 = vadd.f32 0.0, %v3928
        %3930 = vmatmul.bf16.gmra.mxu0 %v3537
        %v3931 = vpop.f32.mrf.mxu0
        %v3932 = vadd.f32 0.0, %v3931
        %v3933 = vpop.f32.mrf.mxu0
        %v3934 = vadd.f32 0.0, %v3933
        %3935 = vmatmul.bf16.gmra.mxu0 %v3538
        %v3936 = vpop.f32.mrf.mxu0
        %v3937 = vadd.f32 0.0, %v3936
        %v3938 = vpop.f32.mrf.mxu0
        %v3939 = vadd.f32 0.0, %v3938
        %3940 = vmatmul.bf16.gmra.mxu0 %v3539
        %v3941 = vpop.f32.mrf.mxu0
        %v3942 = vadd.f32 0.0, %v3941
        %v3943 = vpop.f32.mrf.mxu0
        %v3944 = vadd.f32 0.0, %v3943
        %3945 = vmatmul.bf16.gmra.mxu0 %v3540
        %v3946 = vpop.f32.mrf.mxu0
        %v3947 = vadd.f32 0.0, %v3946
        %v3948 = vpop.f32.mrf.mxu0
        %v3949 = vadd.f32 0.0, %v3948
        %3950 = vmatmul.bf16.gmra.mxu0 %v3541
        %v3951 = vpop.f32.mrf.mxu0
        %v3952 = vadd.f32 0.0, %v3951
        %v3953 = vpop.f32.mrf.mxu0
        %v3954 = vadd.f32 0.0, %v3953
        %3955 = vmatmul.bf16.gmra.mxu0 %v3542
        %v3956 = vpop.f32.mrf.mxu0
        %v3957 = vadd.f32 0.0, %v3956
        %v3958 = vpop.f32.mrf.mxu0
        %v3959 = vadd.f32 0.0, %v3958
        %3960 = vmatmul.bf16.gmra.mxu0 %v3543
        %v3961 = vpop.f32.mrf.mxu0
        %v3962 = vadd.f32 0.0, %v3961
        %v3963 = vpop.f32.mrf.mxu0
        %v3964 = vadd.f32 0.0, %v3963
        %3965 = vmatmul.bf16.gmra.mxu0 %v3544
        %v3966 = vpop.f32.mrf.mxu0
        %v3967 = vadd.f32 0.0, %v3966
        %v3968 = vpop.f32.mrf.mxu0
        %v3969 = vadd.f32 0.0, %v3968
        %3970 = vmatmul.bf16.gmra.mxu0 %v3545
        %v3971 = vpop.f32.mrf.mxu0
        %v3972 = vadd.f32 0.0, %v3971
        %v3973 = vpop.f32.mrf.mxu0
        %v3974 = vadd.f32 0.0, %v3973
        %3975 = vmatmul.bf16.gmra.mxu0 %v3546
        %v3976 = vpop.f32.mrf.mxu0
        %v3977 = vadd.f32 0.0, %v3976
        %v3978 = vpop.f32.mrf.mxu0
        %v3979 = vadd.f32 0.0, %v3978
        %3980 = vmatmul.bf16.gmra.mxu0 %v3547
        %v3981 = vpop.f32.mrf.mxu0
        %v3982 = vadd.f32 0.0, %v3981
        %v3983 = vpop.f32.mrf.mxu0
        %v3984 = vadd.f32 0.0, %v3983
        %3985 = vmatmul.bf16.gmra.mxu0 %v3548
        %v3986 = vpop.f32.mrf.mxu0
        %v3987 = vadd.f32 0.0, %v3986
        %v3988 = vpop.f32.mrf.mxu0
        %v3989 = vadd.f32 0.0, %v3988
        %3990 = vmatmul.bf16.gmra.mxu0 %v3549
        %v3991 = vpop.f32.mrf.mxu0
        %v3992 = vadd.f32 0.0, %v3991
        %v3993 = vpop.f32.mrf.mxu0
        %v3994 = vadd.f32 0.0, %v3993
        %3995 = vmatmul.bf16.gmra.mxu0 %v3550
        %v3996 = vpop.f32.mrf.mxu0
        %v3997 = vadd.f32 0.0, %v3996
        %v3998 = vpop.f32.mrf.mxu0
        %v3999 = vadd.f32 0.0, %v3998
        %4000 = vmatmul.bf16.gmra.mxu0 %v3551
        %v4001 = vpop.f32.mrf.mxu0
        %v4002 = vadd.f32 0.0, %v4001
        %v4003 = vpop.f32.mrf.mxu0
        %v4004 = vadd.f32 0.0, %v4003
        %4005 = vmatmul.bf16.gmra.mxu0 %v3552
        %v4006 = vpop.f32.mrf.mxu0
        %v4007 = vadd.f32 0.0, %v4006
        %v4008 = vpop.f32.mrf.mxu0
        %v4009 = vadd.f32 0.0, %v4008
        %4010 = vmatmul.bf16.gmra.mxu0 %v3553
        %v4011 = vpop.f32.mrf.mxu0
        %v4012 = vadd.f32 0.0, %v4011
        %v4013 = vpop.f32.mrf.mxu0
        %v4014 = vadd.f32 0.0, %v4013
        %4015 = vmatmul.bf16.gmra.mxu0 %v3554
        %v4016 = vpop.f32.mrf.mxu0
        %v4017 = vadd.f32 0.0, %v4016
        %v4018 = vpop.f32.mrf.mxu0
        %v4019 = vadd.f32 0.0, %v4018
        %4020 = vmatmul.bf16.gmra.mxu0 %v3555
        %v4021 = vpop.f32.mrf.mxu0
        %v4022 = vadd.f32 0.0, %v4021
        %v4023 = vpop.f32.mrf.mxu0
        %v4024 = vadd.f32 0.0, %v4023
        %4025 = vmatmul.bf16.gmra.mxu0 %v3556
        %v4026 = vpop.f32.mrf.mxu0
        %v4027 = vadd.f32 0.0, %v4026
        %v4028 = vpop.f32.mrf.mxu0
        %v4029 = vadd.f32 0.0, %v4028
        %4030 = vmatmul.bf16.gmra.mxu0 %v3557
        %v4031 = vpop.f32.mrf.mxu0
        %v4032 = vadd.f32 0.0, %v4031
        %v4033 = vpop.f32.mrf.mxu0
        %v4034 = vadd.f32 0.0, %v4033
        %4035 = vmatmul.bf16.gmra.mxu0 %v3558
        %v4036 = vpop.f32.mrf.mxu0
        %v4037 = vadd.f32 0.0, %v4036
        %v4038 = vpop.f32.mrf.mxu0
        %v4039 = vadd.f32 0.0, %v4038
        %4040 = vmatmul.bf16.gmra.mxu0 %v3559
        %v4041 = vpop.f32.mrf.mxu0
        %v4042 = vadd.f32 0.0, %v4041
        %v4043 = vpop.f32.mrf.mxu0
        %v4044 = vadd.f32 0.0, %v4043
        %4045 = vmatmul.bf16.gmra.mxu0 %v3560
        %v4046 = vpop.f32.mrf.mxu0
        %v4047 = vadd.f32 0.0, %v4046
        %v4048 = vpop.f32.mrf.mxu0
        %v4049 = vadd.f32 0.0, %v4048
        %4050 = vmatmul.bf16.gmra.mxu0 %v3561
        %v4051 = vpop.f32.mrf.mxu0
        %v4052 = vadd.f32 0.0, %v4051
        %v4053 = vpop.f32.mrf.mxu0
        %v4054 = vadd.f32 0.0, %v4053
        %4055 = vmatmul.bf16.gmra.mxu0 %v3562
        %v4056 = vpop.f32.mrf.mxu0
        %v4057 = vadd.f32 0.0, %v4056
        %v4058 = vpop.f32.mrf.mxu0
        %v4059 = vadd.f32 0.0, %v4058
        %4060 = vmatmul.bf16.gmra.mxu0 %v3563
        %v4061 = vpop.f32.mrf.mxu0
        %v4062 = vadd.f32 0.0, %v4061
        %v4063 = vpop.f32.mrf.mxu0
        %v4064 = vadd.f32 0.0, %v4063
        %4065 = vmatmul.bf16.gmra.mxu0 %v3564
        %v4066 = vpop.f32.mrf.mxu0
        %v4067 = vadd.f32 0.0, %v4066
        %v4068 = vpop.f32.mrf.mxu0
        %v4069 = vadd.f32 0.0, %v4068
        %4070 = vmatmul.bf16.gmra.mxu0 %v3565
        %v4071 = vpop.f32.mrf.mxu0
        %v4072 = vadd.f32 0.0, %v4071
        %v4073 = vpop.f32.mrf.mxu0
        %v4074 = vadd.f32 0.0, %v4073
        %4075 = vmatmul.bf16.gmra.mxu0 %v3566
        %v4076 = vpop.f32.mrf.mxu0
        %v4077 = vadd.f32 0.0, %v4076
        %v4078 = vpop.f32.mrf.mxu0
        %v4079 = vadd.f32 0.0, %v4078
        %4080 = vmatmul.bf16.gmra.mxu0 %v3567
        %v4081 = vpop.f32.mrf.mxu0
        %v4082 = vadd.f32 0.0, %v4081
        %v4083 = vpop.f32.mrf.mxu0
        %v4084 = vadd.f32 0.0, %v4083
        %4085 = vmatmul.bf16.gmra.mxu0 %v3568
        %v4086 = vpop.f32.mrf.mxu0
        %v4087 = vadd.f32 0.0, %v4086
        %v4088 = vpop.f32.mrf.mxu0
        %v4089 = vadd.f32 0.0, %v4088
        %4090 = vmatmul.bf16.gmra.mxu0 %v3569
        %v4091 = vpop.f32.mrf.mxu0
        %v4092 = vadd.f32 0.0, %v4091
        %v4093 = vpop.f32.mrf.mxu0
        %v4094 = vadd.f32 0.0, %v4093
        %4095 = vmatmul.bf16.gmra.mxu0 %v3570
        %v4096 = vpop.f32.mrf.mxu0
        %v4097 = vadd.f32 0.0, %v4096
        %v4098 = vpop.f32.mrf.mxu0
        %v4099 = vadd.f32 0.0, %v4098
        %4100 = vmatmul.bf16.gmra.mxu0 %v3571
        %v4101 = vpop.f32.mrf.mxu0
        %v4102 = vadd.f32 0.0, %v4101
        %v4103 = vpop.f32.mrf.mxu0
        %v4104 = vadd.f32 0.0, %v4103
        %4105 = vmatmul.bf16.gmra.mxu0 %v3572
        %v4106 = vpop.f32.mrf.mxu0
        %v4107 = vadd.f32 0.0, %v4106
        %v4108 = vpop.f32.mrf.mxu0
        %v4109 = vadd.f32 0.0, %v4108
        %4110 = vmatmul.bf16.gmra.mxu0 %v3573
        %v4111 = vpop.f32.mrf.mxu0
        %v4112 = vadd.f32 0.0, %v4111
        %v4113 = vpop.f32.mrf.mxu0
        %v4114 = vadd.f32 0.0, %v4113
        %4115 = vmatmul.bf16.gmra.mxu0 %v3574
        %v4116 = vpop.f32.mrf.mxu0
        %v4117 = vadd.f32 0.0, %v4116
        %v4118 = vpop.f32.mrf.mxu0
        %v4119 = vadd.f32 0.0, %v4118
        %4120 = vmatmul.bf16.gmra.mxu0 %v3575
        %v4121 = vpop.f32.mrf.mxu0
        %v4122 = vadd.f32 0.0, %v4121
        %v4123 = vpop.f32.mrf.mxu0
        %v4124 = vadd.f32 0.0, %v4123
        %4125 = vmatmul.bf16.gmra.mxu0 %v3576
        %v4126 = vpop.f32.mrf.mxu0
        %v4127 = vadd.f32 0.0, %v4126
        %v4128 = vpop.f32.mrf.mxu0
        %v4129 = vadd.f32 0.0, %v4128
        %4130 = vmatmul.bf16.gmra.mxu0 %v3577
        %v4131 = vpop.f32.mrf.mxu0
        %v4132 = vadd.f32 0.0, %v4131
        %v4133 = vpop.f32.mrf.mxu0
        %v4134 = vadd.f32 0.0, %v4133
        %4135 = vmatmul.bf16.gmra.mxu0 %v3578
        %v4136 = vpop.f32.mrf.mxu0
        %v4137 = vadd.f32 0.0, %v4136
        %v4138 = vpop.f32.mrf.mxu0
        %v4139 = vadd.f32 0.0, %v4138
        %4140 = vmatmul.bf16.gmra.mxu0 %v3579
        %v4141 = vpop.f32.mrf.mxu0
        %v4142 = vadd.f32 0.0, %v4141
        %v4143 = vpop.f32.mrf.mxu0
        %v4144 = vadd.f32 0.0, %v4143
        %4145 = vmatmul.bf16.gmra.mxu0 %v3580
        %v4146 = vpop.f32.mrf.mxu0
        %v4147 = vadd.f32 0.0, %v4146
        %v4148 = vpop.f32.mrf.mxu0
        %v4149 = vadd.f32 0.0, %v4148
        %4150 = vmatmul.bf16.gmra.mxu0 %v3581
        %v4151 = vpop.f32.mrf.mxu0
        %v4152 = vadd.f32 0.0, %v4151
        %v4153 = vpop.f32.mrf.mxu0
        %v4154 = vadd.f32 0.0, %v4153
        %4155 = vmatmul.bf16.gmra.mxu0 %v3582
        %v4156 = vpop.f32.mrf.mxu0
        %v4157 = vadd.f32 0.0, %v4156
        %v4158 = vpop.f32.mrf.mxu0
        %v4159 = vadd.f32 0.0, %v4158
        %4160 = vmatmul.bf16.gmra.mxu0 %v3583
        %v4161 = vpop.f32.mrf.mxu0
        %v4162 = vadd.f32 0.0, %v4161
        %v4163 = vpop.f32.mrf.mxu0
        %v4164 = vadd.f32 0.0, %v4163
        %4165 = vmatmul.bf16.gmra.mxu0 %v3584
        %v4166 = vpop.f32.mrf.mxu0
        %v4167 = vadd.f32 0.0, %v4166
        %v4168 = vpop.f32.mrf.mxu0
        %v4169 = vadd.f32 0.0, %v4168
        %4170 = vmatmul.bf16.gmra.mxu0 %v3585
        %v4171 = vpop.f32.mrf.mxu0
        %v4172 = vadd.f32 0.0, %v4171
        %v4173 = vpop.f32.mrf.mxu0
        %v4174 = vadd.f32 0.0, %v4173
        %4175 = vmatmul.bf16.gmra.mxu0 %v3586
        %v4176 = vpop.f32.mrf.mxu0
        %v4177 = vadd.f32 0.0, %v4176
        %v4178 = vpop.f32.mrf.mxu0
        %v4179 = vadd.f32 0.0, %v4178
        %4180 = vmatmul.bf16.gmra.mxu0 %v3587
        %v4181 = vpop.f32.mrf.mxu0
        %v4182 = vadd.f32 0.0, %v4181
        %v4183 = vpop.f32.mrf.mxu0
        %v4184 = vadd.f32 0.0, %v4183
        %4185 = vmatmul.bf16.gmra.mxu0 %v3588
        %v4186 = vpop.f32.mrf.mxu0
        %v4187 = vadd.f32 0.0, %v4186
        %v4188 = vpop.f32.mrf.mxu0
        %v4189 = vadd.f32 0.0, %v4188
        %4190 = vmatmul.bf16.gmra.mxu0 %v3589
        %v4191 = vpop.f32.mrf.mxu0
        %v4192 = vadd.f32 0.0, %v4191
        %v4193 = vpop.f32.mrf.mxu0
        %v4194 = vadd.f32 0.0, %v4193
        %4195 = vmatmul.bf16.gmra.mxu0 %v3590
        %v4196 = vpop.f32.mrf.mxu0
        %v4197 = vadd.f32 0.0, %v4196
        %v4198 = vpop.f32.mrf.mxu0
        %v4199 = vadd.f32 0.0, %v4198
        %4200 = vmatmul.bf16.gmra.mxu0 %v3591
        %v4201 = vpop.f32.mrf.mxu0
        %v4202 = vadd.f32 0.0, %v4201
        %v4203 = vpop.f32.mrf.mxu0
        %v4204 = vadd.f32 0.0, %v4203
        %4205 = vmatmul.bf16.gmra.mxu0 %v3592
        %v4206 = vpop.f32.mrf.mxu0
        %v4207 = vadd.f32 0.0, %v4206
        %v4208 = vpop.f32.mrf.mxu0
        %v4209 = vadd.f32 0.0, %v4208
        %4210 = vmatmul.bf16.gmra.mxu0 %v3593
        %v4211 = vpop.f32.mrf.mxu0
        %v4212 = vadd.f32 0.0, %v4211
        %v4213 = vpop.f32.mrf.mxu0
        %v4214 = vadd.f32 0.0, %v4213
        %4215 = vmatmul.bf16.gmra.mxu0 %v3594
        %v4216 = vpop.f32.mrf.mxu0
        %v4217 = vadd.f32 0.0, %v4216
        %v4218 = vpop.f32.mrf.mxu0
        %v4219 = vadd.f32 0.0, %v4218
        %4220 = vmatmul.bf16.gmra.mxu0 %v3595
        %v4221 = vpop.f32.mrf.mxu0
        %v4222 = vadd.f32 0.0, %v4221
        %v4223 = vpop.f32.mrf.mxu0
        %v4224 = vadd.f32 0.0, %v4223
        %4225 = vmatmul.bf16.gmra.mxu0 %v3596
        %v4226 = vpop.f32.mrf.mxu0
        %v4227 = vadd.f32 0.0, %v4226
        %v4228 = vpop.f32.mrf.mxu0
        %v4229 = vadd.f32 0.0, %v4228
        %4230 = vmatmul.bf16.gmra.mxu0 %v3597
        %v4231 = vpop.f32.mrf.mxu0
        %v4232 = vadd.f32 0.0, %v4231
        %v4233 = vpop.f32.mrf.mxu0
        %v4234 = vadd.f32 0.0, %v4233
        %4235 = vmatmul.bf16.gmra.mxu0 %v3598
        %v4236 = vpop.f32.mrf.mxu0
        %v4237 = vadd.f32 0.0, %v4236
        %v4238 = vpop.f32.mrf.mxu0
        %v4239 = vadd.f32 0.0, %v4238
        %4240 = vmatmul.bf16.gmra.mxu0 %v3599
        %v4241 = vpop.f32.mrf.mxu0
        %v4242 = vadd.f32 0.0, %v4241
        %v4243 = vpop.f32.mrf.mxu0
        %v4244 = vadd.f32 0.0, %v4243
        %4245 = vmatmul.bf16.gmra.mxu0 %v3600
        %v4246 = vpop.f32.mrf.mxu0
        %v4247 = vadd.f32 0.0, %v4246
        %v4248 = vpop.f32.mrf.mxu0
        %v4249 = vadd.f32 0.0, %v4248
        %4250 = vmatmul.bf16.gmra.mxu0 %v3601
        %v4251 = vpop.f32.mrf.mxu0
        %v4252 = vadd.f32 0.0, %v4251
        %v4253 = vpop.f32.mrf.mxu0
        %v4254 = vadd.f32 0.0, %v4253
        %4255 = vmatmul.bf16.gmra.mxu0 %v3602
        %v4256 = vpop.f32.mrf.mxu0
        %v4257 = vadd.f32 0.0, %v4256
        %v4258 = vpop.f32.mrf.mxu0
        %v4259 = vadd.f32 0.0, %v4258
        %4260 = vmatmul.bf16.gmra.mxu0 %v3603
        %v4261 = vpop.f32.mrf.mxu0
        %v4262 = vadd.f32 0.0, %v4261
        %v4263 = vpop.f32.mrf.mxu0
        %v4264 = vadd.f32 0.0, %v4263
        %4265 = vmatmul.bf16.gmra.mxu0 %v3604
        %v4266 = vpop.f32.mrf.mxu0
        %v4267 = vadd.f32 0.0, %v4266
        %v4268 = vpop.f32.mrf.mxu0
        %v4269 = vadd.f32 0.0, %v4268
        %4270 = vmatmul.bf16.gmra.mxu0 %v3605
        %v4271 = vpop.f32.mrf.mxu0
        %v4272 = vadd.f32 0.0, %v4271
        %v4273 = vpop.f32.mrf.mxu0
        %v4274 = vadd.f32 0.0, %v4273
        %4275 = vmatmul.bf16.gmra.mxu0 %v3606
        %v4276 = vpop.f32.mrf.mxu0
        %v4277 = vadd.f32 0.0, %v4276
        %v4278 = vpop.f32.mrf.mxu0
        %v4279 = vadd.f32 0.0, %v4278
        %4280 = vmatmul.bf16.gmra.mxu0 %v3607
        %v4281 = vpop.f32.mrf.mxu0
        %v4282 = vadd.f32 0.0, %v4281
        %v4283 = vpop.f32.mrf.mxu0
        %v4284 = vadd.f32 0.0, %v4283
        %4285 = vmatmul.bf16.gmra.mxu0 %v3608
        %v4286 = vpop.f32.mrf.mxu0
        %v4287 = vadd.f32 0.0, %v4286
        %v4288 = vpop.f32.mrf.mxu0
        %v4289 = vadd.f32 0.0, %v4288
        %4290 = vmatmul.bf16.gmra.mxu0 %v3609
        %v4291 = vpop.f32.mrf.mxu0
        %v4292 = vadd.f32 0.0, %v4291
        %v4293 = vpop.f32.mrf.mxu0
        %v4294 = vadd.f32 0.0, %v4293
        %4295 = vmatmul.bf16.gmra.mxu0 %v3610
        %v4296 = vpop.f32.mrf.mxu0
        %v4297 = vadd.f32 0.0, %v4296
        %v4298 = vpop.f32.mrf.mxu0
        %v4299 = vadd.f32 0.0, %v4298
        %4300 = vmatmul.bf16.gmra.mxu0 %v3611
        %v4301 = vpop.f32.mrf.mxu0
        %v4302 = vadd.f32 0.0, %v4301
        %v4303 = vpop.f32.mrf.mxu0
        %v4304 = vadd.f32 0.0, %v4303
        %4305 = vmatmul.bf16.gmra.mxu0 %v3612
        %v4306 = vpop.f32.mrf.mxu0
        %v4307 = vadd.f32 0.0, %v4306
        %v4308 = vpop.f32.mrf.mxu0
        %v4309 = vadd.f32 0.0, %v4308
        %4310 = vmatmul.bf16.gmra.mxu0 %v3613
        %v4311 = vpop.f32.mrf.mxu0
        %v4312 = vadd.f32 0.0, %v4311
        %v4313 = vpop.f32.mrf.mxu0
        %v4314 = vadd.f32 0.0, %v4313
        %4315 = vmatmul.bf16.gmra.mxu0 %v3614
        %v4316 = vpop.f32.mrf.mxu0
        %v4317 = vadd.f32 0.0, %v4316
        %v4318 = vpop.f32.mrf.mxu0
        %v4319 = vadd.f32 0.0, %v4318
        %4320 = vmatmul.bf16.gmra.mxu0 %v3615
        %v4321 = vpop.f32.mrf.mxu0
        %v4322 = vadd.f32 0.0, %v4321
        %v4323 = vpop.f32.mrf.mxu0
        %v4324 = vadd.f32 0.0, %v4323
        %4325 = vmatmul.bf16.gmra.mxu0 %v3616
        %v4326 = vpop.f32.mrf.mxu0
        %v4327 = vadd.f32 0.0, %v4326
        %v4328 = vpop.f32.mrf.mxu0
        %v4329 = vadd.f32 0.0, %v4328
        %4330 = vdwg.mxu0
        %v4331 = vmax.f32 %v3692, 0.0
        %v4332 = vmax.f32 %v3694, 0.0
        %v4333 = vmax.f32 %v3697, 0.0
        %v4334 = vmax.f32 %v3699, 0.0
        %v4335 = vmax.f32 %v3702, 0.0
        %v4336 = vmax.f32 %v3704, 0.0
        %v4337 = vmax.f32 %v3707, 0.0
        %v4338 = vmax.f32 %v3709, 0.0
        %v4339 = vmax.f32 %v3712, 0.0
        %v4340 = vmax.f32 %v3714, 0.0
        %v4341 = vmax.f32 %v3717, 0.0
        %v4342 = vmax.f32 %v3719, 0.0
        %v4343 = vmax.f32 %v3722, 0.0
        %v4344 = vmax.f32 %v3724, 0.0
        %v4345 = vmax.f32 %v3727, 0.0
        %v4346 = vmax.f32 %v3729, 0.0
        %v4347 = vmax.f32 %v3732, 0.0
        %v4348 = vmax.f32 %v3734, 0.0
        %v4349 = vmax.f32 %v3737, 0.0
        %v4350 = vmax.f32 %v3739, 0.0
        %v4351 = vmax.f32 %v3742, 0.0
        %v4352 = vmax.f32 %v3744, 0.0
        %v4353 = vmax.f32 %v3747, 0.0
        %v4354 = vmax.f32 %v3749, 0.0
        %v4355 = vmax.f32 %v3752, 0.0
        %v4356 = vmax.f32 %v3754, 0.0
        %v4357 = vmax.f32 %v3757, 0.0
        %v4358 = vmax.f32 %v3759, 0.0
        %v4359 = vmax.f32 %v3762, 0.0
        %v4360 = vmax.f32 %v3764, 0.0
        %v4361 = vmax.f32 %v3767, 0.0
        %v4362 = vmax.f32 %v3769, 0.0
        %v4363 = vmax.f32 %v3772, 0.0
        %v4364 = vmax.f32 %v3774, 0.0
        %v4365 = vmax.f32 %v3777, 0.0
        %v4366 = vmax.f32 %v3779, 0.0
        %v4367 = vmax.f32 %v3782, 0.0
        %v4368 = vmax.f32 %v3784, 0.0
        %v4369 = vmax.f32 %v3787, 0.0
        %v4370 = vmax.f32 %v3789, 0.0
        %v4371 = vmax.f32 %v3792, 0.0
        %v4372 = vmax.f32 %v3794, 0.0
        %v4373 = vmax.f32 %v3797, 0.0
        %v4374 = vmax.f32 %v3799, 0.0
        %v4375 = vmax.f32 %v3802, 0.0
        %v4376 = vmax.f32 %v3804, 0.0
        %v4377 = vmax.f32 %v3807, 0.0
        %v4378 = vmax.f32 %v3809, 0.0
        %v4379 = vmax.f32 %v3812, 0.0
        %v4380 = vmax.f32 %v3814, 0.0
        %v4381 = vmax.f32 %v3817, 0.0
        %v4382 = vmax.f32 %v3819, 0.0
        %v4383 = vmax.f32 %v3822, 0.0
        %v4384 = vmax.f32 %v3824, 0.0
        %v4385 = vmax.f32 %v3827, 0.0
        %v4386 = vmax.f32 %v3829, 0.0
        %v4387 = vmax.f32 %v3832, 0.0
        %v4388 = vmax.f32 %v3834, 0.0
        %v4389 = vmax.f32 %v3837, 0.0
        %v4390 = vmax.f32 %v3839, 0.0
        %v4391 = vmax.f32 %v3842, 0.0
        %v4392 = vmax.f32 %v3844, 0.0
        %v4393 = vmax.f32 %v3847, 0.0
        %v4394 = vmax.f32 %v3849, 0.0
        %v4395 = vmax.f32 %v3852, 0.0
        %v4396 = vmax.f32 %v3854, 0.0
        %v4397 = vmax.f32 %v3857, 0.0
        %v4398 = vmax.f32 %v3859, 0.0
        %v4399 = vmax.f32 %v3862, 0.0
        %v4400 = vmax.f32 %v3864, 0.0
        %v4401 = vmax.f32 %v3867, 0.0
        %v4402 = vmax.f32 %v3869, 0.0
        %v4403 = vmax.f32 %v3872, 0.0
        %v4404 = vmax.f32 %v3874, 0.0
        %v4405 = vmax.f32 %v3877, 0.0
        %v4406 = vmax.f32 %v3879, 0.0
        %v4407 = vmax.f32 %v3882, 0.0
        %v4408 = vmax.f32 %v3884, 0.0
        %v4409 = vmax.f32 %v3887, 0.0
        %v4410 = vmax.f32 %v3889, 0.0
        %v4411 = vmax.f32 %v3892, 0.0
        %v4412 = vmax.f32 %v3894, 0.0
        %v4413 = vmax.f32 %v3897, 0.0
        %v4414 = vmax.f32 %v3899, 0.0
        %v4415 = vmax.f32 %v3902, 0.0
        %v4416 = vmax.f32 %v3904, 0.0
        %v4417 = vmax.f32 %v3907, 0.0
        %v4418 = vmax.f32 %v3909, 0.0
        %v4419 = vmax.f32 %v3912, 0.0
        %v4420 = vmax.f32 %v3914, 0.0
        %v4421 = vmax.f32 %v3917, 0.0
        %v4422 = vmax.f32 %v3919, 0.0
        %v4423 = vmax.f32 %v3922, 0.0
        %v4424 = vmax.f32 %v3924, 0.0
        %v4425 = vmax.f32 %v3927, 0.0
        %v4426 = vmax.f32 %v3929, 0.0
        %v4427 = vmax.f32 %v3932, 0.0
        %v4428 = vmax.f32 %v3934, 0.0
        %v4429 = vmax.f32 %v3937, 0.0
        %v4430 = vmax.f32 %v3939, 0.0
        %v4431 = vmax.f32 %v3942, 0.0
        %v4432 = vmax.f32 %v3944, 0.0
        %v4433 = vmax.f32 %v3947, 0.0
        %v4434 = vmax.f32 %v3949, 0.0
        %v4435 = vmax.f32 %v3952, 0.0
        %v4436 = vmax.f32 %v3954, 0.0
        %v4437 = vmax.f32 %v3957, 0.0
        %v4438 = vmax.f32 %v3959, 0.0
        %v4439 = vmax.f32 %v3962, 0.0
        %v4440 = vmax.f32 %v3964, 0.0
        %v4441 = vmax.f32 %v3967, 0.0
        %v4442 = vmax.f32 %v3969, 0.0
        %v4443 = vmax.f32 %v3972, 0.0
        %v4444 = vmax.f32 %v3974, 0.0
        %v4445 = vmax.f32 %v3977, 0.0
        %v4446 = vmax.f32 %v3979, 0.0
        %v4447 = vmax.f32 %v3982, 0.0
        %v4448 = vmax.f32 %v3984, 0.0
        %v4449 = vmax.f32 %v3987, 0.0
        %v4450 = vmax.f32 %v3989, 0.0
        %v4451 = vmax.f32 %v3992, 0.0
        %v4452 = vmax.f32 %v3994, 0.0
        %v4453 = vmax.f32 %v3997, 0.0
        %v4454 = vmax.f32 %v3999, 0.0
        %v4455 = vmax.f32 %v4002, 0.0
        %v4456 = vmax.f32 %v4004, 0.0
        %v4457 = vmax.f32 %v4007, 0.0
        %v4458 = vmax.f32 %v4009, 0.0
        %v4459 = vmax.f32 %v4012, 0.0
        %v4460 = vmax.f32 %v4014, 0.0
        %v4461 = vmax.f32 %v4017, 0.0
        %v4462 = vmax.f32 %v4019, 0.0
        %v4463 = vmax.f32 %v4022, 0.0
        %v4464 = vmax.f32 %v4024, 0.0
        %v4465 = vmax.f32 %v4027, 0.0
        %v4466 = vmax.f32 %v4029, 0.0
        %v4467 = vmax.f32 %v4032, 0.0
        %v4468 = vmax.f32 %v4034, 0.0
        %v4469 = vmax.f32 %v4037, 0.0
        %v4470 = vmax.f32 %v4039, 0.0
        %v4471 = vmax.f32 %v4042, 0.0
        %v4472 = vmax.f32 %v4044, 0.0
        %v4473 = vmax.f32 %v4047, 0.0
        %v4474 = vmax.f32 %v4049, 0.0
        %v4475 = vmax.f32 %v4052, 0.0
        %v4476 = vmax.f32 %v4054, 0.0
        %v4477 = vmax.f32 %v4057, 0.0
        %v4478 = vmax.f32 %v4059, 0.0
        %v4479 = vmax.f32 %v4062, 0.0
        %v4480 = vmax.f32 %v4064, 0.0
        %v4481 = vmax.f32 %v4067, 0.0
        %v4482 = vmax.f32 %v4069, 0.0
        %v4483 = vmax.f32 %v4072, 0.0
        %v4484 = vmax.f32 %v4074, 0.0
        %v4485 = vmax.f32 %v4077, 0.0
        %v4486 = vmax.f32 %v4079, 0.0
        %v4487 = vmax.f32 %v4082, 0.0
        %v4488 = vmax.f32 %v4084, 0.0
        %v4489 = vmax.f32 %v4087, 0.0
        %v4490 = vmax.f32 %v4089, 0.0
        %v4491 = vmax.f32 %v4092, 0.0
        %v4492 = vmax.f32 %v4094, 0.0
        %v4493 = vmax.f32 %v4097, 0.0
        %v4494 = vmax.f32 %v4099, 0.0
        %v4495 = vmax.f32 %v4102, 0.0
        %v4496 = vmax.f32 %v4104, 0.0
        %v4497 = vmax.f32 %v4107, 0.0
        %v4498 = vmax.f32 %v4109, 0.0
        %v4499 = vmax.f32 %v4112, 0.0
        %v4500 = vmax.f32 %v4114, 0.0
        %v4501 = vmax.f32 %v4117, 0.0
        %v4502 = vmax.f32 %v4119, 0.0
        %v4503 = vmax.f32 %v4122, 0.0
        %v4504 = vmax.f32 %v4124, 0.0
        %v4505 = vmax.f32 %v4127, 0.0
        %v4506 = vmax.f32 %v4129, 0.0
        %v4507 = vmax.f32 %v4132, 0.0
        %v4508 = vmax.f32 %v4134, 0.0
        %v4509 = vmax.f32 %v4137, 0.0
        %v4510 = vmax.f32 %v4139, 0.0
        %v4511 = vmax.f32 %v4142, 0.0
        %v4512 = vmax.f32 %v4144, 0.0
        %v4513 = vmax.f32 %v4147, 0.0
        %v4514 = vmax.f32 %v4149, 0.0
        %v4515 = vmax.f32 %v4152, 0.0
        %v4516 = vmax.f32 %v4154, 0.0
        %v4517 = vmax.f32 %v4157, 0.0
        %v4518 = vmax.f32 %v4159, 0.0
        %v4519 = vmax.f32 %v4162, 0.0
        %v4520 = vmax.f32 %v4164, 0.0
        %v4521 = vmax.f32 %v4167, 0.0
        %v4522 = vmax.f32 %v4169, 0.0
        %v4523 = vmax.f32 %v4172, 0.0
        %v4524 = vmax.f32 %v4174, 0.0
        %v4525 = vmax.f32 %v4177, 0.0
        %v4526 = vmax.f32 %v4179, 0.0
        %v4527 = vmax.f32 %v4182, 0.0
        %v4528 = vmax.f32 %v4184, 0.0
        %v4529 = vmax.f32 %v4187, 0.0
        %v4530 = vmax.f32 %v4189, 0.0
        %v4531 = vmax.f32 %v4192, 0.0
        %v4532 = vmax.f32 %v4194, 0.0
        %v4533 = vmax.f32 %v4197, 0.0
        %v4534 = vmax.f32 %v4199, 0.0
        %v4535 = vmax.f32 %v4202, 0.0
        %v4536 = vmax.f32 %v4204, 0.0
        %v4537 = vmax.f32 %v4207, 0.0
        %v4538 = vmax.f32 %v4209, 0.0
        %v4539 = vmax.f32 %v4212, 0.0
        %v4540 = vmax.f32 %v4214, 0.0
        %v4541 = vmax.f32 %v4217, 0.0
        %v4542 = vmax.f32 %v4219, 0.0
        %v4543 = vmax.f32 %v4222, 0.0
        %v4544 = vmax.f32 %v4224, 0.0
        %v4545 = vmax.f32 %v4227, 0.0
        %v4546 = vmax.f32 %v4229, 0.0
        %v4547 = vmax.f32 %v4232, 0.0
        %v4548 = vmax.f32 %v4234, 0.0
        %v4549 = vmax.f32 %v4237, 0.0
        %v4550 = vmax.f32 %v4239, 0.0
        %v4551 = vmax.f32 %v4242, 0.0
        %v4552 = vmax.f32 %v4244, 0.0
        %v4553 = vmax.f32 %v4247, 0.0
        %v4554 = vmax.f32 %v4249, 0.0
        %v4555 = vmax.f32 %v4252, 0.0
        %v4556 = vmax.f32 %v4254, 0.0
        %v4557 = vmax.f32 %v4257, 0.0
        %v4558 = vmax.f32 %v4259, 0.0
        %v4559 = vmax.f32 %v4262, 0.0
        %v4560 = vmax.f32 %v4264, 0.0
        %v4561 = vmax.f32 %v4267, 0.0
        %v4562 = vmax.f32 %v4269, 0.0
        %v4563 = vmax.f32 %v4272, 0.0
        %v4564 = vmax.f32 %v4274, 0.0
        %v4565 = vmax.f32 %v4277, 0.0
        %v4566 = vmax.f32 %v4279, 0.0
        %v4567 = vmax.f32 %v4282, 0.0
        %v4568 = vmax.f32 %v4284, 0.0
        %v4569 = vmax.f32 %v4287, 0.0
        %v4570 = vmax.f32 %v4289, 0.0
        %v4571 = vmax.f32 %v4292, 0.0
        %v4572 = vmax.f32 %v4294, 0.0
        %v4573 = vmax.f32 %v4297, 0.0
        %v4574 = vmax.f32 %v4299, 0.0
        %v4575 = vmax.f32 %v4302, 0.0
        %v4576 = vmax.f32 %v4304, 0.0
        %v4577 = vmax.f32 %v4307, 0.0
        %v4578 = vmax.f32 %v4309, 0.0
        %v4579 = vmax.f32 %v4312, 0.0
        %v4580 = vmax.f32 %v4314, 0.0
        %v4581 = vmax.f32 %v4317, 0.0
        %v4582 = vmax.f32 %v4319, 0.0
        %v4583 = vmax.f32 %v4322, 0.0
        %v4584 = vmax.f32 %v4324, 0.0
        %v4585 = vmax.f32 %v4327, 0.0
        %v4586 = vmax.f32 %v4329, 0.0
        %v4587 = vmax.f32 %v4331, %v4363
        %v4588 = vmax.f32 %v4587, %v4395
        %v4589 = vmax.f32 %v4588, %v4427
        %v4590 = vmax.f32 %v4589, %v4459
        %v4591 = vmax.f32 %v4590, %v4491
        %v4592 = vmax.f32 %v4591, %v4523
        %v4593 = vmax.f32 %v4592, %v4555
        %v4594 = vmax.f32 %v4332, %v4364
        %v4595 = vmax.f32 %v4594, %v4396
        %v4596 = vmax.f32 %v4595, %v4428
        %v4597 = vmax.f32 %v4596, %v4460
        %v4598 = vmax.f32 %v4597, %v4492
        %v4599 = vmax.f32 %v4598, %v4524
        %v4600 = vmax.f32 %v4599, %v4556
        %v4601 = vmax.f32 %v4333, %v4365
        %v4602 = vmax.f32 %v4601, %v4397
        %v4603 = vmax.f32 %v4602, %v4429
        %v4604 = vmax.f32 %v4603, %v4461
        %v4605 = vmax.f32 %v4604, %v4493
        %v4606 = vmax.f32 %v4605, %v4525
        %v4607 = vmax.f32 %v4606, %v4557
        %v4608 = vmax.f32 %v4334, %v4366
        %v4609 = vmax.f32 %v4608, %v4398
        %v4610 = vmax.f32 %v4609, %v4430
        %v4611 = vmax.f32 %v4610, %v4462
        %v4612 = vmax.f32 %v4611, %v4494
        %v4613 = vmax.f32 %v4612, %v4526
        %v4614 = vmax.f32 %v4613, %v4558
        %v4615 = vmax.f32 %v4335, %v4367
        %v4616 = vmax.f32 %v4615, %v4399
        %v4617 = vmax.f32 %v4616, %v4431
        %v4618 = vmax.f32 %v4617, %v4463
        %v4619 = vmax.f32 %v4618, %v4495
        %v4620 = vmax.f32 %v4619, %v4527
        %v4621 = vmax.f32 %v4620, %v4559
        %v4622 = vmax.f32 %v4336, %v4368
        %v4623 = vmax.f32 %v4622, %v4400
        %v4624 = vmax.f32 %v4623, %v4432
        %v4625 = vmax.f32 %v4624, %v4464
        %v4626 = vmax.f32 %v4625, %v4496
        %v4627 = vmax.f32 %v4626, %v4528
        %v4628 = vmax.f32 %v4627, %v4560
        %v4629 = vmax.f32 %v4337, %v4369
        %v4630 = vmax.f32 %v4629, %v4401
        %v4631 = vmax.f32 %v4630, %v4433
        %v4632 = vmax.f32 %v4631, %v4465
        %v4633 = vmax.f32 %v4632, %v4497
        %v4634 = vmax.f32 %v4633, %v4529
        %v4635 = vmax.f32 %v4634, %v4561
        %v4636 = vmax.f32 %v4338, %v4370
        %v4637 = vmax.f32 %v4636, %v4402
        %v4638 = vmax.f32 %v4637, %v4434
        %v4639 = vmax.f32 %v4638, %v4466
        %v4640 = vmax.f32 %v4639, %v4498
        %v4641 = vmax.f32 %v4640, %v4530
        %v4642 = vmax.f32 %v4641, %v4562
        %v4643 = vmax.f32 %v4339, %v4371
        %v4644 = vmax.f32 %v4643, %v4403
        %v4645 = vmax.f32 %v4644, %v4435
        %v4646 = vmax.f32 %v4645, %v4467
        %v4647 = vmax.f32 %v4646, %v4499
        %v4648 = vmax.f32 %v4647, %v4531
        %v4649 = vmax.f32 %v4648, %v4563
        %v4650 = vmax.f32 %v4340, %v4372
        %v4651 = vmax.f32 %v4650, %v4404
        %v4652 = vmax.f32 %v4651, %v4436
        %v4653 = vmax.f32 %v4652, %v4468
        %v4654 = vmax.f32 %v4653, %v4500
        %v4655 = vmax.f32 %v4654, %v4532
        %v4656 = vmax.f32 %v4655, %v4564
        %v4657 = vmax.f32 %v4341, %v4373
        %v4658 = vmax.f32 %v4657, %v4405
        %v4659 = vmax.f32 %v4658, %v4437
        %v4660 = vmax.f32 %v4659, %v4469
        %v4661 = vmax.f32 %v4660, %v4501
        %v4662 = vmax.f32 %v4661, %v4533
        %v4663 = vmax.f32 %v4662, %v4565
        %v4664 = vmax.f32 %v4342, %v4374
        %v4665 = vmax.f32 %v4664, %v4406
        %v4666 = vmax.f32 %v4665, %v4438
        %v4667 = vmax.f32 %v4666, %v4470
        %v4668 = vmax.f32 %v4667, %v4502
        %v4669 = vmax.f32 %v4668, %v4534
        %v4670 = vmax.f32 %v4669, %v4566
        %v4671 = vmax.f32 %v4343, %v4375
        %v4672 = vmax.f32 %v4671, %v4407
        %v4673 = vmax.f32 %v4672, %v4439
        %v4674 = vmax.f32 %v4673, %v4471
        %v4675 = vmax.f32 %v4674, %v4503
        %v4676 = vmax.f32 %v4675, %v4535
        %v4677 = vmax.f32 %v4676, %v4567
        %v4678 = vmax.f32 %v4344, %v4376
        %v4679 = vmax.f32 %v4678, %v4408
        %v4680 = vmax.f32 %v4679, %v4440
        %v4681 = vmax.f32 %v4680, %v4472
        %v4682 = vmax.f32 %v4681, %v4504
        %v4683 = vmax.f32 %v4682, %v4536
        %v4684 = vmax.f32 %v4683, %v4568
        %v4685 = vmax.f32 %v4345, %v4377
        %v4686 = vmax.f32 %v4685, %v4409
        %v4687 = vmax.f32 %v4686, %v4441
        %v4688 = vmax.f32 %v4687, %v4473
        %v4689 = vmax.f32 %v4688, %v4505
        %v4690 = vmax.f32 %v4689, %v4537
        %v4691 = vmax.f32 %v4690, %v4569
        %v4692 = vmax.f32 %v4346, %v4378
        %v4693 = vmax.f32 %v4692, %v4410
        %v4694 = vmax.f32 %v4693, %v4442
        %v4695 = vmax.f32 %v4694, %v4474
        %v4696 = vmax.f32 %v4695, %v4506
        %v4697 = vmax.f32 %v4696, %v4538
        %v4698 = vmax.f32 %v4697, %v4570
        %v4699 = vmax.f32 %v4347, %v4379
        %v4700 = vmax.f32 %v4699, %v4411
        %v4701 = vmax.f32 %v4700, %v4443
        %v4702 = vmax.f32 %v4701, %v4475
        %v4703 = vmax.f32 %v4702, %v4507
        %v4704 = vmax.f32 %v4703, %v4539
        %v4705 = vmax.f32 %v4704, %v4571
        %v4706 = vmax.f32 %v4348, %v4380
        %v4707 = vmax.f32 %v4706, %v4412
        %v4708 = vmax.f32 %v4707, %v4444
        %v4709 = vmax.f32 %v4708, %v4476
        %v4710 = vmax.f32 %v4709, %v4508
        %v4711 = vmax.f32 %v4710, %v4540
        %v4712 = vmax.f32 %v4711, %v4572
        %v4713 = vmax.f32 %v4349, %v4381
        %v4714 = vmax.f32 %v4713, %v4413
        %v4715 = vmax.f32 %v4714, %v4445
        %v4716 = vmax.f32 %v4715, %v4477
        %v4717 = vmax.f32 %v4716, %v4509
        %v4718 = vmax.f32 %v4717, %v4541
        %v4719 = vmax.f32 %v4718, %v4573
        %v4720 = vmax.f32 %v4350, %v4382
        %v4721 = vmax.f32 %v4720, %v4414
        %v4722 = vmax.f32 %v4721, %v4446
        %v4723 = vmax.f32 %v4722, %v4478
        %v4724 = vmax.f32 %v4723, %v4510
        %v4725 = vmax.f32 %v4724, %v4542
        %v4726 = vmax.f32 %v4725, %v4574
        %v4727 = vmax.f32 %v4351, %v4383
        %v4728 = vmax.f32 %v4727, %v4415
        %v4729 = vmax.f32 %v4728, %v4447
        %v4730 = vmax.f32 %v4729, %v4479
        %v4731 = vmax.f32 %v4730, %v4511
        %v4732 = vmax.f32 %v4731, %v4543
        %v4733 = vmax.f32 %v4732, %v4575
        %v4734 = vmax.f32 %v4352, %v4384
        %v4735 = vmax.f32 %v4734, %v4416
        %v4736 = vmax.f32 %v4735, %v4448
        %v4737 = vmax.f32 %v4736, %v4480
        %v4738 = vmax.f32 %v4737, %v4512
        %v4739 = vmax.f32 %v4738, %v4544
        %v4740 = vmax.f32 %v4739, %v4576
        %v4741 = vmax.f32 %v4353, %v4385
        %v4742 = vmax.f32 %v4741, %v4417
        %v4743 = vmax.f32 %v4742, %v4449
        %v4744 = vmax.f32 %v4743, %v4481
        %v4745 = vmax.f32 %v4744, %v4513
        %v4746 = vmax.f32 %v4745, %v4545
        %v4747 = vmax.f32 %v4746, %v4577
        %v4748 = vmax.f32 %v4354, %v4386
        %v4749 = vmax.f32 %v4748, %v4418
        %v4750 = vmax.f32 %v4749, %v4450
        %v4751 = vmax.f32 %v4750, %v4482
        %v4752 = vmax.f32 %v4751, %v4514
        %v4753 = vmax.f32 %v4752, %v4546
        %v4754 = vmax.f32 %v4753, %v4578
        %v4755 = vmax.f32 %v4355, %v4387
        %v4756 = vmax.f32 %v4755, %v4419
        %v4757 = vmax.f32 %v4756, %v4451
        %v4758 = vmax.f32 %v4757, %v4483
        %v4759 = vmax.f32 %v4758, %v4515
        %v4760 = vmax.f32 %v4759, %v4547
        %v4761 = vmax.f32 %v4760, %v4579
        %v4762 = vmax.f32 %v4356, %v4388
        %v4763 = vmax.f32 %v4762, %v4420
        %v4764 = vmax.f32 %v4763, %v4452
        %v4765 = vmax.f32 %v4764, %v4484
        %v4766 = vmax.f32 %v4765, %v4516
        %v4767 = vmax.f32 %v4766, %v4548
        %v4768 = vmax.f32 %v4767, %v4580
        %v4769 = vmax.f32 %v4357, %v4389
        %v4770 = vmax.f32 %v4769, %v4421
        %v4771 = vmax.f32 %v4770, %v4453
        %v4772 = vmax.f32 %v4771, %v4485
        %v4773 = vmax.f32 %v4772, %v4517
        %v4774 = vmax.f32 %v4773, %v4549
        %v4775 = vmax.f32 %v4774, %v4581
        %v4776 = vmax.f32 %v4358, %v4390
        %v4777 = vmax.f32 %v4776, %v4422
        %v4778 = vmax.f32 %v4777, %v4454
        %v4779 = vmax.f32 %v4778, %v4486
        %v4780 = vmax.f32 %v4779, %v4518
        %v4781 = vmax.f32 %v4780, %v4550
        %v4782 = vmax.f32 %v4781, %v4582
        %v4783 = vmax.f32 %v4359, %v4391
        %v4784 = vmax.f32 %v4783, %v4423
        %v4785 = vmax.f32 %v4784, %v4455
        %v4786 = vmax.f32 %v4785, %v4487
        %v4787 = vmax.f32 %v4786, %v4519
        %v4788 = vmax.f32 %v4787, %v4551
        %v4789 = vmax.f32 %v4788, %v4583
        %v4790 = vmax.f32 %v4360, %v4392
        %v4791 = vmax.f32 %v4790, %v4424
        %v4792 = vmax.f32 %v4791, %v4456
        %v4793 = vmax.f32 %v4792, %v4488
        %v4794 = vmax.f32 %v4793, %v4520
        %v4795 = vmax.f32 %v4794, %v4552
        %v4796 = vmax.f32 %v4795, %v4584
        %v4797 = vmax.f32 %v4361, %v4393
        %v4798 = vmax.f32 %v4797, %v4425
        %v4799 = vmax.f32 %v4798, %v4457
        %v4800 = vmax.f32 %v4799, %v4489
        %v4801 = vmax.f32 %v4800, %v4521
        %v4802 = vmax.f32 %v4801, %v4553
        %v4803 = vmax.f32 %v4802, %v4585
        %v4804 = vmax.f32 %v4362, %v4394
        %v4805 = vmax.f32 %v4804, %v4426
        %v4806 = vmax.f32 %v4805, %v4458
        %v4807 = vmax.f32 %v4806, %v4490
        %v4808 = vmax.f32 %v4807, %v4522
        %v4809 = vmax.f32 %v4808, %v4554
        %v4810 = vmax.f32 %v4809, %v4586
        %4811 = vst [vmem:[%s188] sm:$0xff] %v4593
        %4812 = vst [vmem:[%s188 + $0x8] sm:$0xff] %v4600
        %4813 = vst [vmem:[%s188 + $0x10] sm:$0xff] %v4607
        %4814 = vst [vmem:[%s188 + $0x18] sm:$0xff] %v4614
        %4815 = vst [vmem:[%s188 + $0x20] sm:$0xff] %v4621
        %4816 = vst [vmem:[%s188 + $0x28] sm:$0xff] %v4628
        %4817 = vst [vmem:[%s188 + $0x30] sm:$0xff] %v4635
        %4818 = vst [vmem:[%s188 + $0x38] sm:$0xff] %v4642
        %4819 = vst [vmem:[%s188 + $0x40] sm:$0xff] %v4649
        %4820 = vst [vmem:[%s188 + $0x48] sm:$0xff] %v4656
        %4821 = vst [vmem:[%s188 + $0x50] sm:$0xff] %v4663
        %4822 = vst [vmem:[%s188 + $0x58] sm:$0xff] %v4670
        %4823 = vst [vmem:[%s188 + $0x60] sm:$0xff] %v4677
        %4824 = vst [vmem:[%s188 + $0x68] sm:$0xff] %v4684
        %4825 = vst [vmem:[%s188 + $0x70] sm:$0xff] %v4691
        %4826 = vst [vmem:[%s188 + $0x78] sm:$0xff] %v4698
        %4827 = vst [vmem:[%s188 + $0x80] sm:$0xff] %v4705
        %4828 = vst [vmem:[%s188 + $0x88] sm:$0xff] %v4712
        %4829 = vst [vmem:[%s188 + $0x90] sm:$0xff] %v4719
        %4830 = vst [vmem:[%s188 + $0x98] sm:$0xff] %v4726
        %4831 = vst [vmem:[%s188 + $0xa0] sm:$0xff] %v4733
        %4832 = vst [vmem:[%s188 + $0xa8] sm:$0xff] %v4740
        %4833 = vst [vmem:[%s188 + $0xb0] sm:$0xff] %v4747
        %4834 = vst [vmem:[%s188 + $0xb8] sm:$0xff] %v4754
        %4835 = vst [vmem:[%s188 + $0xc0] sm:$0xff] %v4761
        %4836 = vst [vmem:[%s188 + $0xc8] sm:$0xff] %v4768
        %4837 = vst [vmem:[%s188 + $0xd0] sm:$0xff] %v4775
        %4838 = vst [vmem:[%s188 + $0xd8] sm:$0xff] %v4782
        %4839 = vst [vmem:[%s188 + $0xe0] sm:$0xff] %v4789
        %4840 = vst [vmem:[%s188 + $0xe8] sm:$0xff] %v4796
        %4841 = vst [vmem:[%s188 + $0xf0] sm:$0xff] %v4803
        %4842 = vst [vmem:[%s188 + $0xf8] sm:$0xff] %v4810
        %s4843 = sand.u32 %s109, 1
        %s4844 = scalar_lea.sflag [#allocation3], %s4843
        %s4845 = sand.u32 %s109, 1
        %s4846 = smul.addr %s4845, 256
        %s4847 = scalar_lea.vmem [#allocation2], %s4846
        // Predicated region
        $region33: #{tpu_custom_call.1} parent=31 // pred_check
          %p4848 = pneg %p119
        $region34: #{tpu_custom_call.1} parent=31 // pred_check_branch
          %4850 = sbr.rel (%p4848) target = $region36
        $region35: #{tpu_custom_call.1} parent=31 // pred_region
          %s4851 = smul.u32 32, %s22
          %4853 = vsyncadd %s4844, 0
          %s4854 = smul.addr %s21, 32
          %s4855 = sadd.s32 %s4851, %s4854
          %s4856 = smul.addr %s4855, 8
          %s4857 = scalar_lea.hbm %s3, %s4856
          %s4858 = sshll.u32 %s4847, 4
          %s4859 = int_to_ptr.vmem [resolvable:$true] %s4858
          %s4860 = sshll.u32 %s4857, 4
          %s4861 = int_to_ptr.hbm [resolvable:$true] %s4860
          %4866 = dma.vmem_to_hbm [thread:$0]  %s4859, 4096, %s4861, %s4844, 128, 128, 8
        $region36: #{tpu_custom_call.1} parent=31 // pred_fallthru
          _
      $region32: #{tpu_custom_call.1} parent=5 // pred_fallthru
        _
      %p4867 = scmp.le.s32.totalorder 2, %s12
      // Predicated region
      $region37: #{tpu_custom_call.1} parent=5 // pred_check
        %p4868 = pneg %p4867
      $region38: #{tpu_custom_call.1} parent=5 // pred_check_branch
        %4870 = sbr.rel (%p4868) target = $region40
      $region39: #{tpu_custom_call.1} parent=5 // pred_region
        %s4871 = ssub.s32 %s12, 2
        // Predicated region
        $region41: #{tpu_custom_call.1} parent=39 // pred_check
          %p4872 = pneg %p125
        $region42: #{tpu_custom_call.1} parent=39 // pred_check_branch
          %4874 = sbr.rel (%p4872) target = $region44
        $region43: #{tpu_custom_call.1} parent=39 // pred_region
          %s4875 = sand.u32 %s110, 1
          %s4876 = scalar_lea.sflag [#allocation3], %s4875
          %s4877 = sand.u32 %s110, 1
          %s4878 = smul.addr %s4877, 256
          %s4879 = scalar_lea.vmem [#allocation2], %s4878
          %4881 = dma.done %s4876, 4096
        $region44: #{tpu_custom_call.1} parent=39 // pred_fallthru
          _
      $region40: #{tpu_custom_call.1} parent=5 // pred_fallthru
        _
    $region6: #{tpu_custom_call.1} parent=1 // loop_footer
      %s16 = sadd.s32 1, %s12
    $region7: #{tpu_custom_call.1} parent=1 // loop_footer_branch
      %11 = sbr.rel target = $region3
    $region8: #{tpu_custom_call.1} parent=1 // loop_exit
      _
    %4882 = vsyncpa [#allocation3], 1
    %s4883 = scalar_lea.sflag [#allocation3], 1
    %4884 = vsyncpa %s4883, 1

</llo_original>
